<compile_context>
chip_gen: v6e
topology: v6e:2x2x1
jax: 0.10.0
libtpu: 0.0.40
codegen_flags: <defaults>
</compile_context>

<pallas_src>
import functools

import jax
import jax.numpy as jnp
from jax.experimental import pallas as pl
from jax.experimental.pallas import tpu as pltpu


def _round_up(x, m):
    return (x + m - 1) // m * m


def fused_resnet_pair_kernel(x_ref, w1_ref, w2_ref, o_ref,
                             xpad_ref, ypad_ref, col1_ref, col2_ref):
    """Fused conv3x3 -> conv3x3 (+bias, +optional residual) for one batch image.

    x_ref   : (H, W, Cin)                NHWC image (one batch element)
    w1_ref  : (9*Cin + 1, Cpad)          conv1 taps (im2col order) + bias row;
                                         output channels zero-padded to Cpad lanes
    w2_ref  : (9*Ch + 1 + Cin, Cpad)     conv2 taps + bias row + residual identity block
    o_ref   : (H*W, Cpad)                lane-dense output (channels padded to Cpad)
    xpad_ref: (H+2, W+2, Cin)  scratch   zero-bordered padded input
    ypad_ref: (H+2, W+2, Ch)   scratch   zero-bordered padded conv1 output (stays in VMEM)
    col1_ref: (H*W, 9*Cin + 1) scratch   im2col slab for conv1 (+ ones column for bias)
    col2_ref: (H*W, 9*Ch+1+Cin) scratch  im2col slab for conv2 (+ ones + residual cols)
    """
    h, w, c_in = x_ref.shape
    c_hid = ypad_ref.shape[-1]
    hw = h * w

    # One-time init of things that never change across the batch grid:
    # the zero borders of the padded scratch images and the constant ones column
    # that folds the bias into the matmul.
    @pl.when(pl.program_id(0) == 0)
    def _init():
        xpad_ref[...] = jnp.zeros_like(xpad_ref)
        ypad_ref[...] = jnp.zeros_like(ypad_ref)
        col1_ref[:, 9 * c_in:9 * c_in + 1] = jnp.ones((hw, 1), jnp.float32)
        col2_ref[:, 9 * c_hid:9 * c_hid + 1] = jnp.ones((hw, 1), jnp.float32)

    # In-kernel spatial zero padding: interior copy only, border already zero.
    x = x_ref[...].astype(jnp.float32)
    xpad_ref[1:h + 1, 1:w + 1, :] = x

    def build_taps(src_ref, col_ref, c):
        # 3x3 im2col: 9 shifted windows written as lane-bands of the slab
        # (leading-dim collapse keeps the lane axis -> no lane relayout).
        for dy in range(3):
            for dx in range(3):
                t = 3 * dy + dx
                tap = src_ref[dy:dy + h, dx:dx + w, :].reshape(hw, c)
                col_ref[:, t * c:(t + 1) * c] = tap

    # ---------------- conv1: one fat MXU matmul, bias folded into K ----------------
    build_taps(xpad_ref, col1_ref, c_in)
    y1 = jnp.dot(col1_ref[...], w1_ref[...], preferred_element_type=jnp.float32)
    # Keep y1 in VMEM (fusion): scatter its real channels into the padded scratch image.
    ypad_ref[1:h + 1, 1:w + 1, :] = y1[:, :c_hid].reshape(h, w, c_hid)

    # ---------- conv2: bias + residual both folded into the same matmul ------------
    build_taps(ypad_ref, col2_ref, c_hid)
    col2_ref[:, 9 * c_hid + 1:9 * c_hid + 1 + c_in] = x.reshape(hw, c_in)  # residual cols
    y2 = jnp.dot(col2_ref[...], w2_ref[...], preferred_element_type=jnp.float32)

    # Fully lane-dense store (Cpad is a multiple of 128).
    o_ref[...] = y2.astype(o_ref.dtype)


def my_resnet_pair(x_nchw, w1_oihw, b1, w2_oihw, b2, *, apply_residual=True):
    """Forward pass of MyResNetPair. Input/output are NCHW (PyTorch convention)."""
    f32 = jnp.float32
    N, Cin, H, W = x_nchw.shape
    Ch = w1_oihw.shape[0]
    assert w2_oihw.shape[:2] == (Ch, Ch)
    if apply_residual:
        assert Cin == Ch, "residual requires input_channels == channels"

    Cpad = _round_up(max(Ch, 1), 128)          # lane-dense output channel padding

    # Single NCHW -> NHWC transpose at the boundary (kernel is channel-last).
    x = jnp.transpose(x_nchw, (0, 2, 3, 1)).astype(f32)

    def pack_weight(w_oihw, b, extra_rows=0):
        cin = w_oihw.shape[1]
        # OIHW -> (ky, kx, cin, cout) -> (9*cin, cout): row index = (3*ky+kx)*cin + c,
        # matching the im2col column order built in the kernel.
        w2d = jnp.transpose(w_oihw, (2, 3, 1, 0)).reshape(9 * cin, Ch).astype(f32)
        wpad = jnp.zeros((9 * cin + 1 + extra_rows, Cpad), f32)
        wpad = wpad.at[:9 * cin, :Ch].set(w2d)
        wpad = wpad.at[9 * cin, :Ch].set(b.astype(f32))      # bias row (ones column)
        return wpad

    w1p = pack_weight(w1_oihw, b1)
    w2p = pack_weight(w2_oihw, b2, extra_rows=Cin)
    if apply_residual:
        # Identity block: residual x[..., c] feeds output channel c through the MXU,
        # so no separate VPU residual pass is needed in the kernel.
        w2p = w2p.at[9 * Ch + 1 + jnp.arange(Cin), jnp.arange(Cin)].set(1.0)

    out = pl.pallas_call(
        fused_resnet_pair_kernel,
        out_shape=jax.ShapeDtypeStruct((N, H * W, Cpad), f32),
        grid=(N,),
        in_specs=[
            pl.BlockSpec((None, H, W, Cin), lambda n: (n, 0, 0, 0)),
            pl.BlockSpec((9 * Cin + 1, Cpad), lambda n: (0, 0)),
            pl.BlockSpec((9 * Ch + 1 + Cin, Cpad), lambda n: (0, 0)),
        ],
        out_specs=pl.BlockSpec((None, H * W, Cpad), lambda n: (n, 0, 0)),
        scratch_shapes=[
            pltpu.VMEM((H + 2, W + 2, Cin), f32),              # padded x
            pltpu.VMEM((H + 2, W + 2, Ch), f32),               # padded y1 (stays on-chip)
            pltpu.VMEM((H * W, 9 * Cin + 1), f32),             # im2col slab conv1
            pltpu.VMEM((H * W, 9 * Ch + 1 + Cin), f32),        # im2col slab conv2
        ],
        compiler_params=pltpu.CompilerParams(
            dimension_semantics=("parallel",),                  # batch split across TCs
            vmem_limit_bytes=32 * 1024 * 1024,
        ),
    )(x, w1p, w2p)

    # Drop lane padding + back to NCHW (XLA fuses slice/reshape/transpose into one pass).
    y = out[:, :, :Ch].reshape(N, H, W, Ch)
    return jnp.transpose(y, (0, 3, 1, 2))


def _reference(x, w1, b1, w2, b2, apply_residual=True):
    """Pure-JAX reference (NCHW, matches nn.Conv2d(3x3, stride 1, pad 1))."""
    def conv(z, w, b):
        y = jax.lax.conv_general_dilated(
            z, w, window_strides=(1, 1), padding=((1, 1), (1, 1)),
            dimension_numbers=("NCHW", "OIHW", "NCHW"),
            precision=jax.lax.Precision.HIGHEST)
        return y + b.reshape(1, -1, 1, 1)
    y = conv(conv(x, w1, b1), w2, b2)
    return x + y if apply_residual else y


if __name__ == "__main__":
    # Small shapes consistent with the module: batch=2, channels=4, spatial=16.
    N, C, H, W = 2, 4, 16, 16
    channels = C  # residual requires input_channels == channels

    key = jax.random.PRNGKey(0)
    k1, k2, k3, k4, k5 = jax.random.split(key, 5)

    # PyTorch-default-style init: U(-1/sqrt(fan_in), 1/sqrt(fan_in)), fan_in = Cin*3*3
    bound1 = 1.0 / (C * 9) ** 0.5
    w1 = jax.random.uniform(k1, (channels, C, 3, 3), jnp.float32, -bound1, bound1)
    b1 = jax.random.uniform(k2, (channels,), jnp.float32, -bound1, bound1)
    bound2 = 1.0 / (channels * 9) ** 0.5
    w2 = jax.random.uniform(k3, (channels, channels, 3, 3), jnp.float32, -bound2, bound2)
    b2 = jax.random.uniform(k4, (channels,), jnp.float32, -bound2, bound2)

    x = jax.random.normal(k5, (N, C, H, W), jnp.float32)

    fwd = jax.jit(functools.partial(my_resnet_pair, apply_residual=True))
    out = jax.block_until_ready(fwd(x, w1, b1, w2, b2))

    ref = _reference(x, w1, b1, w2, b2, apply_residual=True)
    assert out.shape == (N, channels, H, W), out.shape
    err = float(jnp.max(jnp.abs(out - ref)))
    assert jnp.allclose(out, ref, atol=2e-3, rtol=2e-3), err

    print("KERNEL_OK")
</pallas_src>

<mosaic_0001>
module attributes {stable_mosaic.version = 11 : i64} {
  func.func @fused_resnet_pair_kernel(%arg0: i32, %arg1: memref<1x16x16x4xf32, #tpu.memory_space<vmem>>, %arg2: memref<37x128xf32, #tpu.memory_space<vmem>>, %arg3: memref<41x128xf32, #tpu.memory_space<vmem>>, %arg4: memref<1x256x128xf32, #tpu.memory_space<vmem>>, %arg5: memref<18x18x4xf32, #tpu.memory_space<vmem>>, %arg6: memref<18x18x4xf32, #tpu.memory_space<vmem>>, %arg7: memref<256x37xf32, #tpu.memory_space<vmem>>, %arg8: memref<256x41xf32, #tpu.memory_space<vmem>>) attributes {dimension_semantics = [#tpu.dimension_semantics<parallel>], iteration_bounds = array<i64: 2>, scalar_prefetch = 0 : i64, scratch_operands = 4 : i64, tpu.core_type = #tpu.core_type<tc>, window_params = [{transform_indices = @transform_0, window_bounds = array<i64: 1, 16, 16, 4>}, {pipeline_mode = #tpu.pipeline_mode<synchronous>, transform_indices = @transform_1, window_bounds = array<i64: 37, 128>}, {pipeline_mode = #tpu.pipeline_mode<synchronous>, transform_indices = @transform_2, window_bounds = array<i64: 41, 128>}, {transform_indices = @transform_3, window_bounds = array<i64: 1, 256, 128>}]} {
    %c0_i32 = arith.constant 0 : i32
    %0 = arith.cmpi eq, %arg0, %c0_i32 : i32
    %1 = arith.extui %0 : i1 to i32
    %c0_i32_0 = arith.constant 0 : i32
    %2 = arith.cmpi ne, %1, %c0_i32_0 : i32
    scf.if %2 {
      %cst_103 = arith.constant 0.000000e+00 : f32
      %74 = vector.broadcast %cst_103 : f32 to vector<18x18x4xf32>
      %c0_104 = arith.constant 0 : index
      %c0_105 = arith.constant 0 : index
      %c0_106 = arith.constant 0 : index
      %75 = vector.load %arg5[%c0_104, %c0_105, %c0_106] : memref<18x18x4xf32, #tpu.memory_space<vmem>>, vector<18x18x4xf32>
      tpu.vector_store %arg5[%c0_104, %c0_105, %c0_106], %74 {strides = array<i32>} : memref<18x18x4xf32, #tpu.memory_space<vmem>>, vector<18x18x4xf32>,
      %cst_107 = arith.constant 0.000000e+00 : f32
      %76 = vector.broadcast %cst_107 : f32 to vector<18x18x4xf32>
      %c0_108 = arith.constant 0 : index
      %c0_109 = arith.constant 0 : index
      %c0_110 = arith.constant 0 : index
      %77 = vector.load %arg6[%c0_108, %c0_109, %c0_110] : memref<18x18x4xf32, #tpu.memory_space<vmem>>, vector<18x18x4xf32>
      tpu.vector_store %arg6[%c0_108, %c0_109, %c0_110], %76 {strides = array<i32>} : memref<18x18x4xf32, #tpu.memory_space<vmem>>, vector<18x18x4xf32>,
      %cst_111 = arith.constant 1.000000e+00 : f32
      %78 = vector.broadcast %cst_111 : f32 to vector<256x1xf32>
      %c0_112 = arith.constant 0 : index
      %c36 = arith.constant 36 : index
      %79 = vector.load %arg7[%c0_112, %c36] : memref<256x37xf32, #tpu.memory_space<vmem>>, vector<256x1xf32>
      tpu.vector_store %arg7[%c0_112, %c36], %78 {strides = array<i32>} : memref<256x37xf32, #tpu.memory_space<vmem>>, vector<256x1xf32>,
      %cst_113 = arith.constant 1.000000e+00 : f32
      %80 = vector.broadcast %cst_113 : f32 to vector<256x1xf32>
      %c0_114 = arith.constant 0 : index
      %c36_115 = arith.constant 36 : index
      %81 = vector.load %arg8[%c0_114, %c36_115] : memref<256x41xf32, #tpu.memory_space<vmem>>, vector<256x1xf32>
      tpu.vector_store %arg8[%c0_114, %c36_115], %80 {strides = array<i32>} : memref<256x41xf32, #tpu.memory_space<vmem>>, vector<256x1xf32>,
    } else {
    }
    %c0 = arith.constant 0 : index
    %c0_1 = arith.constant 0 : index
    %c0_2 = arith.constant 0 : index
    %c0_3 = arith.constant 0 : index
    %3 = vector.load %arg1[%c0, %c0_1, %c0_2, %c0_3] : memref<1x16x16x4xf32, #tpu.memory_space<vmem>>, vector<1x16x16x4xf32>
    %4 = vector.shape_cast %3 : vector<1x16x16x4xf32> to vector<16x16x4xf32>
    %c1 = arith.constant 1 : index
    %c1_4 = arith.constant 1 : index
    %c0_5 = arith.constant 0 : index
    %5 = vector.load %arg5[%c1, %c1_4, %c0_5] : memref<18x18x4xf32, #tpu.memory_space<vmem>>, vector<16x16x4xf32>
    tpu.vector_store %arg5[%c1, %c1_4, %c0_5], %4 {strides = array<i32>} : memref<18x18x4xf32, #tpu.memory_space<vmem>>, vector<16x16x4xf32>,
    %c0_6 = arith.constant 0 : index
    %c0_7 = arith.constant 0 : index
    %c0_8 = arith.constant 0 : index
    %6 = vector.load %arg5[%c0_6, %c0_7, %c0_8] : memref<18x18x4xf32, #tpu.memory_space<vmem>>, vector<16x16x4xf32>
    %7 = vector.shape_cast %6 : vector<16x16x4xf32> to vector<256x4xf32>
    %c0_9 = arith.constant 0 : index
    %c0_10 = arith.constant 0 : index
    %8 = vector.load %arg7[%c0_9, %c0_10] : memref<256x37xf32, #tpu.memory_space<vmem>>, vector<256x4xf32>
    tpu.vector_store %arg7[%c0_9, %c0_10], %7 {strides = array<i32>} : memref<256x37xf32, #tpu.memory_space<vmem>>, vector<256x4xf32>,
    %c0_11 = arith.constant 0 : index
    %c1_12 = arith.constant 1 : index
    %c0_13 = arith.constant 0 : index
    %9 = vector.load %arg5[%c0_11, %c1_12, %c0_13] : memref<18x18x4xf32, #tpu.memory_space<vmem>>, vector<16x16x4xf32>
    %10 = vector.shape_cast %9 : vector<16x16x4xf32> to vector<256x4xf32>
    %c0_14 = arith.constant 0 : index
    %c4 = arith.constant 4 : index
    %11 = vector.load %arg7[%c0_14, %c4] : memref<256x37xf32, #tpu.memory_space<vmem>>, vector<256x4xf32>
    tpu.vector_store %arg7[%c0_14, %c4], %10 {strides = array<i32>} : memref<256x37xf32, #tpu.memory_space<vmem>>, vector<256x4xf32>,
    %c0_15 = arith.constant 0 : index
    %c2 = arith.constant 2 : index
    %c0_16 = arith.constant 0 : index
    %12 = vector.load %arg5[%c0_15, %c2, %c0_16] : memref<18x18x4xf32, #tpu.memory_space<vmem>>, vector<16x16x4xf32>
    %13 = vector.shape_cast %12 : vector<16x16x4xf32> to vector<256x4xf32>
    %c0_17 = arith.constant 0 : index
    %c8 = arith.constant 8 : index
    %14 = vector.load %arg7[%c0_17, %c8] : memref<256x37xf32, #tpu.memory_space<vmem>>, vector<256x4xf32>
    tpu.vector_store %arg7[%c0_17, %c8], %13 {strides = array<i32>} : memref<256x37xf32, #tpu.memory_space<vmem>>, vector<256x4xf32>,
    %c1_18 = arith.constant 1 : index
    %c0_19 = arith.constant 0 : index
    %c0_20 = arith.constant 0 : index
    %15 = vector.load %arg5[%c1_18, %c0_19, %c0_20] : memref<18x18x4xf32, #tpu.memory_space<vmem>>, vector<16x16x4xf32>
    %16 = vector.shape_cast %15 : vector<16x16x4xf32> to vector<256x4xf32>
    %c0_21 = arith.constant 0 : index
    %c12 = arith.constant 12 : index
    %17 = vector.load %arg7[%c0_21, %c12] : memref<256x37xf32, #tpu.memory_space<vmem>>, vector<256x4xf32>
    tpu.vector_store %arg7[%c0_21, %c12], %16 {strides = array<i32>} : memref<256x37xf32, #tpu.memory_space<vmem>>, vector<256x4xf32>,
    %c1_22 = arith.constant 1 : index
    %c1_23 = arith.constant 1 : index
    %c0_24 = arith.constant 0 : index
    %18 = vector.load %arg5[%c1_22, %c1_23, %c0_24] : memref<18x18x4xf32, #tpu.memory_space<vmem>>, vector<16x16x4xf32>
    %19 = vector.shape_cast %18 : vector<16x16x4xf32> to vector<256x4xf32>
    %c0_25 = arith.constant 0 : index
    %c16 = arith.constant 16 : index
    %20 = vector.load %arg7[%c0_25, %c16] : memref<256x37xf32, #tpu.memory_space<vmem>>, vector<256x4xf32>
    tpu.vector_store %arg7[%c0_25, %c16], %19 {strides = array<i32>} : memref<256x37xf32, #tpu.memory_space<vmem>>, vector<256x4xf32>,
    %c1_26 = arith.constant 1 : index
    %c2_27 = arith.constant 2 : index
    %c0_28 = arith.constant 0 : index
    %21 = vector.load %arg5[%c1_26, %c2_27, %c0_28] : memref<18x18x4xf32, #tpu.memory_space<vmem>>, vector<16x16x4xf32>
    %22 = vector.shape_cast %21 : vector<16x16x4xf32> to vector<256x4xf32>
    %c0_29 = arith.constant 0 : index
    %c20 = arith.constant 20 : index
    %23 = vector.load %arg7[%c0_29, %c20] : memref<256x37xf32, #tpu.memory_space<vmem>>, vector<256x4xf32>
    tpu.vector_store %arg7[%c0_29, %c20], %22 {strides = array<i32>} : memref<256x37xf32, #tpu.memory_space<vmem>>, vector<256x4xf32>,
    %c2_30 = arith.constant 2 : index
    %c0_31 = arith.constant 0 : index
    %c0_32 = arith.constant 0 : index
    %24 = vector.load %arg5[%c2_30, %c0_31, %c0_32] : memref<18x18x4xf32, #tpu.memory_space<vmem>>, vector<16x16x4xf32>
    %25 = vector.shape_cast %24 : vector<16x16x4xf32> to vector<256x4xf32>
    %c0_33 = arith.constant 0 : index
    %c24 = arith.constant 24 : index
    %26 = vector.load %arg7[%c0_33, %c24] : memref<256x37xf32, #tpu.memory_space<vmem>>, vector<256x4xf32>
    tpu.vector_store %arg7[%c0_33, %c24], %25 {strides = array<i32>} : memref<256x37xf32, #tpu.memory_space<vmem>>, vector<256x4xf32>,
    %c2_34 = arith.constant 2 : index
    %c1_35 = arith.constant 1 : index
    %c0_36 = arith.constant 0 : index
    %27 = vector.load %arg5[%c2_34, %c1_35, %c0_36] : memref<18x18x4xf32, #tpu.memory_space<vmem>>, vector<16x16x4xf32>
    %28 = vector.shape_cast %27 : vector<16x16x4xf32> to vector<256x4xf32>
    %c0_37 = arith.constant 0 : index
    %c28 = arith.constant 28 : index
    %29 = vector.load %arg7[%c0_37, %c28] : memref<256x37xf32, #tpu.memory_space<vmem>>, vector<256x4xf32>
    tpu.vector_store %arg7[%c0_37, %c28], %28 {strides = array<i32>} : memref<256x37xf32, #tpu.memory_space<vmem>>, vector<256x4xf32>,
    %c2_38 = arith.constant 2 : index
    %c2_39 = arith.constant 2 : index
    %c0_40 = arith.constant 0 : index
    %30 = vector.load %arg5[%c2_38, %c2_39, %c0_40] : memref<18x18x4xf32, #tpu.memory_space<vmem>>, vector<16x16x4xf32>
    %31 = vector.shape_cast %30 : vector<16x16x4xf32> to vector<256x4xf32>
    %c0_41 = arith.constant 0 : index
    %c32 = arith.constant 32 : index
    %32 = vector.load %arg7[%c0_41, %c32] : memref<256x37xf32, #tpu.memory_space<vmem>>, vector<256x4xf32>
    tpu.vector_store %arg7[%c0_41, %c32], %31 {strides = array<i32>} : memref<256x37xf32, #tpu.memory_space<vmem>>, vector<256x4xf32>,
    %c0_42 = arith.constant 0 : index
    %c0_43 = arith.constant 0 : index
    %33 = vector.load %arg7[%c0_42, %c0_43] : memref<256x37xf32, #tpu.memory_space<vmem>>, vector<256x37xf32>
    %c0_44 = arith.constant 0 : index
    %c0_45 = arith.constant 0 : index
    %34 = vector.load %arg2[%c0_44, %c0_45] : memref<37x128xf32, #tpu.memory_space<vmem>>, vector<37x128xf32>
    %cst = arith.constant dense<0.000000e+00> : vector<256x128xf32>
    %35 = tpu.matmul %33, %34, %cst {dimension_numbers = #tpu.dot_dimension_numbers<[1], [0], [0], [1], [0, 0, 1, 1], [], []>} : vector<256x37xf32>, vector<37x128xf32>, vector<256x128xf32> -> vector<256x128xf32>
    %36 = vector.extract_strided_slice %35 {offsets = [0, 0], sizes = [256, 4], strides = [1, 1]} : vector<256x128xf32> to vector<256x4xf32>
    %37 = vector.shape_cast %36 : vector<256x4xf32> to vector<16x16x4xf32>
    %c1_46 = arith.constant 1 : index
    %c1_47 = arith.constant 1 : index
    %c0_48 = arith.constant 0 : index
    %38 = vector.load %arg6[%c1_46, %c1_47, %c0_48] : memref<18x18x4xf32, #tpu.memory_space<vmem>>, vector<16x16x4xf32>
    tpu.vector_store %arg6[%c1_46, %c1_47, %c0_48], %37 {strides = array<i32>} : memref<18x18x4xf32, #tpu.memory_space<vmem>>, vector<16x16x4xf32>,
    %c0_49 = arith.constant 0 : index
    %c0_50 = arith.constant 0 : index
    %c0_51 = arith.constant 0 : index
    %39 = vector.load %arg6[%c0_49, %c0_50, %c0_51] : memref<18x18x4xf32, #tpu.memory_space<vmem>>, vector<16x16x4xf32>
    %40 = vector.shape_cast %39 : vector<16x16x4xf32> to vector<256x4xf32>
    %c0_52 = arith.constant 0 : index
    %c0_53 = arith.constant 0 : index
    %41 = vector.load %arg8[%c0_52, %c0_53] : memref<256x41xf32, #tpu.memory_space<vmem>>, vector<256x4xf32>
    tpu.vector_store %arg8[%c0_52, %c0_53], %40 {strides = array<i32>} : memref<256x41xf32, #tpu.memory_space<vmem>>, vector<256x4xf32>,
    %c0_54 = arith.constant 0 : index
    %c1_55 = arith.constant 1 : index
    %c0_56 = arith.constant 0 : index
    %42 = vector.load %arg6[%c0_54, %c1_55, %c0_56] : memref<18x18x4xf32, #tpu.memory_space<vmem>>, vector<16x16x4xf32>
    %43 = vector.shape_cast %42 : vector<16x16x4xf32> to vector<256x4xf32>
    %c0_57 = arith.constant 0 : index
    %c4_58 = arith.constant 4 : index
    %44 = vector.load %arg8[%c0_57, %c4_58] : memref<256x41xf32, #tpu.memory_space<vmem>>, vector<256x4xf32>
    tpu.vector_store %arg8[%c0_57, %c4_58], %43 {strides = array<i32>} : memref<256x41xf32, #tpu.memory_space<vmem>>, vector<256x4xf32>,
    %c0_59 = arith.constant 0 : index
    %c2_60 = arith.constant 2 : index
    %c0_61 = arith.constant 0 : index
    %45 = vector.load %arg6[%c0_59, %c2_60, %c0_61] : memref<18x18x4xf32, #tpu.memory_space<vmem>>, vector<16x16x4xf32>
    %46 = vector.shape_cast %45 : vector<16x16x4xf32> to vector<256x4xf32>
    %c0_62 = arith.constant 0 : index
    %c8_63 = arith.constant 8 : index
    %47 = vector.load %arg8[%c0_62, %c8_63] : memref<256x41xf32, #tpu.memory_space<vmem>>, vector<256x4xf32>
    tpu.vector_store %arg8[%c0_62, %c8_63], %46 {strides = array<i32>} : memref<256x41xf32, #tpu.memory_space<vmem>>, vector<256x4xf32>,
    %c1_64 = arith.constant 1 : index
    %c0_65 = arith.constant 0 : index
    %c0_66 = arith.constant 0 : index
    %48 = vector.load %arg6[%c1_64, %c0_65, %c0_66] : memref<18x18x4xf32, #tpu.memory_space<vmem>>, vector<16x16x4xf32>
    %49 = vector.shape_cast %48 : vector<16x16x4xf32> to vector<256x4xf32>
    %c0_67 = arith.constant 0 : index
    %c12_68 = arith.constant 12 : index
    %50 = vector.load %arg8[%c0_67, %c12_68] : memref<256x41xf32, #tpu.memory_space<vmem>>, vector<256x4xf32>
    tpu.vector_store %arg8[%c0_67, %c12_68], %49 {strides = array<i32>} : memref<256x41xf32, #tpu.memory_space<vmem>>, vector<256x4xf32>,
    %c1_69 = arith.constant 1 : index
    %c1_70 = arith.constant 1 : index
    %c0_71 = arith.constant 0 : index
    %51 = vector.load %arg6[%c1_69, %c1_70, %c0_71] : memref<18x18x4xf32, #tpu.memory_space<vmem>>, vector<16x16x4xf32>
    %52 = vector.shape_cast %51 : vector<16x16x4xf32> to vector<256x4xf32>
    %c0_72 = arith.constant 0 : index
    %c16_73 = arith.constant 16 : index
    %53 = vector.load %arg8[%c0_72, %c16_73] : memref<256x41xf32, #tpu.memory_space<vmem>>, vector<256x4xf32>
    tpu.vector_store %arg8[%c0_72, %c16_73], %52 {strides = array<i32>} : memref<256x41xf32, #tpu.memory_space<vmem>>, vector<256x4xf32>,
    %c1_74 = arith.constant 1 : index
    %c2_75 = arith.constant 2 : index
    %c0_76 = arith.constant 0 : index
    %54 = vector.load %arg6[%c1_74, %c2_75, %c0_76] : memref<18x18x4xf32, #tpu.memory_space<vmem>>, vector<16x16x4xf32>
    %55 = vector.shape_cast %54 : vector<16x16x4xf32> to vector<256x4xf32>
    %c0_77 = arith.constant 0 : index
    %c20_78 = arith.constant 20 : index
    %56 = vector.load %arg8[%c0_77, %c20_78] : memref<256x41xf32, #tpu.memory_space<vmem>>, vector<256x4xf32>
    tpu.vector_store %arg8[%c0_77, %c20_78], %55 {strides = array<i32>} : memref<256x41xf32, #tpu.memory_space<vmem>>, vector<256x4xf32>,
    %c2_79 = arith.constant 2 : index
    %c0_80 = arith.constant 0 : index
    %c0_81 = arith.constant 0 : index
    %57 = vector.load %arg6[%c2_79, %c0_80, %c0_81] : memref<18x18x4xf32, #tpu.memory_space<vmem>>, vector<16x16x4xf32>
    %58 = vector.shape_cast %57 : vector<16x16x4xf32> to vector<256x4xf32>
    %c0_82 = arith.constant 0 : index
    %c24_83 = arith.constant 24 : index
    %59 = vector.load %arg8[%c0_82, %c24_83] : memref<256x41xf32, #tpu.memory_space<vmem>>, vector<256x4xf32>
    tpu.vector_store %arg8[%c0_82, %c24_83], %58 {strides = array<i32>} : memref<256x41xf32, #tpu.memory_space<vmem>>, vector<256x4xf32>,
    %c2_84 = arith.constant 2 : index
    %c1_85 = arith.constant 1 : index
    %c0_86 = arith.constant 0 : index
    %60 = vector.load %arg6[%c2_84, %c1_85, %c0_86] : memref<18x18x4xf32, #tpu.memory_space<vmem>>, vector<16x16x4xf32>
    %61 = vector.shape_cast %60 : vector<16x16x4xf32> to vector<256x4xf32>
    %c0_87 = arith.constant 0 : index
    %c28_88 = arith.constant 28 : index
    %62 = vector.load %arg8[%c0_87, %c28_88] : memref<256x41xf32, #tpu.memory_space<vmem>>, vector<256x4xf32>
    tpu.vector_store %arg8[%c0_87, %c28_88], %61 {strides = array<i32>} : memref<256x41xf32, #tpu.memory_space<vmem>>, vector<256x4xf32>,
    %c2_89 = arith.constant 2 : index
    %c2_90 = arith.constant 2 : index
    %c0_91 = arith.constant 0 : index
    %63 = vector.load %arg6[%c2_89, %c2_90, %c0_91] : memref<18x18x4xf32, #tpu.memory_space<vmem>>, vector<16x16x4xf32>
    %64 = vector.shape_cast %63 : vector<16x16x4xf32> to vector<256x4xf32>
    %c0_92 = arith.constant 0 : index
    %c32_93 = arith.constant 32 : index
    %65 = vector.load %arg8[%c0_92, %c32_93] : memref<256x41xf32, #tpu.memory_space<vmem>>, vector<256x4xf32>
    tpu.vector_store %arg8[%c0_92, %c32_93], %64 {strides = array<i32>} : memref<256x41xf32, #tpu.memory_space<vmem>>, vector<256x4xf32>,
    %66 = vector.shape_cast %4 : vector<16x16x4xf32> to vector<256x4xf32>
    %c0_94 = arith.constant 0 : index
    %c37 = arith.constant 37 : index
    %67 = vector.load %arg8[%c0_94, %c37] : memref<256x41xf32, #tpu.memory_space<vmem>>, vector<256x4xf32>
    tpu.vector_store %arg8[%c0_94, %c37], %66 {strides = array<i32>} : memref<256x41xf32, #tpu.memory_space<vmem>>, vector<256x4xf32>,
    %c0_95 = arith.constant 0 : index
    %c0_96 = arith.constant 0 : index
    %68 = vector.load %arg8[%c0_95, %c0_96] : memref<256x41xf32, #tpu.memory_space<vmem>>, vector<256x41xf32>
    %c0_97 = arith.constant 0 : index
    %c0_98 = arith.constant 0 : index
    %69 = vector.load %arg3[%c0_97, %c0_98] : memref<41x128xf32, #tpu.memory_space<vmem>>, vector<41x128xf32>
    %cst_99 = arith.constant dense<0.000000e+00> : vector<256x128xf32>
    %70 = tpu.matmul %68, %69, %cst_99 {dimension_numbers = #tpu.dot_dimension_numbers<[1], [0], [0], [1], [0, 0, 1, 1], [], []>} : vector<256x41xf32>, vector<41x128xf32>, vector<256x128xf32> -> vector<256x128xf32>
    %c0_100 = arith.constant 0 : index
    %c0_101 = arith.constant 0 : index
    %c0_102 = arith.constant 0 : index
    %71 = vector.load %arg4[%c0_100, %c0_101, %c0_102] : memref<1x256x128xf32, #tpu.memory_space<vmem>>, vector<1x256x128xf32>
    %72 = vector.shape_cast %71 : vector<1x256x128xf32> to vector<256x128xf32>
    %73 = vector.shape_cast %70 : vector<256x128xf32> to vector<1x256x128xf32>
    tpu.vector_store %arg4[%c0_100, %c0_101, %c0_102], %73 {strides = array<i32>} : memref<1x256x128xf32, #tpu.memory_space<vmem>>, vector<1x256x128xf32>,
    return
  }
  func.func @transform_0(%arg0: i32) -> (i32, i32, i32, i32) {
    %c0_i32 = arith.constant 0 : i32
    %c0_i32_0 = arith.constant 0 : i32
    %c0_i32_1 = arith.constant 0 : i32
    %c0_i32_2 = arith.constant 0 : i32
    return %arg0, %c0_i32, %c0_i32_0, %c0_i32_1 : i32, i32, i32, i32
  }
  func.func @transform_1(%arg0: i32) -> (i32, i32) {
    %c0_i32 = arith.constant 0 : i32
    %c0_i32_0 = arith.constant 0 : i32
    %c0_i32_1 = arith.constant 0 : i32
    return %c0_i32, %c0_i32_0 : i32, i32
  }
  func.func @transform_2(%arg0: i32) -> (i32, i32) {
    %c0_i32 = arith.constant 0 : i32
    %c0_i32_0 = arith.constant 0 : i32
    %c0_i32_1 = arith.constant 0 : i32
    return %c0_i32, %c0_i32_0 : i32, i32
  }
  func.func @transform_3(%arg0: i32) -> (i32, i32, i32) {
    %c0_i32 = arith.constant 0 : i32
    %c0_i32_0 = arith.constant 0 : i32
    %c0_i32_1 = arith.constant 0 : i32
    return %arg0, %c0_i32, %c0_i32_0 : i32, i32, i32
  }
}

</mosaic_0001>

<llo_original>
// kernel: my_resnet_pair.1
$region0: #{my_resnet_pair.1}
  #allocation0 [shape = 'u32[]', space=smem, size = 0x4, offset = 0x4, fixed_abs, tag = 'smem constant byte address 0x4 - core index']
  #allocation1 [shape = 'u32[144,128]{1,0:T(1,128)}', space=vmem, size = 0x12000, scoped, tag = 'internal scratch']
  #allocation2 [shape = 'f32[18,18,4]{2,1,0:T(8,128)}', space=vmem, size = 0x36000, scoped, tag = 'scratch operand']
  #allocation3 [shape = 'f32[18,18,4]{2,1,0:T(8,128)}', space=vmem, size = 0x36000, scoped, tag = 'scratch operand']
  #allocation4 [shape = 'f32[256,37]{1,0:T(8,128)}', space=vmem, size = 0x20000, scoped, tag = 'scratch operand']
  #allocation5 [shape = 'f32[256,41]{1,0:T(8,128)}', space=vmem, size = 0x20000, scoped, tag = 'scratch operand']
  %s0 = inlined_call_operand.vmem [shape: f32[2,16,16,4], index: 0, kind: input, shape index: {}]
  %s1 = inlined_call_operand.vmem [shape: f32[37,128], index: 1, kind: input, shape index: {}]
  %s2 = inlined_call_operand.vmem [shape: f32[41,128], index: 2, kind: input, shape index: {}]
  %s3 = inlined_call_operand.vmem [shape: f32[2,256,128], index: 3, kind: output, shape index: {}]
  %s4 = sld [smem:[#allocation0]]
  $region49: #{my_resnet_pair.1} parent=0
    _
  %s6 = ssub.s32 1, %s4
  %s7 = scalar_select 0, %s6, %s4
  loop: start=0, step=1, limit=4
  $region2: #{my_resnet_pair.1} parent=0 // loop_pre_header
    _
  $region3: #{my_resnet_pair.1} parent=0 // loop_header
    %s9 = sphi 0, %s13
    %p10 = scmp.ge.s32.totalorder %s9, 4
    %s19 = sphi 0, %s21
    %s22 = sphi 0, %s19
    %s23 = sphi 0, %s22
    %s39 = sphi 0, %s23
    %s43 = sphi 0, %s43
    %s45 = sphi 0, %s43
    %s46 = sphi 0, %s45
    %s60 = sphi 0, %s46
    %s64 = sphi 0, %s64
    %s66 = sphi 0, %s64
    %s67 = sphi 0, %s66
    %s81 = sphi 0, %s67
    %s87 = sphi 0, %s89
    %s90 = sphi 0, %s87
    %s91 = sphi 0, %s90
    %s107 = sphi 0, %s91
  $region4: #{my_resnet_pair.1} parent=0 // loop_header_branch
    %12 = sbr.rel (%p10) target = $region8
  $region5: #{my_resnet_pair.1} parent=0 // loop_body
    %s14 = ssub.s32 %s9, 1
    %s15 = ssub.s32 %s9, 2
    %s16 = sadd.s32 %s9, 1
    %s17 = ssub.s32 %s9, %s16
    %p18 = scmp.eq.s32.totalorder %s17, 0
    %s20 = sadd.s32 %s19, 1
    %s21 = scalar_select %p18, %s19, %s20
    %p24 = pneg %p18
    %p25 = scmp.eq.s32.totalorder %s9, 1
    %p26 = por %p24, %p25
    %p27 = scmp.ne.s32.totalorder %s19, %s22
    %p28 = scmp.eq.s32.totalorder %s9, 0
    %p29 = por %p27, %p28
    %p30 = scmp.ne.s32.totalorder %s19, %s22
    %p31 = scmp.eq.s32.totalorder %s14, 1
    %p32 = por %p30, %p31
    %p33 = scmp.ne.s32.totalorder %s22, %s23
    %p34 = scmp.eq.s32.totalorder %s14, 0
    %p35 = por %p33, %p34
    %p36 = scmp.ne.s32.totalorder %s22, %s23
    %p37 = scmp.eq.s32.totalorder %s15, 1
    %p38 = por %p36, %p37
    %p40 = scmp.ne.s32.totalorder %s23, %s39
    %p41 = scmp.eq.s32.totalorder %s15, 0
    %p42 = por %p40, %p41
    %s44 = sadd.s32 %s43, 1
    %p47 = scmp.eq.s32.totalorder %s9, 1
    %p48 = scmp.ne.s32.totalorder %s43, %s45
    %p49 = scmp.eq.s32.totalorder %s9, 0
    %p50 = por %p48, %p49
    %p51 = scmp.ne.s32.totalorder %s43, %s45
    %p52 = scmp.eq.s32.totalorder %s14, 1
    %p53 = por %p51, %p52
    %p54 = scmp.ne.s32.totalorder %s45, %s46
    %p55 = scmp.eq.s32.totalorder %s14, 0
    %p56 = por %p54, %p55
    %p57 = scmp.ne.s32.totalorder %s45, %s46
    %p58 = scmp.eq.s32.totalorder %s15, 1
    %p59 = por %p57, %p58
    %p61 = scmp.ne.s32.totalorder %s46, %s60
    %p62 = scmp.eq.s32.totalorder %s15, 0
    %p63 = por %p61, %p62
    %s65 = sadd.s32 %s64, 1
    %p68 = scmp.eq.s32.totalorder %s9, 1
    %p69 = scmp.ne.s32.totalorder %s64, %s66
    %p70 = scmp.eq.s32.totalorder %s9, 0
    %p71 = por %p69, %p70
    %p72 = scmp.ne.s32.totalorder %s64, %s66
    %p73 = scmp.eq.s32.totalorder %s14, 1
    %p74 = por %p72, %p73
    %p75 = scmp.ne.s32.totalorder %s66, %s67
    %p76 = scmp.eq.s32.totalorder %s14, 0
    %p77 = por %p75, %p76
    %p78 = scmp.ne.s32.totalorder %s66, %s67
    %p79 = scmp.eq.s32.totalorder %s15, 1
    %p80 = por %p78, %p79
    %p82 = scmp.ne.s32.totalorder %s67, %s81
    %p83 = scmp.eq.s32.totalorder %s15, 0
    %p84 = por %p82, %p83
    %s85 = ssub.s32 %s9, %s16
    %p86 = scmp.eq.s32.totalorder %s85, 0
    %s88 = sadd.s32 %s87, 1
    %s89 = scalar_select %p86, %s87, %s88
    %p92 = pneg %p86
    %p93 = scmp.eq.s32.totalorder %s9, 1
    %p94 = por %p92, %p93
    %p95 = scmp.ne.s32.totalorder %s87, %s90
    %p96 = scmp.eq.s32.totalorder %s9, 0
    %p97 = por %p95, %p96
    %p98 = scmp.ne.s32.totalorder %s87, %s90
    %p99 = scmp.eq.s32.totalorder %s14, 1
    %p100 = por %p98, %p99
    %p101 = scmp.ne.s32.totalorder %s90, %s91
    %p102 = scmp.eq.s32.totalorder %s14, 0
    %p103 = por %p101, %p102
    %p104 = scmp.ne.s32.totalorder %s90, %s91
    %p105 = scmp.eq.s32.totalorder %s15, 1
    %p106 = por %p104, %p105
    %p108 = scmp.ne.s32.totalorder %s91, %s107
    %p109 = scmp.eq.s32.totalorder %s15, 0
    %p110 = por %p108, %p109
    %p111 = scmp.le.s32.totalorder 1, %s9
    %p112 = scmp.lt.s32.totalorder %s9, 3
    %p113 = pnand %p111, %p112
    %p114 = pneg %p113
    // Predicated region
    $region9: #{my_resnet_pair.1} parent=5 // pred_check
      _
    $region10: #{my_resnet_pair.1} parent=5 // pred_check_branch
      %116 = sbr.rel (%p113) target = $region12
    $region11: #{my_resnet_pair.1} parent=5 // pred_region
      %s117 = ssub.s32 %s9, 1
      // Predicated region
      $region13: #{my_resnet_pair.1} parent=11 // pred_check
        %p118 = pneg %p56
      $region14: #{my_resnet_pair.1} parent=11 // pred_check_branch
        %120 = sbr.rel (%p118) target = $region16
      $region15: #{my_resnet_pair.1} parent=11 // pred_region
        _
      $region16: #{my_resnet_pair.1} parent=11 // pred_fallthru
        _
      // Predicated region
      $region17: #{my_resnet_pair.1} parent=11 // pred_check
        %p121 = pneg %p77
      $region18: #{my_resnet_pair.1} parent=11 // pred_check_branch
        %123 = sbr.rel (%p121) target = $region20
      $region19: #{my_resnet_pair.1} parent=11 // pred_region
        _
      $region20: #{my_resnet_pair.1} parent=11 // pred_fallthru
        _
    $region12: #{my_resnet_pair.1} parent=5 // pred_fallthru
      _
    %p124 = scmp.lt.s32.totalorder %s9, 2
    // Predicated region
    $region21: #{my_resnet_pair.1} parent=5 // pred_check
      %p125 = pneg %p124
    $region22: #{my_resnet_pair.1} parent=5 // pred_check_branch
      %127 = sbr.rel (%p125) target = $region24
    $region23: #{my_resnet_pair.1} parent=5 // pred_region
      // Predicated region
      $region25: #{my_resnet_pair.1} parent=23 // pred_check
        %p128 = pneg %p29
      $region26: #{my_resnet_pair.1} parent=23 // pred_check_branch
        %130 = sbr.rel (%p128) target = $region28
      $region27: #{my_resnet_pair.1} parent=23 // pred_region
        %p131 = scmp.lt.s32.totalorder %s9, 1
        %s132 = scalar_select %p131, %s9, 1
        %s133 = smul.addr %s132, 32
        %s134 = smul.addr %s133, 8
        %s135 = scalar_lea.vmem %s0, %s134
      $region28: #{my_resnet_pair.1} parent=23 // pred_fallthru
        _
    $region24: #{my_resnet_pair.1} parent=5 // pred_fallthru
      _
    %p136 = scmp.le.s32.totalorder 1, %s9
    %p137 = scmp.lt.s32.totalorder %s9, 3
    %p138 = pnand %p136, %p137
    %p139 = pneg %p138
    // Predicated region
    $region29: #{my_resnet_pair.1} parent=5 // pred_check
      _
    $region30: #{my_resnet_pair.1} parent=5 // pred_check_branch
      %141 = sbr.rel (%p138) target = $region32
    $region31: #{my_resnet_pair.1} parent=5 // pred_region
      %s142 = ssub.s32 %s9, 1
      %p143 = scmp.lt.s32.totalorder %s14, 1
      %s144 = scalar_select %p143, %s14, 1
      %s145 = smul.addr %s144, 32
      %s146 = smul.addr %s145, 8
      %s147 = scalar_lea.vmem %s0, %s146
      %p148 = pneg %p35
      %p149 = pneg %p32
      %p150 = pneg %p56
      %p151 = pneg %p53
      %p152 = pneg %p77
      %p153 = pneg %p74
      %p154 = pneg %p103
      %p155 = pneg %p100
      %p156 = scmp.lt.s32.totalorder %s14, 1
      %s157 = scalar_select %p156, %s14, 1
      %s158 = smul.addr %s157, 32
      %s159 = smul.addr %s158, 8
      %s160 = scalar_lea.vmem %s3, %s159
      %p161 = scmp.lt.s32.totalorder %s14, 1
      %s162 = scalar_select %p161, %s14, 1
      %s163 = smul.addr %s162, 32
      %s164 = smul.addr %s163, 8
      %s165 = scalar_lea.vmem %s0, %s164
      %p166 = scmp.lt.s32.totalorder %s14, 1
      %s167 = scalar_select %p166, %s14, 1
      %s168 = smul.addr %s167, 32
      %s169 = smul.addr %s168, 8
      %s170 = scalar_lea.vmem %s3, %s169
      %p171 = scmp.eq.s32.totalorder %s14, 0
      // Predicated region
      $region33: #{my_resnet_pair.1} parent=31 // pred_check
        %p172 = pneg %p171
      $region34: #{my_resnet_pair.1} parent=31 // pred_check_branch
        %174 = sbr.rel (%p172) target = $region36
      $region35: #{my_resnet_pair.1} parent=31 // pred_region
        %vm175 = vcmask 31744
        %176 = vst.msk [vmem:[#allocation2] sm:$0xff] %vm175, 0.0
        %177 = vst.msk [vmem:[#allocation2 + $0x8] sm:$0xff] %vm175, 0.0
        %vm178 = vcmask 25600
        %179 = vst.msk [vmem:[#allocation2 + $0x10] sm:$0x3] %vm178, 0.0
        %180 = vst.msk [vmem:[#allocation2 + $0x18] sm:$0xff] %vm175, 0.0
        %181 = vst.msk [vmem:[#allocation2 + $0x20] sm:$0xff] %vm175, 0.0
        %182 = vst.msk [vmem:[#allocation2 + $0x28] sm:$0x3] %vm178, 0.0
        %183 = vst.msk [vmem:[#allocation2 + $0x30] sm:$0xff] %vm175, 0.0
        %184 = vst.msk [vmem:[#allocation2 + $0x38] sm:$0xff] %vm175, 0.0
        %185 = vst.msk [vmem:[#allocation2 + $0x40] sm:$0x3] %vm178, 0.0
        %186 = vst.msk [vmem:[#allocation2 + $0x48] sm:$0xff] %vm175, 0.0
        %187 = vst.msk [vmem:[#allocation2 + $0x50] sm:$0xff] %vm175, 0.0
        %188 = vst.msk [vmem:[#allocation2 + $0x58] sm:$0x3] %vm178, 0.0
        %189 = vst.msk [vmem:[#allocation2 + $0x60] sm:$0xff] %vm175, 0.0
        %190 = vst.msk [vmem:[#allocation2 + $0x68] sm:$0xff] %vm175, 0.0
        %191 = vst.msk [vmem:[#allocation2 + $0x70] sm:$0x3] %vm178, 0.0
        %192 = vst.msk [vmem:[#allocation2 + $0x78] sm:$0xff] %vm175, 0.0
        %193 = vst.msk [vmem:[#allocation2 + $0x80] sm:$0xff] %vm175, 0.0
        %194 = vst.msk [vmem:[#allocation2 + $0x88] sm:$0x3] %vm178, 0.0
        %195 = vst.msk [vmem:[#allocation2 + $0x90] sm:$0xff] %vm175, 0.0
        %196 = vst.msk [vmem:[#allocation2 + $0x98] sm:$0xff] %vm175, 0.0
        %197 = vst.msk [vmem:[#allocation2 + $0xa0] sm:$0x3] %vm178, 0.0
        %198 = vst.msk [vmem:[#allocation2 + $0xa8] sm:$0xff] %vm175, 0.0
        %199 = vst.msk [vmem:[#allocation2 + $0xb0] sm:$0xff] %vm175, 0.0
        %200 = vst.msk [vmem:[#allocation2 + $0xb8] sm:$0x3] %vm178, 0.0
        %201 = vst.msk [vmem:[#allocation2 + $0xc0] sm:$0xff] %vm175, 0.0
        %202 = vst.msk [vmem:[#allocation2 + $0xc8] sm:$0xff] %vm175, 0.0
        %203 = vst.msk [vmem:[#allocation2 + $0xd0] sm:$0x3] %vm178, 0.0
        %204 = vst.msk [vmem:[#allocation2 + $0xd8] sm:$0xff] %vm175, 0.0
        %205 = vst.msk [vmem:[#allocation2 + $0xe0] sm:$0xff] %vm175, 0.0
        %206 = vst.msk [vmem:[#allocation2 + $0xe8] sm:$0x3] %vm178, 0.0
        %207 = vst.msk [vmem:[#allocation2 + $0xf0] sm:$0xff] %vm175, 0.0
        %208 = vst.msk [vmem:[#allocation2 + $0xf8] sm:$0xff] %vm175, 0.0
        %209 = vst.msk [vmem:[#allocation2 + $0x100] sm:$0x3] %vm178, 0.0
        %210 = vst.msk [vmem:[#allocation2 + $0x108] sm:$0xff] %vm175, 0.0
        %211 = vst.msk [vmem:[#allocation2 + $0x110] sm:$0xff] %vm175, 0.0
        %212 = vst.msk [vmem:[#allocation2 + $0x118] sm:$0x3] %vm178, 0.0
        %213 = vst.msk [vmem:[#allocation2 + $0x120] sm:$0xff] %vm175, 0.0
        %214 = vst.msk [vmem:[#allocation2 + $0x128] sm:$0xff] %vm175, 0.0
        %215 = vst.msk [vmem:[#allocation2 + $0x130] sm:$0x3] %vm178, 0.0
        %216 = vst.msk [vmem:[#allocation2 + $0x138] sm:$0xff] %vm175, 0.0
        %217 = vst.msk [vmem:[#allocation2 + $0x140] sm:$0xff] %vm175, 0.0
        %218 = vst.msk [vmem:[#allocation2 + $0x148] sm:$0x3] %vm178, 0.0
        %219 = vst.msk [vmem:[#allocation2 + $0x150] sm:$0xff] %vm175, 0.0
        %220 = vst.msk [vmem:[#allocation2 + $0x158] sm:$0xff] %vm175, 0.0
        %221 = vst.msk [vmem:[#allocation2 + $0x160] sm:$0x3] %vm178, 0.0
        %222 = vst.msk [vmem:[#allocation2 + $0x168] sm:$0xff] %vm175, 0.0
        %223 = vst.msk [vmem:[#allocation2 + $0x170] sm:$0xff] %vm175, 0.0
        %224 = vst.msk [vmem:[#allocation2 + $0x178] sm:$0x3] %vm178, 0.0
        %225 = vst.msk [vmem:[#allocation2 + $0x180] sm:$0xff] %vm175, 0.0
        %226 = vst.msk [vmem:[#allocation2 + $0x188] sm:$0xff] %vm175, 0.0
        %227 = vst.msk [vmem:[#allocation2 + $0x190] sm:$0x3] %vm178, 0.0
        %228 = vst.msk [vmem:[#allocation2 + $0x198] sm:$0xff] %vm175, 0.0
        %229 = vst.msk [vmem:[#allocation2 + $0x1a0] sm:$0xff] %vm175, 0.0
        %230 = vst.msk [vmem:[#allocation2 + $0x1a8] sm:$0x3] %vm178, 0.0
        %231 = vst.msk [vmem:[#allocation3] sm:$0xff] %vm175, 0.0
        %232 = vst.msk [vmem:[#allocation3 + $0x8] sm:$0xff] %vm175, 0.0
        %233 = vst.msk [vmem:[#allocation3 + $0x10] sm:$0x3] %vm178, 0.0
        %234 = vst.msk [vmem:[#allocation3 + $0x18] sm:$0xff] %vm175, 0.0
        %235 = vst.msk [vmem:[#allocation3 + $0x20] sm:$0xff] %vm175, 0.0
        %236 = vst.msk [vmem:[#allocation3 + $0x28] sm:$0x3] %vm178, 0.0
        %237 = vst.msk [vmem:[#allocation3 + $0x30] sm:$0xff] %vm175, 0.0
        %238 = vst.msk [vmem:[#allocation3 + $0x38] sm:$0xff] %vm175, 0.0
        %239 = vst.msk [vmem:[#allocation3 + $0x40] sm:$0x3] %vm178, 0.0
        %240 = vst.msk [vmem:[#allocation3 + $0x48] sm:$0xff] %vm175, 0.0
        %241 = vst.msk [vmem:[#allocation3 + $0x50] sm:$0xff] %vm175, 0.0
        %242 = vst.msk [vmem:[#allocation3 + $0x58] sm:$0x3] %vm178, 0.0
        %243 = vst.msk [vmem:[#allocation3 + $0x60] sm:$0xff] %vm175, 0.0
        %244 = vst.msk [vmem:[#allocation3 + $0x68] sm:$0xff] %vm175, 0.0
        %245 = vst.msk [vmem:[#allocation3 + $0x70] sm:$0x3] %vm178, 0.0
        %246 = vst.msk [vmem:[#allocation3 + $0x78] sm:$0xff] %vm175, 0.0
        %247 = vst.msk [vmem:[#allocation3 + $0x80] sm:$0xff] %vm175, 0.0
        %248 = vst.msk [vmem:[#allocation3 + $0x88] sm:$0x3] %vm178, 0.0
        %249 = vst.msk [vmem:[#allocation3 + $0x90] sm:$0xff] %vm175, 0.0
        %250 = vst.msk [vmem:[#allocation3 + $0x98] sm:$0xff] %vm175, 0.0
        %251 = vst.msk [vmem:[#allocation3 + $0xa0] sm:$0x3] %vm178, 0.0
        %252 = vst.msk [vmem:[#allocation3 + $0xa8] sm:$0xff] %vm175, 0.0
        %253 = vst.msk [vmem:[#allocation3 + $0xb0] sm:$0xff] %vm175, 0.0
        %254 = vst.msk [vmem:[#allocation3 + $0xb8] sm:$0x3] %vm178, 0.0
        %255 = vst.msk [vmem:[#allocation3 + $0xc0] sm:$0xff] %vm175, 0.0
        %256 = vst.msk [vmem:[#allocation3 + $0xc8] sm:$0xff] %vm175, 0.0
        %257 = vst.msk [vmem:[#allocation3 + $0xd0] sm:$0x3] %vm178, 0.0
        %258 = vst.msk [vmem:[#allocation3 + $0xd8] sm:$0xff] %vm175, 0.0
        %259 = vst.msk [vmem:[#allocation3 + $0xe0] sm:$0xff] %vm175, 0.0
        %260 = vst.msk [vmem:[#allocation3 + $0xe8] sm:$0x3] %vm178, 0.0
        %261 = vst.msk [vmem:[#allocation3 + $0xf0] sm:$0xff] %vm175, 0.0
        %262 = vst.msk [vmem:[#allocation3 + $0xf8] sm:$0xff] %vm175, 0.0
        %263 = vst.msk [vmem:[#allocation3 + $0x100] sm:$0x3] %vm178, 0.0
        %264 = vst.msk [vmem:[#allocation3 + $0x108] sm:$0xff] %vm175, 0.0
        %265 = vst.msk [vmem:[#allocation3 + $0x110] sm:$0xff] %vm175, 0.0
        %266 = vst.msk [vmem:[#allocation3 + $0x118] sm:$0x3] %vm178, 0.0
        %267 = vst.msk [vmem:[#allocation3 + $0x120] sm:$0xff] %vm175, 0.0
        %268 = vst.msk [vmem:[#allocation3 + $0x128] sm:$0xff] %vm175, 0.0
        %269 = vst.msk [vmem:[#allocation3 + $0x130] sm:$0x3] %vm178, 0.0
        %270 = vst.msk [vmem:[#allocation3 + $0x138] sm:$0xff] %vm175, 0.0
        %271 = vst.msk [vmem:[#allocation3 + $0x140] sm:$0xff] %vm175, 0.0
        %272 = vst.msk [vmem:[#allocation3 + $0x148] sm:$0x3] %vm178, 0.0
        %273 = vst.msk [vmem:[#allocation3 + $0x150] sm:$0xff] %vm175, 0.0
        %274 = vst.msk [vmem:[#allocation3 + $0x158] sm:$0xff] %vm175, 0.0
        %275 = vst.msk [vmem:[#allocation3 + $0x160] sm:$0x3] %vm178, 0.0
        %276 = vst.msk [vmem:[#allocation3 + $0x168] sm:$0xff] %vm175, 0.0
        %277 = vst.msk [vmem:[#allocation3 + $0x170] sm:$0xff] %vm175, 0.0
        %278 = vst.msk [vmem:[#allocation3 + $0x178] sm:$0x3] %vm178, 0.0
        %279 = vst.msk [vmem:[#allocation3 + $0x180] sm:$0xff] %vm175, 0.0
        %280 = vst.msk [vmem:[#allocation3 + $0x188] sm:$0xff] %vm175, 0.0
        %281 = vst.msk [vmem:[#allocation3 + $0x190] sm:$0x3] %vm178, 0.0
        %282 = vst.msk [vmem:[#allocation3 + $0x198] sm:$0xff] %vm175, 0.0
        %283 = vst.msk [vmem:[#allocation3 + $0x1a0] sm:$0xff] %vm175, 0.0
        %284 = vst.msk [vmem:[#allocation3 + $0x1a8] sm:$0x3] %vm178, 0.0
        %vm285 = vcmask 302368
        %286 = vst.msk [vmem:[#allocation4] sm:$0xff] %vm285, 1.0
        %287 = vst.msk [vmem:[#allocation4 + $0x8] sm:$0xff] %vm285, 1.0
        %288 = vst.msk [vmem:[#allocation4 + $0x10] sm:$0xff] %vm285, 1.0
        %289 = vst.msk [vmem:[#allocation4 + $0x18] sm:$0xff] %vm285, 1.0
        %290 = vst.msk [vmem:[#allocation4 + $0x20] sm:$0xff] %vm285, 1.0
        %291 = vst.msk [vmem:[#allocation4 + $0x28] sm:$0xff] %vm285, 1.0
        %292 = vst.msk [vmem:[#allocation4 + $0x30] sm:$0xff] %vm285, 1.0
        %293 = vst.msk [vmem:[#allocation4 + $0x38] sm:$0xff] %vm285, 1.0
        %294 = vst.msk [vmem:[#allocation4 + $0x40] sm:$0xff] %vm285, 1.0
        %295 = vst.msk [vmem:[#allocation4 + $0x48] sm:$0xff] %vm285, 1.0
        %296 = vst.msk [vmem:[#allocation4 + $0x50] sm:$0xff] %vm285, 1.0
        %297 = vst.msk [vmem:[#allocation4 + $0x58] sm:$0xff] %vm285, 1.0
        %298 = vst.msk [vmem:[#allocation4 + $0x60] sm:$0xff] %vm285, 1.0
        %299 = vst.msk [vmem:[#allocation4 + $0x68] sm:$0xff] %vm285, 1.0
        %300 = vst.msk [vmem:[#allocation4 + $0x70] sm:$0xff] %vm285, 1.0
        %301 = vst.msk [vmem:[#allocation4 + $0x78] sm:$0xff] %vm285, 1.0
        %302 = vst.msk [vmem:[#allocation4 + $0x80] sm:$0xff] %vm285, 1.0
        %303 = vst.msk [vmem:[#allocation4 + $0x88] sm:$0xff] %vm285, 1.0
        %304 = vst.msk [vmem:[#allocation4 + $0x90] sm:$0xff] %vm285, 1.0
        %305 = vst.msk [vmem:[#allocation4 + $0x98] sm:$0xff] %vm285, 1.0
        %306 = vst.msk [vmem:[#allocation4 + $0xa0] sm:$0xff] %vm285, 1.0
        %307 = vst.msk [vmem:[#allocation4 + $0xa8] sm:$0xff] %vm285, 1.0
        %308 = vst.msk [vmem:[#allocation4 + $0xb0] sm:$0xff] %vm285, 1.0
        %309 = vst.msk [vmem:[#allocation4 + $0xb8] sm:$0xff] %vm285, 1.0
        %310 = vst.msk [vmem:[#allocation4 + $0xc0] sm:$0xff] %vm285, 1.0
        %311 = vst.msk [vmem:[#allocation4 + $0xc8] sm:$0xff] %vm285, 1.0
        %312 = vst.msk [vmem:[#allocation4 + $0xd0] sm:$0xff] %vm285, 1.0
        %313 = vst.msk [vmem:[#allocation4 + $0xd8] sm:$0xff] %vm285, 1.0
        %314 = vst.msk [vmem:[#allocation4 + $0xe0] sm:$0xff] %vm285, 1.0
        %315 = vst.msk [vmem:[#allocation4 + $0xe8] sm:$0xff] %vm285, 1.0
        %316 = vst.msk [vmem:[#allocation4 + $0xf0] sm:$0xff] %vm285, 1.0
        %317 = vst.msk [vmem:[#allocation4 + $0xf8] sm:$0xff] %vm285, 1.0
        %318 = vst.msk [vmem:[#allocation5] sm:$0xff] %vm285, 1.0
        %319 = vst.msk [vmem:[#allocation5 + $0x8] sm:$0xff] %vm285, 1.0
        %320 = vst.msk [vmem:[#allocation5 + $0x10] sm:$0xff] %vm285, 1.0
        %321 = vst.msk [vmem:[#allocation5 + $0x18] sm:$0xff] %vm285, 1.0
        %322 = vst.msk [vmem:[#allocation5 + $0x20] sm:$0xff] %vm285, 1.0
        %323 = vst.msk [vmem:[#allocation5 + $0x28] sm:$0xff] %vm285, 1.0
        %324 = vst.msk [vmem:[#allocation5 + $0x30] sm:$0xff] %vm285, 1.0
        %325 = vst.msk [vmem:[#allocation5 + $0x38] sm:$0xff] %vm285, 1.0
        %326 = vst.msk [vmem:[#allocation5 + $0x40] sm:$0xff] %vm285, 1.0
        %327 = vst.msk [vmem:[#allocation5 + $0x48] sm:$0xff] %vm285, 1.0
        %328 = vst.msk [vmem:[#allocation5 + $0x50] sm:$0xff] %vm285, 1.0
        %329 = vst.msk [vmem:[#allocation5 + $0x58] sm:$0xff] %vm285, 1.0
        %330 = vst.msk [vmem:[#allocation5 + $0x60] sm:$0xff] %vm285, 1.0
        %331 = vst.msk [vmem:[#allocation5 + $0x68] sm:$0xff] %vm285, 1.0
        %332 = vst.msk [vmem:[#allocation5 + $0x70] sm:$0xff] %vm285, 1.0
        %333 = vst.msk [vmem:[#allocation5 + $0x78] sm:$0xff] %vm285, 1.0
        %334 = vst.msk [vmem:[#allocation5 + $0x80] sm:$0xff] %vm285, 1.0
        %335 = vst.msk [vmem:[#allocation5 + $0x88] sm:$0xff] %vm285, 1.0
        %336 = vst.msk [vmem:[#allocation5 + $0x90] sm:$0xff] %vm285, 1.0
        %337 = vst.msk [vmem:[#allocation5 + $0x98] sm:$0xff] %vm285, 1.0
        %338 = vst.msk [vmem:[#allocation5 + $0xa0] sm:$0xff] %vm285, 1.0
        %339 = vst.msk [vmem:[#allocation5 + $0xa8] sm:$0xff] %vm285, 1.0
        %340 = vst.msk [vmem:[#allocation5 + $0xb0] sm:$0xff] %vm285, 1.0
        %341 = vst.msk [vmem:[#allocation5 + $0xb8] sm:$0xff] %vm285, 1.0
        %342 = vst.msk [vmem:[#allocation5 + $0xc0] sm:$0xff] %vm285, 1.0
        %343 = vst.msk [vmem:[#allocation5 + $0xc8] sm:$0xff] %vm285, 1.0
        %344 = vst.msk [vmem:[#allocation5 + $0xd0] sm:$0xff] %vm285, 1.0
        %345 = vst.msk [vmem:[#allocation5 + $0xd8] sm:$0xff] %vm285, 1.0
        %346 = vst.msk [vmem:[#allocation5 + $0xe0] sm:$0xff] %vm285, 1.0
        %347 = vst.msk [vmem:[#allocation5 + $0xe8] sm:$0xff] %vm285, 1.0
        %348 = vst.msk [vmem:[#allocation5 + $0xf0] sm:$0xff] %vm285, 1.0
        %349 = vst.msk [vmem:[#allocation5 + $0xf8] sm:$0xff] %vm285, 1.0
      $region36: #{my_resnet_pair.1} parent=31 // pred_fallthru
        _
      %v350 = vld [vmem:[%s165] sm:$0xff]
      %v351 = vld [vmem:[%s165 + $0x8] sm:$0xff]
      %v352 = vld [vmem:[%s165 + $0x10] sm:$0xff]
      %v353 = vld [vmem:[%s165 + $0x18] sm:$0xff]
      %v354 = vld [vmem:[%s165 + $0x20] sm:$0xff]
      %v355 = vld [vmem:[%s165 + $0x28] sm:$0xff]
      %v356 = vld [vmem:[%s165 + $0x30] sm:$0xff]
      %v357 = vld [vmem:[%s165 + $0x38] sm:$0xff]
      %v358 = vld [vmem:[%s165 + $0x40] sm:$0xff]
      %v359 = vld [vmem:[%s165 + $0x48] sm:$0xff]
      %v360 = vld [vmem:[%s165 + $0x50] sm:$0xff]
      %v361 = vld [vmem:[%s165 + $0x58] sm:$0xff]
      %v362 = vld [vmem:[%s165 + $0x60] sm:$0xff]
      %v363 = vld [vmem:[%s165 + $0x68] sm:$0xff]
      %v364 = vld [vmem:[%s165 + $0x70] sm:$0xff]
      %v365 = vld [vmem:[%s165 + $0x78] sm:$0xff]
      %v366 = vld [vmem:[%s165 + $0x80] sm:$0xff]
      %v367 = vld [vmem:[%s165 + $0x88] sm:$0xff]
      %v368 = vld [vmem:[%s165 + $0x90] sm:$0xff]
      %v369 = vld [vmem:[%s165 + $0x98] sm:$0xff]
      %v370 = vld [vmem:[%s165 + $0xa0] sm:$0xff]
      %v371 = vld [vmem:[%s165 + $0xa8] sm:$0xff]
      %v372 = vld [vmem:[%s165 + $0xb0] sm:$0xff]
      %v373 = vld [vmem:[%s165 + $0xb8] sm:$0xff]
      %v374 = vld [vmem:[%s165 + $0xc0] sm:$0xff]
      %v375 = vld [vmem:[%s165 + $0xc8] sm:$0xff]
      %v376 = vld [vmem:[%s165 + $0xd0] sm:$0xff]
      %v377 = vld [vmem:[%s165 + $0xd8] sm:$0xff]
      %v378 = vld [vmem:[%s165 + $0xe0] sm:$0xff]
      %v379 = vld [vmem:[%s165 + $0xe8] sm:$0xff]
      %v380 = vld [vmem:[%s165 + $0xf0] sm:$0xff]
      %v381 = vld [vmem:[%s165 + $0xf8] sm:$0xff]
      %s382 = scalar_lea.vmem [#allocation2], 24
      %vm383 = vcmask 31744
      %384 = vst.msk [vmem:[%s382 + $0x1] sm:$0xff] %vm383, %v350
      %385 = vst.msk [vmem:[%s382 + $0x9] sm:$0xff] %vm383, %v351
      %386 = vst.msk [vmem:[%s382 + $0x19] sm:$0xff] %vm383, %v352
      %387 = vst.msk [vmem:[%s382 + $0x21] sm:$0xff] %vm383, %v353
      %388 = vst.msk [vmem:[%s382 + $0x31] sm:$0xff] %vm383, %v354
      %389 = vst.msk [vmem:[%s382 + $0x39] sm:$0xff] %vm383, %v355
      %390 = vst.msk [vmem:[%s382 + $0x49] sm:$0xff] %vm383, %v356
      %391 = vst.msk [vmem:[%s382 + $0x51] sm:$0xff] %vm383, %v357
      %392 = vst.msk [vmem:[%s382 + $0x61] sm:$0xff] %vm383, %v358
      %393 = vst.msk [vmem:[%s382 + $0x69] sm:$0xff] %vm383, %v359
      %394 = vst.msk [vmem:[%s382 + $0x79] sm:$0xff] %vm383, %v360
      %395 = vst.msk [vmem:[%s382 + $0x81] sm:$0xff] %vm383, %v361
      %396 = vst.msk [vmem:[%s382 + $0x91] sm:$0xff] %vm383, %v362
      %397 = vst.msk [vmem:[%s382 + $0x99] sm:$0xff] %vm383, %v363
      %398 = vst.msk [vmem:[%s382 + $0xa9] sm:$0xff] %vm383, %v364
      %399 = vst.msk [vmem:[%s382 + $0xb1] sm:$0xff] %vm383, %v365
      %400 = vst.msk [vmem:[%s382 + $0xc1] sm:$0xff] %vm383, %v366
      %401 = vst.msk [vmem:[%s382 + $0xc9] sm:$0xff] %vm383, %v367
      %402 = vst.msk [vmem:[%s382 + $0xd9] sm:$0xff] %vm383, %v368
      %403 = vst.msk [vmem:[%s382 + $0xe1] sm:$0xff] %vm383, %v369
      %404 = vst.msk [vmem:[%s382 + $0xf1] sm:$0xff] %vm383, %v370
      %405 = vst.msk [vmem:[%s382 + $0xf9] sm:$0xff] %vm383, %v371
      %406 = vst.msk [vmem:[%s382 + $0x109] sm:$0xff] %vm383, %v372
      %407 = vst.msk [vmem:[%s382 + $0x111] sm:$0xff] %vm383, %v373
      %408 = vst.msk [vmem:[%s382 + $0x121] sm:$0xff] %vm383, %v374
      %409 = vst.msk [vmem:[%s382 + $0x129] sm:$0xff] %vm383, %v375
      %410 = vst.msk [vmem:[%s382 + $0x139] sm:$0xff] %vm383, %v376
      %411 = vst.msk [vmem:[%s382 + $0x141] sm:$0xff] %vm383, %v377
      %412 = vst.msk [vmem:[%s382 + $0x151] sm:$0xff] %vm383, %v378
      %413 = vst.msk [vmem:[%s382 + $0x159] sm:$0xff] %vm383, %v379
      %414 = vst.msk [vmem:[%s382 + $0x169] sm:$0xff] %vm383, %v380
      %415 = vst.msk [vmem:[%s382 + $0x171] sm:$0xff] %vm383, %v381
      %v416 = vld [vmem:[#allocation2] sm:$0xff]
      %v417 = vld [vmem:[#allocation2 + $0x8] sm:$0xff]
      %v418 = vld [vmem:[#allocation2 + $0x18] sm:$0xff]
      %v419 = vld [vmem:[#allocation2 + $0x20] sm:$0xff]
      %v420 = vld [vmem:[#allocation2 + $0x30] sm:$0xff]
      %v421 = vld [vmem:[#allocation2 + $0x38] sm:$0xff]
      %v422 = vld [vmem:[#allocation2 + $0x48] sm:$0xff]
      %v423 = vld [vmem:[#allocation2 + $0x50] sm:$0xff]
      %v424 = vld [vmem:[#allocation2 + $0x60] sm:$0xff]
      %v425 = vld [vmem:[#allocation2 + $0x68] sm:$0xff]
      %v426 = vld [vmem:[#allocation2 + $0x78] sm:$0xff]
      %v427 = vld [vmem:[#allocation2 + $0x80] sm:$0xff]
      %v428 = vld [vmem:[#allocation2 + $0x90] sm:$0xff]
      %v429 = vld [vmem:[#allocation2 + $0x98] sm:$0xff]
      %v430 = vld [vmem:[#allocation2 + $0xa8] sm:$0xff]
      %v431 = vld [vmem:[#allocation2 + $0xb0] sm:$0xff]
      %v432 = vld [vmem:[#allocation2 + $0xc0] sm:$0xff]
      %v433 = vld [vmem:[#allocation2 + $0xc8] sm:$0xff]
      %v434 = vld [vmem:[#allocation2 + $0xd8] sm:$0xff]
      %v435 = vld [vmem:[#allocation2 + $0xe0] sm:$0xff]
      %v436 = vld [vmem:[#allocation2 + $0xf0] sm:$0xff]
      %v437 = vld [vmem:[#allocation2 + $0xf8] sm:$0xff]
      %v438 = vld [vmem:[#allocation2 + $0x108] sm:$0xff]
      %v439 = vld [vmem:[#allocation2 + $0x110] sm:$0xff]
      %v440 = vld [vmem:[#allocation2 + $0x120] sm:$0xff]
      %v441 = vld [vmem:[#allocation2 + $0x128] sm:$0xff]
      %v442 = vld [vmem:[#allocation2 + $0x138] sm:$0xff]
      %v443 = vld [vmem:[#allocation2 + $0x140] sm:$0xff]
      %v444 = vld [vmem:[#allocation2 + $0x150] sm:$0xff]
      %v445 = vld [vmem:[#allocation2 + $0x158] sm:$0xff]
      %v446 = vld [vmem:[#allocation2 + $0x168] sm:$0xff]
      %v447 = vld [vmem:[#allocation2 + $0x170] sm:$0xff]
      %448 = vst.msk [vmem:[#allocation4] sm:$0xff] %vm383, %v416
      %449 = vst.msk [vmem:[#allocation4 + $0x8] sm:$0xff] %vm383, %v417
      %450 = vst.msk [vmem:[#allocation4 + $0x10] sm:$0xff] %vm383, %v418
      %451 = vst.msk [vmem:[#allocation4 + $0x18] sm:$0xff] %vm383, %v419
      %452 = vst.msk [vmem:[#allocation4 + $0x20] sm:$0xff] %vm383, %v420
      %453 = vst.msk [vmem:[#allocation4 + $0x28] sm:$0xff] %vm383, %v421
      %454 = vst.msk [vmem:[#allocation4 + $0x30] sm:$0xff] %vm383, %v422
      %455 = vst.msk [vmem:[#allocation4 + $0x38] sm:$0xff] %vm383, %v423
      %456 = vst.msk [vmem:[#allocation4 + $0x40] sm:$0xff] %vm383, %v424
      %457 = vst.msk [vmem:[#allocation4 + $0x48] sm:$0xff] %vm383, %v425
      %458 = vst.msk [vmem:[#allocation4 + $0x50] sm:$0xff] %vm383, %v426
      %459 = vst.msk [vmem:[#allocation4 + $0x58] sm:$0xff] %vm383, %v427
      %460 = vst.msk [vmem:[#allocation4 + $0x60] sm:$0xff] %vm383, %v428
      %461 = vst.msk [vmem:[#allocation4 + $0x68] sm:$0xff] %vm383, %v429
      %462 = vst.msk [vmem:[#allocation4 + $0x70] sm:$0xff] %vm383, %v430
      %463 = vst.msk [vmem:[#allocation4 + $0x78] sm:$0xff] %vm383, %v431
      %464 = vst.msk [vmem:[#allocation4 + $0x80] sm:$0xff] %vm383, %v432
      %465 = vst.msk [vmem:[#allocation4 + $0x88] sm:$0xff] %vm383, %v433
      %466 = vst.msk [vmem:[#allocation4 + $0x90] sm:$0xff] %vm383, %v434
      %467 = vst.msk [vmem:[#allocation4 + $0x98] sm:$0xff] %vm383, %v435
      %468 = vst.msk [vmem:[#allocation4 + $0xa0] sm:$0xff] %vm383, %v436
      %469 = vst.msk [vmem:[#allocation4 + $0xa8] sm:$0xff] %vm383, %v437
      %470 = vst.msk [vmem:[#allocation4 + $0xb0] sm:$0xff] %vm383, %v438
      %471 = vst.msk [vmem:[#allocation4 + $0xb8] sm:$0xff] %vm383, %v439
      %472 = vst.msk [vmem:[#allocation4 + $0xc0] sm:$0xff] %vm383, %v440
      %473 = vst.msk [vmem:[#allocation4 + $0xc8] sm:$0xff] %vm383, %v441
      %474 = vst.msk [vmem:[#allocation4 + $0xd0] sm:$0xff] %vm383, %v442
      %475 = vst.msk [vmem:[#allocation4 + $0xd8] sm:$0xff] %vm383, %v443
      %476 = vst.msk [vmem:[#allocation4 + $0xe0] sm:$0xff] %vm383, %v444
      %477 = vst.msk [vmem:[#allocation4 + $0xe8] sm:$0xff] %vm383, %v445
      %478 = vst.msk [vmem:[#allocation4 + $0xf0] sm:$0xff] %vm383, %v446
      %479 = vst.msk [vmem:[#allocation4 + $0xf8] sm:$0xff] %vm383, %v447
      %v480 = vld [vmem:[#allocation2 + $0x1] sm:$0xff]
      %v481 = vld [vmem:[#allocation2 + $0x9] sm:$0xff]
      %v482 = vld [vmem:[#allocation2 + $0x19] sm:$0xff]
      %v483 = vld [vmem:[#allocation2 + $0x21] sm:$0xff]
      %v484 = vld [vmem:[#allocation2 + $0x31] sm:$0xff]
      %v485 = vld [vmem:[#allocation2 + $0x39] sm:$0xff]
      %v486 = vld [vmem:[#allocation2 + $0x49] sm:$0xff]
      %v487 = vld [vmem:[#allocation2 + $0x51] sm:$0xff]
      %v488 = vld [vmem:[#allocation2 + $0x61] sm:$0xff]
      %v489 = vld [vmem:[#allocation2 + $0x69] sm:$0xff]
      %v490 = vld [vmem:[#allocation2 + $0x79] sm:$0xff]
      %v491 = vld [vmem:[#allocation2 + $0x81] sm:$0xff]
      %v492 = vld [vmem:[#allocation2 + $0x91] sm:$0xff]
      %v493 = vld [vmem:[#allocation2 + $0x99] sm:$0xff]
      %v494 = vld [vmem:[#allocation2 + $0xa9] sm:$0xff]
      %v495 = vld [vmem:[#allocation2 + $0xb1] sm:$0xff]
      %v496 = vld [vmem:[#allocation2 + $0xc1] sm:$0xff]
      %v497 = vld [vmem:[#allocation2 + $0xc9] sm:$0xff]
      %v498 = vld [vmem:[#allocation2 + $0xd9] sm:$0xff]
      %v499 = vld [vmem:[#allocation2 + $0xe1] sm:$0xff]
      %v500 = vld [vmem:[#allocation2 + $0xf1] sm:$0xff]
      %v501 = vld [vmem:[#allocation2 + $0xf9] sm:$0xff]
      %v502 = vld [vmem:[#allocation2 + $0x109] sm:$0xff]
      %v503 = vld [vmem:[#allocation2 + $0x111] sm:$0xff]
      %v504 = vld [vmem:[#allocation2 + $0x121] sm:$0xff]
      %v505 = vld [vmem:[#allocation2 + $0x129] sm:$0xff]
      %v506 = vld [vmem:[#allocation2 + $0x139] sm:$0xff]
      %v507 = vld [vmem:[#allocation2 + $0x141] sm:$0xff]
      %v508 = vld [vmem:[#allocation2 + $0x151] sm:$0xff]
      %v509 = vld [vmem:[#allocation2 + $0x159] sm:$0xff]
      %v510 = vld [vmem:[#allocation2 + $0x169] sm:$0xff]
      %v511 = vld [vmem:[#allocation2 + $0x171] sm:$0xff]
      %544 = vrot.lane.b32.xlu0 %v480, 4
      %v545 = vpop.permute.xlu0 %544
      %546 = vrot.lane.b32.xlu0 %v481, 4
      %v547 = vpop.permute.xlu0 %546
      %548 = vrot.lane.b32.xlu0 %v482, 4
      %v549 = vpop.permute.xlu0 %548
      %550 = vrot.lane.b32.xlu0 %v483, 4
      %v551 = vpop.permute.xlu0 %550
      %552 = vrot.lane.b32.xlu0 %v484, 4
      %v553 = vpop.permute.xlu0 %552
      %554 = vrot.lane.b32.xlu0 %v485, 4
      %v555 = vpop.permute.xlu0 %554
      %556 = vrot.lane.b32.xlu0 %v486, 4
      %v557 = vpop.permute.xlu0 %556
      %558 = vrot.lane.b32.xlu0 %v487, 4
      %v559 = vpop.permute.xlu0 %558
      %560 = vrot.lane.b32.xlu0 %v488, 4
      %v561 = vpop.permute.xlu0 %560
      %562 = vrot.lane.b32.xlu0 %v489, 4
      %v563 = vpop.permute.xlu0 %562
      %564 = vrot.lane.b32.xlu0 %v490, 4
      %v565 = vpop.permute.xlu0 %564
      %566 = vrot.lane.b32.xlu0 %v491, 4
      %v567 = vpop.permute.xlu0 %566
      %568 = vrot.lane.b32.xlu0 %v492, 4
      %v569 = vpop.permute.xlu0 %568
      %570 = vrot.lane.b32.xlu0 %v493, 4
      %v571 = vpop.permute.xlu0 %570
      %572 = vrot.lane.b32.xlu0 %v494, 4
      %v573 = vpop.permute.xlu0 %572
      %574 = vrot.lane.b32.xlu0 %v495, 4
      %v575 = vpop.permute.xlu0 %574
      %576 = vrot.lane.b32.xlu0 %v496, 4
      %v577 = vpop.permute.xlu0 %576
      %578 = vrot.lane.b32.xlu0 %v497, 4
      %v579 = vpop.permute.xlu0 %578
      %580 = vrot.lane.b32.xlu0 %v498, 4
      %v581 = vpop.permute.xlu0 %580
      %582 = vrot.lane.b32.xlu0 %v499, 4
      %v583 = vpop.permute.xlu0 %582
      %584 = vrot.lane.b32.xlu0 %v500, 4
      %v585 = vpop.permute.xlu0 %584
      %586 = vrot.lane.b32.xlu0 %v501, 4
      %v587 = vpop.permute.xlu0 %586
      %588 = vrot.lane.b32.xlu0 %v502, 4
      %v589 = vpop.permute.xlu0 %588
      %590 = vrot.lane.b32.xlu0 %v503, 4
      %v591 = vpop.permute.xlu0 %590
      %592 = vrot.lane.b32.xlu0 %v504, 4
      %v593 = vpop.permute.xlu0 %592
      %594 = vrot.lane.b32.xlu0 %v505, 4
      %v595 = vpop.permute.xlu0 %594
      %596 = vrot.lane.b32.xlu0 %v506, 4
      %v597 = vpop.permute.xlu0 %596
      %598 = vrot.lane.b32.xlu0 %v507, 4
      %v599 = vpop.permute.xlu0 %598
      %600 = vrot.lane.b32.xlu0 %v508, 4
      %v601 = vpop.permute.xlu0 %600
      %602 = vrot.lane.b32.xlu0 %v509, 4
      %v603 = vpop.permute.xlu0 %602
      %604 = vrot.lane.b32.xlu0 %v510, 4
      %v605 = vpop.permute.xlu0 %604
      %606 = vrot.lane.b32.xlu0 %v511, 4
      %v607 = vpop.permute.xlu0 %606
      %vm640 = vcmask 64544
      %641 = vst.msk [vmem:[#allocation4] sm:$0xff] %vm640, %v545
      %642 = vst.msk [vmem:[#allocation4 + $0x8] sm:$0xff] %vm640, %v547
      %643 = vst.msk [vmem:[#allocation4 + $0x10] sm:$0xff] %vm640, %v549
      %644 = vst.msk [vmem:[#allocation4 + $0x18] sm:$0xff] %vm640, %v551
      %645 = vst.msk [vmem:[#allocation4 + $0x20] sm:$0xff] %vm640, %v553
      %646 = vst.msk [vmem:[#allocation4 + $0x28] sm:$0xff] %vm640, %v555
      %647 = vst.msk [vmem:[#allocation4 + $0x30] sm:$0xff] %vm640, %v557
      %648 = vst.msk [vmem:[#allocation4 + $0x38] sm:$0xff] %vm640, %v559
      %649 = vst.msk [vmem:[#allocation4 + $0x40] sm:$0xff] %vm640, %v561
      %650 = vst.msk [vmem:[#allocation4 + $0x48] sm:$0xff] %vm640, %v563
      %651 = vst.msk [vmem:[#allocation4 + $0x50] sm:$0xff] %vm640, %v565
      %652 = vst.msk [vmem:[#allocation4 + $0x58] sm:$0xff] %vm640, %v567
      %653 = vst.msk [vmem:[#allocation4 + $0x60] sm:$0xff] %vm640, %v569
      %654 = vst.msk [vmem:[#allocation4 + $0x68] sm:$0xff] %vm640, %v571
      %655 = vst.msk [vmem:[#allocation4 + $0x70] sm:$0xff] %vm640, %v573
      %656 = vst.msk [vmem:[#allocation4 + $0x78] sm:$0xff] %vm640, %v575
      %657 = vst.msk [vmem:[#allocation4 + $0x80] sm:$0xff] %vm640, %v577
      %658 = vst.msk [vmem:[#allocation4 + $0x88] sm:$0xff] %vm640, %v579
      %659 = vst.msk [vmem:[#allocation4 + $0x90] sm:$0xff] %vm640, %v581
      %660 = vst.msk [vmem:[#allocation4 + $0x98] sm:$0xff] %vm640, %v583
      %661 = vst.msk [vmem:[#allocation4 + $0xa0] sm:$0xff] %vm640, %v585
      %662 = vst.msk [vmem:[#allocation4 + $0xa8] sm:$0xff] %vm640, %v587
      %663 = vst.msk [vmem:[#allocation4 + $0xb0] sm:$0xff] %vm640, %v589
      %664 = vst.msk [vmem:[#allocation4 + $0xb8] sm:$0xff] %vm640, %v591
      %665 = vst.msk [vmem:[#allocation4 + $0xc0] sm:$0xff] %vm640, %v593
      %666 = vst.msk [vmem:[#allocation4 + $0xc8] sm:$0xff] %vm640, %v595
      %667 = vst.msk [vmem:[#allocation4 + $0xd0] sm:$0xff] %vm640, %v597
      %668 = vst.msk [vmem:[#allocation4 + $0xd8] sm:$0xff] %vm640, %v599
      %669 = vst.msk [vmem:[#allocation4 + $0xe0] sm:$0xff] %vm640, %v601
      %670 = vst.msk [vmem:[#allocation4 + $0xe8] sm:$0xff] %vm640, %v603
      %671 = vst.msk [vmem:[#allocation4 + $0xf0] sm:$0xff] %vm640, %v605
      %672 = vst.msk [vmem:[#allocation4 + $0xf8] sm:$0xff] %vm640, %v607
      %v673 = vld [vmem:[#allocation2 + $0x2] sm:$0xff]
      %v674 = vld [vmem:[#allocation2 + $0xa] sm:$0xff]
      %v675 = vld [vmem:[#allocation2 + $0x1a] sm:$0xff]
      %v676 = vld [vmem:[#allocation2 + $0x22] sm:$0xff]
      %v677 = vld [vmem:[#allocation2 + $0x32] sm:$0xff]
      %v678 = vld [vmem:[#allocation2 + $0x3a] sm:$0xff]
      %v679 = vld [vmem:[#allocation2 + $0x4a] sm:$0xff]
      %v680 = vld [vmem:[#allocation2 + $0x52] sm:$0xff]
      %v681 = vld [vmem:[#allocation2 + $0x62] sm:$0xff]
      %v682 = vld [vmem:[#allocation2 + $0x6a] sm:$0xff]
      %v683 = vld [vmem:[#allocation2 + $0x7a] sm:$0xff]
      %v684 = vld [vmem:[#allocation2 + $0x82] sm:$0xff]
      %v685 = vld [vmem:[#allocation2 + $0x92] sm:$0xff]
      %v686 = vld [vmem:[#allocation2 + $0x9a] sm:$0xff]
      %v687 = vld [vmem:[#allocation2 + $0xaa] sm:$0xff]
      %v688 = vld [vmem:[#allocation2 + $0xb2] sm:$0xff]
      %v689 = vld [vmem:[#allocation2 + $0xc2] sm:$0xff]
      %v690 = vld [vmem:[#allocation2 + $0xca] sm:$0xff]
      %v691 = vld [vmem:[#allocation2 + $0xda] sm:$0xff]
      %v692 = vld [vmem:[#allocation2 + $0xe2] sm:$0xff]
      %v693 = vld [vmem:[#allocation2 + $0xf2] sm:$0xff]
      %v694 = vld [vmem:[#allocation2 + $0xfa] sm:$0xff]
      %v695 = vld [vmem:[#allocation2 + $0x10a] sm:$0xff]
      %v696 = vld [vmem:[#allocation2 + $0x112] sm:$0xff]
      %v697 = vld [vmem:[#allocation2 + $0x122] sm:$0xff]
      %v698 = vld [vmem:[#allocation2 + $0x12a] sm:$0xff]
      %v699 = vld [vmem:[#allocation2 + $0x13a] sm:$0xff]
      %v700 = vld [vmem:[#allocation2 + $0x142] sm:$0xff]
      %v701 = vld [vmem:[#allocation2 + $0x152] sm:$0xff]
      %v702 = vld [vmem:[#allocation2 + $0x15a] sm:$0xff]
      %v703 = vld [vmem:[#allocation2 + $0x16a] sm:$0xff]
      %v704 = vld [vmem:[#allocation2 + $0x172] sm:$0xff]
      %737 = vrot.lane.b32.xlu0 %v673, 8
      %v738 = vpop.permute.xlu0 %737
      %739 = vrot.lane.b32.xlu0 %v674, 8
      %v740 = vpop.permute.xlu0 %739
      %741 = vrot.lane.b32.xlu0 %v675, 8
      %v742 = vpop.permute.xlu0 %741
      %743 = vrot.lane.b32.xlu0 %v676, 8
      %v744 = vpop.permute.xlu0 %743
      %745 = vrot.lane.b32.xlu0 %v677, 8
      %v746 = vpop.permute.xlu0 %745
      %747 = vrot.lane.b32.xlu0 %v678, 8
      %v748 = vpop.permute.xlu0 %747
      %749 = vrot.lane.b32.xlu0 %v679, 8
      %v750 = vpop.permute.xlu0 %749
      %751 = vrot.lane.b32.xlu0 %v680, 8
      %v752 = vpop.permute.xlu0 %751
      %753 = vrot.lane.b32.xlu0 %v681, 8
      %v754 = vpop.permute.xlu0 %753
      %755 = vrot.lane.b32.xlu0 %v682, 8
      %v756 = vpop.permute.xlu0 %755
      %757 = vrot.lane.b32.xlu0 %v683, 8
      %v758 = vpop.permute.xlu0 %757
      %759 = vrot.lane.b32.xlu0 %v684, 8
      %v760 = vpop.permute.xlu0 %759
      %761 = vrot.lane.b32.xlu0 %v685, 8
      %v762 = vpop.permute.xlu0 %761
      %763 = vrot.lane.b32.xlu0 %v686, 8
      %v764 = vpop.permute.xlu0 %763
      %765 = vrot.lane.b32.xlu0 %v687, 8
      %v766 = vpop.permute.xlu0 %765
      %767 = vrot.lane.b32.xlu0 %v688, 8
      %v768 = vpop.permute.xlu0 %767
      %769 = vrot.lane.b32.xlu0 %v689, 8
      %v770 = vpop.permute.xlu0 %769
      %771 = vrot.lane.b32.xlu0 %v690, 8
      %v772 = vpop.permute.xlu0 %771
      %773 = vrot.lane.b32.xlu0 %v691, 8
      %v774 = vpop.permute.xlu0 %773
      %775 = vrot.lane.b32.xlu0 %v692, 8
      %v776 = vpop.permute.xlu0 %775
      %777 = vrot.lane.b32.xlu0 %v693, 8
      %v778 = vpop.permute.xlu0 %777
      %779 = vrot.lane.b32.xlu0 %v694, 8
      %v780 = vpop.permute.xlu0 %779
      %781 = vrot.lane.b32.xlu0 %v695, 8
      %v782 = vpop.permute.xlu0 %781
      %783 = vrot.lane.b32.xlu0 %v696, 8
      %v784 = vpop.permute.xlu0 %783
      %785 = vrot.lane.b32.xlu0 %v697, 8
      %v786 = vpop.permute.xlu0 %785
      %787 = vrot.lane.b32.xlu0 %v698, 8
      %v788 = vpop.permute.xlu0 %787
      %789 = vrot.lane.b32.xlu0 %v699, 8
      %v790 = vpop.permute.xlu0 %789
      %791 = vrot.lane.b32.xlu0 %v700, 8
      %v792 = vpop.permute.xlu0 %791
      %793 = vrot.lane.b32.xlu0 %v701, 8
      %v794 = vpop.permute.xlu0 %793
      %795 = vrot.lane.b32.xlu0 %v702, 8
      %v796 = vpop.permute.xlu0 %795
      %797 = vrot.lane.b32.xlu0 %v703, 8
      %v798 = vpop.permute.xlu0 %797
      %799 = vrot.lane.b32.xlu0 %v704, 8
      %v800 = vpop.permute.xlu0 %799
      %vm833 = vcmask 97344
      %834 = vst.msk [vmem:[#allocation4] sm:$0xff] %vm833, %v738
      %835 = vst.msk [vmem:[#allocation4 + $0x8] sm:$0xff] %vm833, %v740
      %836 = vst.msk [vmem:[#allocation4 + $0x10] sm:$0xff] %vm833, %v742
      %837 = vst.msk [vmem:[#allocation4 + $0x18] sm:$0xff] %vm833, %v744
      %838 = vst.msk [vmem:[#allocation4 + $0x20] sm:$0xff] %vm833, %v746
      %839 = vst.msk [vmem:[#allocation4 + $0x28] sm:$0xff] %vm833, %v748
      %840 = vst.msk [vmem:[#allocation4 + $0x30] sm:$0xff] %vm833, %v750
      %841 = vst.msk [vmem:[#allocation4 + $0x38] sm:$0xff] %vm833, %v752
      %842 = vst.msk [vmem:[#allocation4 + $0x40] sm:$0xff] %vm833, %v754
      %843 = vst.msk [vmem:[#allocation4 + $0x48] sm:$0xff] %vm833, %v756
      %844 = vst.msk [vmem:[#allocation4 + $0x50] sm:$0xff] %vm833, %v758
      %845 = vst.msk [vmem:[#allocation4 + $0x58] sm:$0xff] %vm833, %v760
      %846 = vst.msk [vmem:[#allocation4 + $0x60] sm:$0xff] %vm833, %v762
      %847 = vst.msk [vmem:[#allocation4 + $0x68] sm:$0xff] %vm833, %v764
      %848 = vst.msk [vmem:[#allocation4 + $0x70] sm:$0xff] %vm833, %v766
      %849 = vst.msk [vmem:[#allocation4 + $0x78] sm:$0xff] %vm833, %v768
      %850 = vst.msk [vmem:[#allocation4 + $0x80] sm:$0xff] %vm833, %v770
      %851 = vst.msk [vmem:[#allocation4 + $0x88] sm:$0xff] %vm833, %v772
      %852 = vst.msk [vmem:[#allocation4 + $0x90] sm:$0xff] %vm833, %v774
      %853 = vst.msk [vmem:[#allocation4 + $0x98] sm:$0xff] %vm833, %v776
      %854 = vst.msk [vmem:[#allocation4 + $0xa0] sm:$0xff] %vm833, %v778
      %855 = vst.msk [vmem:[#allocation4 + $0xa8] sm:$0xff] %vm833, %v780
      %856 = vst.msk [vmem:[#allocation4 + $0xb0] sm:$0xff] %vm833, %v782
      %857 = vst.msk [vmem:[#allocation4 + $0xb8] sm:$0xff] %vm833, %v784
      %858 = vst.msk [vmem:[#allocation4 + $0xc0] sm:$0xff] %vm833, %v786
      %859 = vst.msk [vmem:[#allocation4 + $0xc8] sm:$0xff] %vm833, %v788
      %860 = vst.msk [vmem:[#allocation4 + $0xd0] sm:$0xff] %vm833, %v790
      %861 = vst.msk [vmem:[#allocation4 + $0xd8] sm:$0xff] %vm833, %v792
      %862 = vst.msk [vmem:[#allocation4 + $0xe0] sm:$0xff] %vm833, %v794
      %863 = vst.msk [vmem:[#allocation4 + $0xe8] sm:$0xff] %vm833, %v796
      %864 = vst.msk [vmem:[#allocation4 + $0xf0] sm:$0xff] %vm833, %v798
      %865 = vst.msk [vmem:[#allocation4 + $0xf8] sm:$0xff] %vm833, %v800
      %v866 = vld [vmem:[%s382] sm:$0xff]
      %v867 = vld [vmem:[%s382 + $0x8] sm:$0xff]
      %v868 = vld [vmem:[%s382 + $0x18] sm:$0xff]
      %v869 = vld [vmem:[%s382 + $0x20] sm:$0xff]
      %v870 = vld [vmem:[%s382 + $0x30] sm:$0xff]
      %v871 = vld [vmem:[%s382 + $0x38] sm:$0xff]
      %v872 = vld [vmem:[%s382 + $0x48] sm:$0xff]
      %v873 = vld [vmem:[%s382 + $0x50] sm:$0xff]
      %v874 = vld [vmem:[%s382 + $0x60] sm:$0xff]
      %v875 = vld [vmem:[%s382 + $0x68] sm:$0xff]
      %v876 = vld [vmem:[%s382 + $0x78] sm:$0xff]
      %v877 = vld [vmem:[%s382 + $0x80] sm:$0xff]
      %v878 = vld [vmem:[%s382 + $0x90] sm:$0xff]
      %v879 = vld [vmem:[%s382 + $0x98] sm:$0xff]
      %v880 = vld [vmem:[%s382 + $0xa8] sm:$0xff]
      %v881 = vld [vmem:[%s382 + $0xb0] sm:$0xff]
      %v882 = vld [vmem:[%s382 + $0xc0] sm:$0xff]
      %v883 = vld [vmem:[%s382 + $0xc8] sm:$0xff]
      %v884 = vld [vmem:[%s382 + $0xd8] sm:$0xff]
      %v885 = vld [vmem:[%s382 + $0xe0] sm:$0xff]
      %v886 = vld [vmem:[%s382 + $0xf0] sm:$0xff]
      %v887 = vld [vmem:[%s382 + $0xf8] sm:$0xff]
      %v888 = vld [vmem:[%s382 + $0x108] sm:$0xff]
      %v889 = vld [vmem:[%s382 + $0x110] sm:$0xff]
      %v890 = vld [vmem:[%s382 + $0x120] sm:$0xff]
      %v891 = vld [vmem:[%s382 + $0x128] sm:$0xff]
      %v892 = vld [vmem:[%s382 + $0x138] sm:$0xff]
      %v893 = vld [vmem:[%s382 + $0x140] sm:$0xff]
      %v894 = vld [vmem:[%s382 + $0x150] sm:$0xff]
      %v895 = vld [vmem:[%s382 + $0x158] sm:$0xff]
      %v896 = vld [vmem:[%s382 + $0x168] sm:$0xff]
      %v897 = vld [vmem:[%s382 + $0x170] sm:$0xff]
      %930 = vrot.lane.b32.xlu0 %v866, 12
      %v931 = vpop.permute.xlu0 %930
      %932 = vrot.lane.b32.xlu0 %v867, 12
      %v933 = vpop.permute.xlu0 %932
      %934 = vrot.lane.b32.xlu0 %v868, 12
      %v935 = vpop.permute.xlu0 %934
      %936 = vrot.lane.b32.xlu0 %v869, 12
      %v937 = vpop.permute.xlu0 %936
      %938 = vrot.lane.b32.xlu0 %v870, 12
      %v939 = vpop.permute.xlu0 %938
      %940 = vrot.lane.b32.xlu0 %v871, 12
      %v941 = vpop.permute.xlu0 %940
      %942 = vrot.lane.b32.xlu0 %v872, 12
      %v943 = vpop.permute.xlu0 %942
      %944 = vrot.lane.b32.xlu0 %v873, 12
      %v945 = vpop.permute.xlu0 %944
      %946 = vrot.lane.b32.xlu0 %v874, 12
      %v947 = vpop.permute.xlu0 %946
      %948 = vrot.lane.b32.xlu0 %v875, 12
      %v949 = vpop.permute.xlu0 %948
      %950 = vrot.lane.b32.xlu0 %v876, 12
      %v951 = vpop.permute.xlu0 %950
      %952 = vrot.lane.b32.xlu0 %v877, 12
      %v953 = vpop.permute.xlu0 %952
      %954 = vrot.lane.b32.xlu0 %v878, 12
      %v955 = vpop.permute.xlu0 %954
      %956 = vrot.lane.b32.xlu0 %v879, 12
      %v957 = vpop.permute.xlu0 %956
      %958 = vrot.lane.b32.xlu0 %v880, 12
      %v959 = vpop.permute.xlu0 %958
      %960 = vrot.lane.b32.xlu0 %v881, 12
      %v961 = vpop.permute.xlu0 %960
      %962 = vrot.lane.b32.xlu0 %v882, 12
      %v963 = vpop.permute.xlu0 %962
      %964 = vrot.lane.b32.xlu0 %v883, 12
      %v965 = vpop.permute.xlu0 %964
      %966 = vrot.lane.b32.xlu0 %v884, 12
      %v967 = vpop.permute.xlu0 %966
      %968 = vrot.lane.b32.xlu0 %v885, 12
      %v969 = vpop.permute.xlu0 %968
      %970 = vrot.lane.b32.xlu0 %v886, 12
      %v971 = vpop.permute.xlu0 %970
      %972 = vrot.lane.b32.xlu0 %v887, 12
      %v973 = vpop.permute.xlu0 %972
      %974 = vrot.lane.b32.xlu0 %v888, 12
      %v975 = vpop.permute.xlu0 %974
      %976 = vrot.lane.b32.xlu0 %v889, 12
      %v977 = vpop.permute.xlu0 %976
      %978 = vrot.lane.b32.xlu0 %v890, 12
      %v979 = vpop.permute.xlu0 %978
      %980 = vrot.lane.b32.xlu0 %v891, 12
      %v981 = vpop.permute.xlu0 %980
      %982 = vrot.lane.b32.xlu0 %v892, 12
      %v983 = vpop.permute.xlu0 %982
      %984 = vrot.lane.b32.xlu0 %v893, 12
      %v985 = vpop.permute.xlu0 %984
      %986 = vrot.lane.b32.xlu0 %v894, 12
      %v987 = vpop.permute.xlu0 %986
      %988 = vrot.lane.b32.xlu0 %v895, 12
      %v989 = vpop.permute.xlu0 %988
      %990 = vrot.lane.b32.xlu0 %v896, 12
      %v991 = vpop.permute.xlu0 %990
      %992 = vrot.lane.b32.xlu0 %v897, 12
      %v993 = vpop.permute.xlu0 %992
      %vm1026 = vcmask 130144
      %1027 = vst.msk [vmem:[#allocation4] sm:$0xff] %vm1026, %v931
      %1028 = vst.msk [vmem:[#allocation4 + $0x8] sm:$0xff] %vm1026, %v933
      %1029 = vst.msk [vmem:[#allocation4 + $0x10] sm:$0xff] %vm1026, %v935
      %1030 = vst.msk [vmem:[#allocation4 + $0x18] sm:$0xff] %vm1026, %v937
      %1031 = vst.msk [vmem:[#allocation4 + $0x20] sm:$0xff] %vm1026, %v939
      %1032 = vst.msk [vmem:[#allocation4 + $0x28] sm:$0xff] %vm1026, %v941
      %1033 = vst.msk [vmem:[#allocation4 + $0x30] sm:$0xff] %vm1026, %v943
      %1034 = vst.msk [vmem:[#allocation4 + $0x38] sm:$0xff] %vm1026, %v945
      %1035 = vst.msk [vmem:[#allocation4 + $0x40] sm:$0xff] %vm1026, %v947
      %1036 = vst.msk [vmem:[#allocation4 + $0x48] sm:$0xff] %vm1026, %v949
      %1037 = vst.msk [vmem:[#allocation4 + $0x50] sm:$0xff] %vm1026, %v951
      %1038 = vst.msk [vmem:[#allocation4 + $0x58] sm:$0xff] %vm1026, %v953
      %1039 = vst.msk [vmem:[#allocation4 + $0x60] sm:$0xff] %vm1026, %v955
      %1040 = vst.msk [vmem:[#allocation4 + $0x68] sm:$0xff] %vm1026, %v957
      %1041 = vst.msk [vmem:[#allocation4 + $0x70] sm:$0xff] %vm1026, %v959
      %1042 = vst.msk [vmem:[#allocation4 + $0x78] sm:$0xff] %vm1026, %v961
      %1043 = vst.msk [vmem:[#allocation4 + $0x80] sm:$0xff] %vm1026, %v963
      %1044 = vst.msk [vmem:[#allocation4 + $0x88] sm:$0xff] %vm1026, %v965
      %1045 = vst.msk [vmem:[#allocation4 + $0x90] sm:$0xff] %vm1026, %v967
      %1046 = vst.msk [vmem:[#allocation4 + $0x98] sm:$0xff] %vm1026, %v969
      %1047 = vst.msk [vmem:[#allocation4 + $0xa0] sm:$0xff] %vm1026, %v971
      %1048 = vst.msk [vmem:[#allocation4 + $0xa8] sm:$0xff] %vm1026, %v973
      %1049 = vst.msk [vmem:[#allocation4 + $0xb0] sm:$0xff] %vm1026, %v975
      %1050 = vst.msk [vmem:[#allocation4 + $0xb8] sm:$0xff] %vm1026, %v977
      %1051 = vst.msk [vmem:[#allocation4 + $0xc0] sm:$0xff] %vm1026, %v979
      %1052 = vst.msk [vmem:[#allocation4 + $0xc8] sm:$0xff] %vm1026, %v981
      %1053 = vst.msk [vmem:[#allocation4 + $0xd0] sm:$0xff] %vm1026, %v983
      %1054 = vst.msk [vmem:[#allocation4 + $0xd8] sm:$0xff] %vm1026, %v985
      %1055 = vst.msk [vmem:[#allocation4 + $0xe0] sm:$0xff] %vm1026, %v987
      %1056 = vst.msk [vmem:[#allocation4 + $0xe8] sm:$0xff] %vm1026, %v989
      %1057 = vst.msk [vmem:[#allocation4 + $0xf0] sm:$0xff] %vm1026, %v991
      %1058 = vst.msk [vmem:[#allocation4 + $0xf8] sm:$0xff] %vm1026, %v993
      %v1059 = vld [vmem:[%s382 + $0x1] sm:$0xff]
      %v1060 = vld [vmem:[%s382 + $0x9] sm:$0xff]
      %v1061 = vld [vmem:[%s382 + $0x19] sm:$0xff]
      %v1062 = vld [vmem:[%s382 + $0x21] sm:$0xff]
      %v1063 = vld [vmem:[%s382 + $0x31] sm:$0xff]
      %v1064 = vld [vmem:[%s382 + $0x39] sm:$0xff]
      %v1065 = vld [vmem:[%s382 + $0x49] sm:$0xff]
      %v1066 = vld [vmem:[%s382 + $0x51] sm:$0xff]
      %v1067 = vld [vmem:[%s382 + $0x61] sm:$0xff]
      %v1068 = vld [vmem:[%s382 + $0x69] sm:$0xff]
      %v1069 = vld [vmem:[%s382 + $0x79] sm:$0xff]
      %v1070 = vld [vmem:[%s382 + $0x81] sm:$0xff]
      %v1071 = vld [vmem:[%s382 + $0x91] sm:$0xff]
      %v1072 = vld [vmem:[%s382 + $0x99] sm:$0xff]
      %v1073 = vld [vmem:[%s382 + $0xa9] sm:$0xff]
      %v1074 = vld [vmem:[%s382 + $0xb1] sm:$0xff]
      %v1075 = vld [vmem:[%s382 + $0xc1] sm:$0xff]
      %v1076 = vld [vmem:[%s382 + $0xc9] sm:$0xff]
      %v1077 = vld [vmem:[%s382 + $0xd9] sm:$0xff]
      %v1078 = vld [vmem:[%s382 + $0xe1] sm:$0xff]
      %v1079 = vld [vmem:[%s382 + $0xf1] sm:$0xff]
      %v1080 = vld [vmem:[%s382 + $0xf9] sm:$0xff]
      %v1081 = vld [vmem:[%s382 + $0x109] sm:$0xff]
      %v1082 = vld [vmem:[%s382 + $0x111] sm:$0xff]
      %v1083 = vld [vmem:[%s382 + $0x121] sm:$0xff]
      %v1084 = vld [vmem:[%s382 + $0x129] sm:$0xff]
      %v1085 = vld [vmem:[%s382 + $0x139] sm:$0xff]
      %v1086 = vld [vmem:[%s382 + $0x141] sm:$0xff]
      %v1087 = vld [vmem:[%s382 + $0x151] sm:$0xff]
      %v1088 = vld [vmem:[%s382 + $0x159] sm:$0xff]
      %v1089 = vld [vmem:[%s382 + $0x169] sm:$0xff]
      %v1090 = vld [vmem:[%s382 + $0x171] sm:$0xff]
      %1123 = vrot.lane.b32.xlu0 %v1059, 16
      %v1124 = vpop.permute.xlu0 %1123
      %1125 = vrot.lane.b32.xlu0 %v1060, 16
      %v1126 = vpop.permute.xlu0 %1125
      %1127 = vrot.lane.b32.xlu0 %v1061, 16
      %v1128 = vpop.permute.xlu0 %1127
      %1129 = vrot.lane.b32.xlu0 %v1062, 16
      %v1130 = vpop.permute.xlu0 %1129
      %1131 = vrot.lane.b32.xlu0 %v1063, 16
      %v1132 = vpop.permute.xlu0 %1131
      %1133 = vrot.lane.b32.xlu0 %v1064, 16
      %v1134 = vpop.permute.xlu0 %1133
      %1135 = vrot.lane.b32.xlu0 %v1065, 16
      %v1136 = vpop.permute.xlu0 %1135
      %1137 = vrot.lane.b32.xlu0 %v1066, 16
      %v1138 = vpop.permute.xlu0 %1137
      %1139 = vrot.lane.b32.xlu0 %v1067, 16
      %v1140 = vpop.permute.xlu0 %1139
      %1141 = vrot.lane.b32.xlu0 %v1068, 16
      %v1142 = vpop.permute.xlu0 %1141
      %1143 = vrot.lane.b32.xlu0 %v1069, 16
      %v1144 = vpop.permute.xlu0 %1143
      %1145 = vrot.lane.b32.xlu0 %v1070, 16
      %v1146 = vpop.permute.xlu0 %1145
      %1147 = vrot.lane.b32.xlu0 %v1071, 16
      %v1148 = vpop.permute.xlu0 %1147
      %1149 = vrot.lane.b32.xlu0 %v1072, 16
      %v1150 = vpop.permute.xlu0 %1149
      %1151 = vrot.lane.b32.xlu0 %v1073, 16
      %v1152 = vpop.permute.xlu0 %1151
      %1153 = vrot.lane.b32.xlu0 %v1074, 16
      %v1154 = vpop.permute.xlu0 %1153
      %1155 = vrot.lane.b32.xlu0 %v1075, 16
      %v1156 = vpop.permute.xlu0 %1155
      %1157 = vrot.lane.b32.xlu0 %v1076, 16
      %v1158 = vpop.permute.xlu0 %1157
      %1159 = vrot.lane.b32.xlu0 %v1077, 16
      %v1160 = vpop.permute.xlu0 %1159
      %1161 = vrot.lane.b32.xlu0 %v1078, 16
      %v1162 = vpop.permute.xlu0 %1161
      %1163 = vrot.lane.b32.xlu0 %v1079, 16
      %v1164 = vpop.permute.xlu0 %1163
      %1165 = vrot.lane.b32.xlu0 %v1080, 16
      %v1166 = vpop.permute.xlu0 %1165
      %1167 = vrot.lane.b32.xlu0 %v1081, 16
      %v1168 = vpop.permute.xlu0 %1167
      %1169 = vrot.lane.b32.xlu0 %v1082, 16
      %v1170 = vpop.permute.xlu0 %1169
      %1171 = vrot.lane.b32.xlu0 %v1083, 16
      %v1172 = vpop.permute.xlu0 %1171
      %1173 = vrot.lane.b32.xlu0 %v1084, 16
      %v1174 = vpop.permute.xlu0 %1173
      %1175 = vrot.lane.b32.xlu0 %v1085, 16
      %v1176 = vpop.permute.xlu0 %1175
      %1177 = vrot.lane.b32.xlu0 %v1086, 16
      %v1178 = vpop.permute.xlu0 %1177
      %1179 = vrot.lane.b32.xlu0 %v1087, 16
      %v1180 = vpop.permute.xlu0 %1179
      %1181 = vrot.lane.b32.xlu0 %v1088, 16
      %v1182 = vpop.permute.xlu0 %1181
      %1183 = vrot.lane.b32.xlu0 %v1089, 16
      %v1184 = vpop.permute.xlu0 %1183
      %1185 = vrot.lane.b32.xlu0 %v1090, 16
      %v1186 = vpop.permute.xlu0 %1185
      %vm1219 = vcmask 162944
      %1220 = vst.msk [vmem:[#allocation4] sm:$0xff] %vm1219, %v1124
      %1221 = vst.msk [vmem:[#allocation4 + $0x8] sm:$0xff] %vm1219, %v1126
      %1222 = vst.msk [vmem:[#allocation4 + $0x10] sm:$0xff] %vm1219, %v1128
      %1223 = vst.msk [vmem:[#allocation4 + $0x18] sm:$0xff] %vm1219, %v1130
      %1224 = vst.msk [vmem:[#allocation4 + $0x20] sm:$0xff] %vm1219, %v1132
      %1225 = vst.msk [vmem:[#allocation4 + $0x28] sm:$0xff] %vm1219, %v1134
      %1226 = vst.msk [vmem:[#allocation4 + $0x30] sm:$0xff] %vm1219, %v1136
      %1227 = vst.msk [vmem:[#allocation4 + $0x38] sm:$0xff] %vm1219, %v1138
      %1228 = vst.msk [vmem:[#allocation4 + $0x40] sm:$0xff] %vm1219, %v1140
      %1229 = vst.msk [vmem:[#allocation4 + $0x48] sm:$0xff] %vm1219, %v1142
      %1230 = vst.msk [vmem:[#allocation4 + $0x50] sm:$0xff] %vm1219, %v1144
      %1231 = vst.msk [vmem:[#allocation4 + $0x58] sm:$0xff] %vm1219, %v1146
      %1232 = vst.msk [vmem:[#allocation4 + $0x60] sm:$0xff] %vm1219, %v1148
      %1233 = vst.msk [vmem:[#allocation4 + $0x68] sm:$0xff] %vm1219, %v1150
      %1234 = vst.msk [vmem:[#allocation4 + $0x70] sm:$0xff] %vm1219, %v1152
      %1235 = vst.msk [vmem:[#allocation4 + $0x78] sm:$0xff] %vm1219, %v1154
      %1236 = vst.msk [vmem:[#allocation4 + $0x80] sm:$0xff] %vm1219, %v1156
      %1237 = vst.msk [vmem:[#allocation4 + $0x88] sm:$0xff] %vm1219, %v1158
      %1238 = vst.msk [vmem:[#allocation4 + $0x90] sm:$0xff] %vm1219, %v1160
      %1239 = vst.msk [vmem:[#allocation4 + $0x98] sm:$0xff] %vm1219, %v1162
      %1240 = vst.msk [vmem:[#allocation4 + $0xa0] sm:$0xff] %vm1219, %v1164
      %1241 = vst.msk [vmem:[#allocation4 + $0xa8] sm:$0xff] %vm1219, %v1166
      %1242 = vst.msk [vmem:[#allocation4 + $0xb0] sm:$0xff] %vm1219, %v1168
      %1243 = vst.msk [vmem:[#allocation4 + $0xb8] sm:$0xff] %vm1219, %v1170
      %1244 = vst.msk [vmem:[#allocation4 + $0xc0] sm:$0xff] %vm1219, %v1172
      %1245 = vst.msk [vmem:[#allocation4 + $0xc8] sm:$0xff] %vm1219, %v1174
      %1246 = vst.msk [vmem:[#allocation4 + $0xd0] sm:$0xff] %vm1219, %v1176
      %1247 = vst.msk [vmem:[#allocation4 + $0xd8] sm:$0xff] %vm1219, %v1178
      %1248 = vst.msk [vmem:[#allocation4 + $0xe0] sm:$0xff] %vm1219, %v1180
      %1249 = vst.msk [vmem:[#allocation4 + $0xe8] sm:$0xff] %vm1219, %v1182
      %1250 = vst.msk [vmem:[#allocation4 + $0xf0] sm:$0xff] %vm1219, %v1184
      %1251 = vst.msk [vmem:[#allocation4 + $0xf8] sm:$0xff] %vm1219, %v1186
      %v1252 = vld [vmem:[%s382 + $0x2] sm:$0xff]
      %v1253 = vld [vmem:[%s382 + $0xa] sm:$0xff]
      %v1254 = vld [vmem:[%s382 + $0x1a] sm:$0xff]
      %v1255 = vld [vmem:[%s382 + $0x22] sm:$0xff]
      %v1256 = vld [vmem:[%s382 + $0x32] sm:$0xff]
      %v1257 = vld [vmem:[%s382 + $0x3a] sm:$0xff]
      %v1258 = vld [vmem:[%s382 + $0x4a] sm:$0xff]
      %v1259 = vld [vmem:[%s382 + $0x52] sm:$0xff]
      %v1260 = vld [vmem:[%s382 + $0x62] sm:$0xff]
      %v1261 = vld [vmem:[%s382 + $0x6a] sm:$0xff]
      %v1262 = vld [vmem:[%s382 + $0x7a] sm:$0xff]
      %v1263 = vld [vmem:[%s382 + $0x82] sm:$0xff]
      %v1264 = vld [vmem:[%s382 + $0x92] sm:$0xff]
      %v1265 = vld [vmem:[%s382 + $0x9a] sm:$0xff]
      %v1266 = vld [vmem:[%s382 + $0xaa] sm:$0xff]
      %v1267 = vld [vmem:[%s382 + $0xb2] sm:$0xff]
      %v1268 = vld [vmem:[%s382 + $0xc2] sm:$0xff]
      %v1269 = vld [vmem:[%s382 + $0xca] sm:$0xff]
      %v1270 = vld [vmem:[%s382 + $0xda] sm:$0xff]
      %v1271 = vld [vmem:[%s382 + $0xe2] sm:$0xff]
      %v1272 = vld [vmem:[%s382 + $0xf2] sm:$0xff]
      %v1273 = vld [vmem:[%s382 + $0xfa] sm:$0xff]
      %v1274 = vld [vmem:[%s382 + $0x10a] sm:$0xff]
      %v1275 = vld [vmem:[%s382 + $0x112] sm:$0xff]
      %v1276 = vld [vmem:[%s382 + $0x122] sm:$0xff]
      %v1277 = vld [vmem:[%s382 + $0x12a] sm:$0xff]
      %v1278 = vld [vmem:[%s382 + $0x13a] sm:$0xff]
      %v1279 = vld [vmem:[%s382 + $0x142] sm:$0xff]
      %v1280 = vld [vmem:[%s382 + $0x152] sm:$0xff]
      %v1281 = vld [vmem:[%s382 + $0x15a] sm:$0xff]
      %v1282 = vld [vmem:[%s382 + $0x16a] sm:$0xff]
      %v1283 = vld [vmem:[%s382 + $0x172] sm:$0xff]
      %1316 = vrot.lane.b32.xlu0 %v1252, 20
      %v1317 = vpop.permute.xlu0 %1316
      %1318 = vrot.lane.b32.xlu0 %v1253, 20
      %v1319 = vpop.permute.xlu0 %1318
      %1320 = vrot.lane.b32.xlu0 %v1254, 20
      %v1321 = vpop.permute.xlu0 %1320
      %1322 = vrot.lane.b32.xlu0 %v1255, 20
      %v1323 = vpop.permute.xlu0 %1322
      %1324 = vrot.lane.b32.xlu0 %v1256, 20
      %v1325 = vpop.permute.xlu0 %1324
      %1326 = vrot.lane.b32.xlu0 %v1257, 20
      %v1327 = vpop.permute.xlu0 %1326
      %1328 = vrot.lane.b32.xlu0 %v1258, 20
      %v1329 = vpop.permute.xlu0 %1328
      %1330 = vrot.lane.b32.xlu0 %v1259, 20
      %v1331 = vpop.permute.xlu0 %1330
      %1332 = vrot.lane.b32.xlu0 %v1260, 20
      %v1333 = vpop.permute.xlu0 %1332
      %1334 = vrot.lane.b32.xlu0 %v1261, 20
      %v1335 = vpop.permute.xlu0 %1334
      %1336 = vrot.lane.b32.xlu0 %v1262, 20
      %v1337 = vpop.permute.xlu0 %1336
      %1338 = vrot.lane.b32.xlu0 %v1263, 20
      %v1339 = vpop.permute.xlu0 %1338
      %1340 = vrot.lane.b32.xlu0 %v1264, 20
      %v1341 = vpop.permute.xlu0 %1340
      %1342 = vrot.lane.b32.xlu0 %v1265, 20
      %v1343 = vpop.permute.xlu0 %1342
      %1344 = vrot.lane.b32.xlu0 %v1266, 20
      %v1345 = vpop.permute.xlu0 %1344
      %1346 = vrot.lane.b32.xlu0 %v1267, 20
      %v1347 = vpop.permute.xlu0 %1346
      %1348 = vrot.lane.b32.xlu0 %v1268, 20
      %v1349 = vpop.permute.xlu0 %1348
      %1350 = vrot.lane.b32.xlu0 %v1269, 20
      %v1351 = vpop.permute.xlu0 %1350
      %1352 = vrot.lane.b32.xlu0 %v1270, 20
      %v1353 = vpop.permute.xlu0 %1352
      %1354 = vrot.lane.b32.xlu0 %v1271, 20
      %v1355 = vpop.permute.xlu0 %1354
      %1356 = vrot.lane.b32.xlu0 %v1272, 20
      %v1357 = vpop.permute.xlu0 %1356
      %1358 = vrot.lane.b32.xlu0 %v1273, 20
      %v1359 = vpop.permute.xlu0 %1358
      %1360 = vrot.lane.b32.xlu0 %v1274, 20
      %v1361 = vpop.permute.xlu0 %1360
      %1362 = vrot.lane.b32.xlu0 %v1275, 20
      %v1363 = vpop.permute.xlu0 %1362
      %1364 = vrot.lane.b32.xlu0 %v1276, 20
      %v1365 = vpop.permute.xlu0 %1364
      %1366 = vrot.lane.b32.xlu0 %v1277, 20
      %v1367 = vpop.permute.xlu0 %1366
      %1368 = vrot.lane.b32.xlu0 %v1278, 20
      %v1369 = vpop.permute.xlu0 %1368
      %1370 = vrot.lane.b32.xlu0 %v1279, 20
      %v1371 = vpop.permute.xlu0 %1370
      %1372 = vrot.lane.b32.xlu0 %v1280, 20
      %v1373 = vpop.permute.xlu0 %1372
      %1374 = vrot.lane.b32.xlu0 %v1281, 20
      %v1375 = vpop.permute.xlu0 %1374
      %1376 = vrot.lane.b32.xlu0 %v1282, 20
      %v1377 = vpop.permute.xlu0 %1376
      %1378 = vrot.lane.b32.xlu0 %v1283, 20
      %v1379 = vpop.permute.xlu0 %1378
      %vm1412 = vcmask 195744
      %1413 = vst.msk [vmem:[#allocation4] sm:$0xff] %vm1412, %v1317
      %1414 = vst.msk [vmem:[#allocation4 + $0x8] sm:$0xff] %vm1412, %v1319
      %1415 = vst.msk [vmem:[#allocation4 + $0x10] sm:$0xff] %vm1412, %v1321
      %1416 = vst.msk [vmem:[#allocation4 + $0x18] sm:$0xff] %vm1412, %v1323
      %1417 = vst.msk [vmem:[#allocation4 + $0x20] sm:$0xff] %vm1412, %v1325
      %1418 = vst.msk [vmem:[#allocation4 + $0x28] sm:$0xff] %vm1412, %v1327
      %1419 = vst.msk [vmem:[#allocation4 + $0x30] sm:$0xff] %vm1412, %v1329
      %1420 = vst.msk [vmem:[#allocation4 + $0x38] sm:$0xff] %vm1412, %v1331
      %1421 = vst.msk [vmem:[#allocation4 + $0x40] sm:$0xff] %vm1412, %v1333
      %1422 = vst.msk [vmem:[#allocation4 + $0x48] sm:$0xff] %vm1412, %v1335
      %1423 = vst.msk [vmem:[#allocation4 + $0x50] sm:$0xff] %vm1412, %v1337
      %1424 = vst.msk [vmem:[#allocation4 + $0x58] sm:$0xff] %vm1412, %v1339
      %1425 = vst.msk [vmem:[#allocation4 + $0x60] sm:$0xff] %vm1412, %v1341
      %1426 = vst.msk [vmem:[#allocation4 + $0x68] sm:$0xff] %vm1412, %v1343
      %1427 = vst.msk [vmem:[#allocation4 + $0x70] sm:$0xff] %vm1412, %v1345
      %1428 = vst.msk [vmem:[#allocation4 + $0x78] sm:$0xff] %vm1412, %v1347
      %1429 = vst.msk [vmem:[#allocation4 + $0x80] sm:$0xff] %vm1412, %v1349
      %1430 = vst.msk [vmem:[#allocation4 + $0x88] sm:$0xff] %vm1412, %v1351
      %1431 = vst.msk [vmem:[#allocation4 + $0x90] sm:$0xff] %vm1412, %v1353
      %1432 = vst.msk [vmem:[#allocation4 + $0x98] sm:$0xff] %vm1412, %v1355
      %1433 = vst.msk [vmem:[#allocation4 + $0xa0] sm:$0xff] %vm1412, %v1357
      %1434 = vst.msk [vmem:[#allocation4 + $0xa8] sm:$0xff] %vm1412, %v1359
      %1435 = vst.msk [vmem:[#allocation4 + $0xb0] sm:$0xff] %vm1412, %v1361
      %1436 = vst.msk [vmem:[#allocation4 + $0xb8] sm:$0xff] %vm1412, %v1363
      %1437 = vst.msk [vmem:[#allocation4 + $0xc0] sm:$0xff] %vm1412, %v1365
      %1438 = vst.msk [vmem:[#allocation4 + $0xc8] sm:$0xff] %vm1412, %v1367
      %1439 = vst.msk [vmem:[#allocation4 + $0xd0] sm:$0xff] %vm1412, %v1369
      %1440 = vst.msk [vmem:[#allocation4 + $0xd8] sm:$0xff] %vm1412, %v1371
      %1441 = vst.msk [vmem:[#allocation4 + $0xe0] sm:$0xff] %vm1412, %v1373
      %1442 = vst.msk [vmem:[#allocation4 + $0xe8] sm:$0xff] %vm1412, %v1375
      %1443 = vst.msk [vmem:[#allocation4 + $0xf0] sm:$0xff] %vm1412, %v1377
      %1444 = vst.msk [vmem:[#allocation4 + $0xf8] sm:$0xff] %vm1412, %v1379
      %s1445 = scalar_lea.vmem [#allocation2], 48
      %v1446 = vld [vmem:[%s1445] sm:$0xff]
      %v1447 = vld [vmem:[%s1445 + $0x8] sm:$0xff]
      %v1448 = vld [vmem:[%s1445 + $0x18] sm:$0xff]
      %v1449 = vld [vmem:[%s1445 + $0x20] sm:$0xff]
      %v1450 = vld [vmem:[%s1445 + $0x30] sm:$0xff]
      %v1451 = vld [vmem:[%s1445 + $0x38] sm:$0xff]
      %v1452 = vld [vmem:[%s1445 + $0x48] sm:$0xff]
      %v1453 = vld [vmem:[%s1445 + $0x50] sm:$0xff]
      %v1454 = vld [vmem:[%s1445 + $0x60] sm:$0xff]
      %v1455 = vld [vmem:[%s1445 + $0x68] sm:$0xff]
      %v1456 = vld [vmem:[%s1445 + $0x78] sm:$0xff]
      %v1457 = vld [vmem:[%s1445 + $0x80] sm:$0xff]
      %v1458 = vld [vmem:[%s1445 + $0x90] sm:$0xff]
      %v1459 = vld [vmem:[%s1445 + $0x98] sm:$0xff]
      %v1460 = vld [vmem:[%s1445 + $0xa8] sm:$0xff]
      %v1461 = vld [vmem:[%s1445 + $0xb0] sm:$0xff]
      %v1462 = vld [vmem:[%s1445 + $0xc0] sm:$0xff]
      %v1463 = vld [vmem:[%s1445 + $0xc8] sm:$0xff]
      %v1464 = vld [vmem:[%s1445 + $0xd8] sm:$0xff]
      %v1465 = vld [vmem:[%s1445 + $0xe0] sm:$0xff]
      %v1466 = vld [vmem:[%s1445 + $0xf0] sm:$0xff]
      %v1467 = vld [vmem:[%s1445 + $0xf8] sm:$0xff]
      %v1468 = vld [vmem:[%s1445 + $0x108] sm:$0xff]
      %v1469 = vld [vmem:[%s1445 + $0x110] sm:$0xff]
      %v1470 = vld [vmem:[%s1445 + $0x120] sm:$0xff]
      %v1471 = vld [vmem:[%s1445 + $0x128] sm:$0xff]
      %v1472 = vld [vmem:[%s1445 + $0x138] sm:$0xff]
      %v1473 = vld [vmem:[%s1445 + $0x140] sm:$0xff]
      %v1474 = vld [vmem:[%s1445 + $0x150] sm:$0xff]
      %v1475 = vld [vmem:[%s1445 + $0x158] sm:$0xff]
      %v1476 = vld [vmem:[%s1445 + $0x168] sm:$0xff]
      %v1477 = vld [vmem:[%s1445 + $0x170] sm:$0xff]
      %1510 = vrot.lane.b32.xlu0 %v1446, 24
      %v1511 = vpop.permute.xlu0 %1510
      %1512 = vrot.lane.b32.xlu0 %v1447, 24
      %v1513 = vpop.permute.xlu0 %1512
      %1514 = vrot.lane.b32.xlu0 %v1448, 24
      %v1515 = vpop.permute.xlu0 %1514
      %1516 = vrot.lane.b32.xlu0 %v1449, 24
      %v1517 = vpop.permute.xlu0 %1516
      %1518 = vrot.lane.b32.xlu0 %v1450, 24
      %v1519 = vpop.permute.xlu0 %1518
      %1520 = vrot.lane.b32.xlu0 %v1451, 24
      %v1521 = vpop.permute.xlu0 %1520
      %1522 = vrot.lane.b32.xlu0 %v1452, 24
      %v1523 = vpop.permute.xlu0 %1522
      %1524 = vrot.lane.b32.xlu0 %v1453, 24
      %v1525 = vpop.permute.xlu0 %1524
      %1526 = vrot.lane.b32.xlu0 %v1454, 24
      %v1527 = vpop.permute.xlu0 %1526
      %1528 = vrot.lane.b32.xlu0 %v1455, 24
      %v1529 = vpop.permute.xlu0 %1528
      %1530 = vrot.lane.b32.xlu0 %v1456, 24
      %v1531 = vpop.permute.xlu0 %1530
      %1532 = vrot.lane.b32.xlu0 %v1457, 24
      %v1533 = vpop.permute.xlu0 %1532
      %1534 = vrot.lane.b32.xlu0 %v1458, 24
      %v1535 = vpop.permute.xlu0 %1534
      %1536 = vrot.lane.b32.xlu0 %v1459, 24
      %v1537 = vpop.permute.xlu0 %1536
      %1538 = vrot.lane.b32.xlu0 %v1460, 24
      %v1539 = vpop.permute.xlu0 %1538
      %1540 = vrot.lane.b32.xlu0 %v1461, 24
      %v1541 = vpop.permute.xlu0 %1540
      %1542 = vrot.lane.b32.xlu0 %v1462, 24
      %v1543 = vpop.permute.xlu0 %1542
      %1544 = vrot.lane.b32.xlu0 %v1463, 24
      %v1545 = vpop.permute.xlu0 %1544
      %1546 = vrot.lane.b32.xlu0 %v1464, 24
      %v1547 = vpop.permute.xlu0 %1546
      %1548 = vrot.lane.b32.xlu0 %v1465, 24
      %v1549 = vpop.permute.xlu0 %1548
      %1550 = vrot.lane.b32.xlu0 %v1466, 24
      %v1551 = vpop.permute.xlu0 %1550
      %1552 = vrot.lane.b32.xlu0 %v1467, 24
      %v1553 = vpop.permute.xlu0 %1552
      %1554 = vrot.lane.b32.xlu0 %v1468, 24
      %v1555 = vpop.permute.xlu0 %1554
      %1556 = vrot.lane.b32.xlu0 %v1469, 24
      %v1557 = vpop.permute.xlu0 %1556
      %1558 = vrot.lane.b32.xlu0 %v1470, 24
      %v1559 = vpop.permute.xlu0 %1558
      %1560 = vrot.lane.b32.xlu0 %v1471, 24
      %v1561 = vpop.permute.xlu0 %1560
      %1562 = vrot.lane.b32.xlu0 %v1472, 24
      %v1563 = vpop.permute.xlu0 %1562
      %1564 = vrot.lane.b32.xlu0 %v1473, 24
      %v1565 = vpop.permute.xlu0 %1564
      %1566 = vrot.lane.b32.xlu0 %v1474, 24
      %v1567 = vpop.permute.xlu0 %1566
      %1568 = vrot.lane.b32.xlu0 %v1475, 24
      %v1569 = vpop.permute.xlu0 %1568
      %1570 = vrot.lane.b32.xlu0 %v1476, 24
      %v1571 = vpop.permute.xlu0 %1570
      %1572 = vrot.lane.b32.xlu0 %v1477, 24
      %v1573 = vpop.permute.xlu0 %1572
      %vm1606 = vcmask 228544
      %1607 = vst.msk [vmem:[#allocation4] sm:$0xff] %vm1606, %v1511
      %1608 = vst.msk [vmem:[#allocation4 + $0x8] sm:$0xff] %vm1606, %v1513
      %1609 = vst.msk [vmem:[#allocation4 + $0x10] sm:$0xff] %vm1606, %v1515
      %1610 = vst.msk [vmem:[#allocation4 + $0x18] sm:$0xff] %vm1606, %v1517
      %1611 = vst.msk [vmem:[#allocation4 + $0x20] sm:$0xff] %vm1606, %v1519
      %1612 = vst.msk [vmem:[#allocation4 + $0x28] sm:$0xff] %vm1606, %v1521
      %1613 = vst.msk [vmem:[#allocation4 + $0x30] sm:$0xff] %vm1606, %v1523
      %1614 = vst.msk [vmem:[#allocation4 + $0x38] sm:$0xff] %vm1606, %v1525
      %1615 = vst.msk [vmem:[#allocation4 + $0x40] sm:$0xff] %vm1606, %v1527
      %1616 = vst.msk [vmem:[#allocation4 + $0x48] sm:$0xff] %vm1606, %v1529
      %1617 = vst.msk [vmem:[#allocation4 + $0x50] sm:$0xff] %vm1606, %v1531
      %1618 = vst.msk [vmem:[#allocation4 + $0x58] sm:$0xff] %vm1606, %v1533
      %1619 = vst.msk [vmem:[#allocation4 + $0x60] sm:$0xff] %vm1606, %v1535
      %1620 = vst.msk [vmem:[#allocation4 + $0x68] sm:$0xff] %vm1606, %v1537
      %1621 = vst.msk [vmem:[#allocation4 + $0x70] sm:$0xff] %vm1606, %v1539
      %1622 = vst.msk [vmem:[#allocation4 + $0x78] sm:$0xff] %vm1606, %v1541
      %1623 = vst.msk [vmem:[#allocation4 + $0x80] sm:$0xff] %vm1606, %v1543
      %1624 = vst.msk [vmem:[#allocation4 + $0x88] sm:$0xff] %vm1606, %v1545
      %1625 = vst.msk [vmem:[#allocation4 + $0x90] sm:$0xff] %vm1606, %v1547
      %1626 = vst.msk [vmem:[#allocation4 + $0x98] sm:$0xff] %vm1606, %v1549
      %1627 = vst.msk [vmem:[#allocation4 + $0xa0] sm:$0xff] %vm1606, %v1551
      %1628 = vst.msk [vmem:[#allocation4 + $0xa8] sm:$0xff] %vm1606, %v1553
      %1629 = vst.msk [vmem:[#allocation4 + $0xb0] sm:$0xff] %vm1606, %v1555
      %1630 = vst.msk [vmem:[#allocation4 + $0xb8] sm:$0xff] %vm1606, %v1557
      %1631 = vst.msk [vmem:[#allocation4 + $0xc0] sm:$0xff] %vm1606, %v1559
      %1632 = vst.msk [vmem:[#allocation4 + $0xc8] sm:$0xff] %vm1606, %v1561
      %1633 = vst.msk [vmem:[#allocation4 + $0xd0] sm:$0xff] %vm1606, %v1563
      %1634 = vst.msk [vmem:[#allocation4 + $0xd8] sm:$0xff] %vm1606, %v1565
      %1635 = vst.msk [vmem:[#allocation4 + $0xe0] sm:$0xff] %vm1606, %v1567
      %1636 = vst.msk [vmem:[#allocation4 + $0xe8] sm:$0xff] %vm1606, %v1569
      %1637 = vst.msk [vmem:[#allocation4 + $0xf0] sm:$0xff] %vm1606, %v1571
      %1638 = vst.msk [vmem:[#allocation4 + $0xf8] sm:$0xff] %vm1606, %v1573
      %v1639 = vld [vmem:[%s1445 + $0x1] sm:$0xff]
      %v1640 = vld [vmem:[%s1445 + $0x9] sm:$0xff]
      %v1641 = vld [vmem:[%s1445 + $0x19] sm:$0xff]
      %v1642 = vld [vmem:[%s1445 + $0x21] sm:$0xff]
      %v1643 = vld [vmem:[%s1445 + $0x31] sm:$0xff]
      %v1644 = vld [vmem:[%s1445 + $0x39] sm:$0xff]
      %v1645 = vld [vmem:[%s1445 + $0x49] sm:$0xff]
      %v1646 = vld [vmem:[%s1445 + $0x51] sm:$0xff]
      %v1647 = vld [vmem:[%s1445 + $0x61] sm:$0xff]
      %v1648 = vld [vmem:[%s1445 + $0x69] sm:$0xff]
      %v1649 = vld [vmem:[%s1445 + $0x79] sm:$0xff]
      %v1650 = vld [vmem:[%s1445 + $0x81] sm:$0xff]
      %v1651 = vld [vmem:[%s1445 + $0x91] sm:$0xff]
      %v1652 = vld [vmem:[%s1445 + $0x99] sm:$0xff]
      %v1653 = vld [vmem:[%s1445 + $0xa9] sm:$0xff]
      %v1654 = vld [vmem:[%s1445 + $0xb1] sm:$0xff]
      %v1655 = vld [vmem:[%s1445 + $0xc1] sm:$0xff]
      %v1656 = vld [vmem:[%s1445 + $0xc9] sm:$0xff]
      %v1657 = vld [vmem:[%s1445 + $0xd9] sm:$0xff]
      %v1658 = vld [vmem:[%s1445 + $0xe1] sm:$0xff]
      %v1659 = vld [vmem:[%s1445 + $0xf1] sm:$0xff]
      %v1660 = vld [vmem:[%s1445 + $0xf9] sm:$0xff]
      %v1661 = vld [vmem:[%s1445 + $0x109] sm:$0xff]
      %v1662 = vld [vmem:[%s1445 + $0x111] sm:$0xff]
      %v1663 = vld [vmem:[%s1445 + $0x121] sm:$0xff]
      %v1664 = vld [vmem:[%s1445 + $0x129] sm:$0xff]
      %v1665 = vld [vmem:[%s1445 + $0x139] sm:$0xff]
      %v1666 = vld [vmem:[%s1445 + $0x141] sm:$0xff]
      %v1667 = vld [vmem:[%s1445 + $0x151] sm:$0xff]
      %v1668 = vld [vmem:[%s1445 + $0x159] sm:$0xff]
      %v1669 = vld [vmem:[%s1445 + $0x169] sm:$0xff]
      %v1670 = vld [vmem:[%s1445 + $0x171] sm:$0xff]
      %1703 = vrot.lane.b32.xlu0 %v1639, 28
      %v1704 = vpop.permute.xlu0 %1703
      %1705 = vrot.lane.b32.xlu0 %v1640, 28
      %v1706 = vpop.permute.xlu0 %1705
      %1707 = vrot.lane.b32.xlu0 %v1641, 28
      %v1708 = vpop.permute.xlu0 %1707
      %1709 = vrot.lane.b32.xlu0 %v1642, 28
      %v1710 = vpop.permute.xlu0 %1709
      %1711 = vrot.lane.b32.xlu0 %v1643, 28
      %v1712 = vpop.permute.xlu0 %1711
      %1713 = vrot.lane.b32.xlu0 %v1644, 28
      %v1714 = vpop.permute.xlu0 %1713
      %1715 = vrot.lane.b32.xlu0 %v1645, 28
      %v1716 = vpop.permute.xlu0 %1715
      %1717 = vrot.lane.b32.xlu0 %v1646, 28
      %v1718 = vpop.permute.xlu0 %1717
      %1719 = vrot.lane.b32.xlu0 %v1647, 28
      %v1720 = vpop.permute.xlu0 %1719
      %1721 = vrot.lane.b32.xlu0 %v1648, 28
      %v1722 = vpop.permute.xlu0 %1721
      %1723 = vrot.lane.b32.xlu0 %v1649, 28
      %v1724 = vpop.permute.xlu0 %1723
      %1725 = vrot.lane.b32.xlu0 %v1650, 28
      %v1726 = vpop.permute.xlu0 %1725
      %1727 = vrot.lane.b32.xlu0 %v1651, 28
      %v1728 = vpop.permute.xlu0 %1727
      %1729 = vrot.lane.b32.xlu0 %v1652, 28
      %v1730 = vpop.permute.xlu0 %1729
      %1731 = vrot.lane.b32.xlu0 %v1653, 28
      %v1732 = vpop.permute.xlu0 %1731
      %1733 = vrot.lane.b32.xlu0 %v1654, 28
      %v1734 = vpop.permute.xlu0 %1733
      %1735 = vrot.lane.b32.xlu0 %v1655, 28
      %v1736 = vpop.permute.xlu0 %1735
      %1737 = vrot.lane.b32.xlu0 %v1656, 28
      %v1738 = vpop.permute.xlu0 %1737
      %1739 = vrot.lane.b32.xlu0 %v1657, 28
      %v1740 = vpop.permute.xlu0 %1739
      %1741 = vrot.lane.b32.xlu0 %v1658, 28
      %v1742 = vpop.permute.xlu0 %1741
      %1743 = vrot.lane.b32.xlu0 %v1659, 28
      %v1744 = vpop.permute.xlu0 %1743
      %1745 = vrot.lane.b32.xlu0 %v1660, 28
      %v1746 = vpop.permute.xlu0 %1745
      %1747 = vrot.lane.b32.xlu0 %v1661, 28
      %v1748 = vpop.permute.xlu0 %1747
      %1749 = vrot.lane.b32.xlu0 %v1662, 28
      %v1750 = vpop.permute.xlu0 %1749
      %1751 = vrot.lane.b32.xlu0 %v1663, 28
      %v1752 = vpop.permute.xlu0 %1751
      %1753 = vrot.lane.b32.xlu0 %v1664, 28
      %v1754 = vpop.permute.xlu0 %1753
      %1755 = vrot.lane.b32.xlu0 %v1665, 28
      %v1756 = vpop.permute.xlu0 %1755
      %1757 = vrot.lane.b32.xlu0 %v1666, 28
      %v1758 = vpop.permute.xlu0 %1757
      %1759 = vrot.lane.b32.xlu0 %v1667, 28
      %v1760 = vpop.permute.xlu0 %1759
      %1761 = vrot.lane.b32.xlu0 %v1668, 28
      %v1762 = vpop.permute.xlu0 %1761
      %1763 = vrot.lane.b32.xlu0 %v1669, 28
      %v1764 = vpop.permute.xlu0 %1763
      %1765 = vrot.lane.b32.xlu0 %v1670, 28
      %v1766 = vpop.permute.xlu0 %1765
      %vm1799 = vcmask 261344
      %1800 = vst.msk [vmem:[#allocation4] sm:$0xff] %vm1799, %v1704
      %1801 = vst.msk [vmem:[#allocation4 + $0x8] sm:$0xff] %vm1799, %v1706
      %1802 = vst.msk [vmem:[#allocation4 + $0x10] sm:$0xff] %vm1799, %v1708
      %1803 = vst.msk [vmem:[#allocation4 + $0x18] sm:$0xff] %vm1799, %v1710
      %1804 = vst.msk [vmem:[#allocation4 + $0x20] sm:$0xff] %vm1799, %v1712
      %1805 = vst.msk [vmem:[#allocation4 + $0x28] sm:$0xff] %vm1799, %v1714
      %1806 = vst.msk [vmem:[#allocation4 + $0x30] sm:$0xff] %vm1799, %v1716
      %1807 = vst.msk [vmem:[#allocation4 + $0x38] sm:$0xff] %vm1799, %v1718
      %1808 = vst.msk [vmem:[#allocation4 + $0x40] sm:$0xff] %vm1799, %v1720
      %1809 = vst.msk [vmem:[#allocation4 + $0x48] sm:$0xff] %vm1799, %v1722
      %1810 = vst.msk [vmem:[#allocation4 + $0x50] sm:$0xff] %vm1799, %v1724
      %1811 = vst.msk [vmem:[#allocation4 + $0x58] sm:$0xff] %vm1799, %v1726
      %1812 = vst.msk [vmem:[#allocation4 + $0x60] sm:$0xff] %vm1799, %v1728
      %1813 = vst.msk [vmem:[#allocation4 + $0x68] sm:$0xff] %vm1799, %v1730
      %1814 = vst.msk [vmem:[#allocation4 + $0x70] sm:$0xff] %vm1799, %v1732
      %1815 = vst.msk [vmem:[#allocation4 + $0x78] sm:$0xff] %vm1799, %v1734
      %1816 = vst.msk [vmem:[#allocation4 + $0x80] sm:$0xff] %vm1799, %v1736
      %1817 = vst.msk [vmem:[#allocation4 + $0x88] sm:$0xff] %vm1799, %v1738
      %1818 = vst.msk [vmem:[#allocation4 + $0x90] sm:$0xff] %vm1799, %v1740
      %1819 = vst.msk [vmem:[#allocation4 + $0x98] sm:$0xff] %vm1799, %v1742
      %1820 = vst.msk [vmem:[#allocation4 + $0xa0] sm:$0xff] %vm1799, %v1744
      %1821 = vst.msk [vmem:[#allocation4 + $0xa8] sm:$0xff] %vm1799, %v1746
      %1822 = vst.msk [vmem:[#allocation4 + $0xb0] sm:$0xff] %vm1799, %v1748
      %1823 = vst.msk [vmem:[#allocation4 + $0xb8] sm:$0xff] %vm1799, %v1750
      %1824 = vst.msk [vmem:[#allocation4 + $0xc0] sm:$0xff] %vm1799, %v1752
      %1825 = vst.msk [vmem:[#allocation4 + $0xc8] sm:$0xff] %vm1799, %v1754
      %1826 = vst.msk [vmem:[#allocation4 + $0xd0] sm:$0xff] %vm1799, %v1756
      %1827 = vst.msk [vmem:[#allocation4 + $0xd8] sm:$0xff] %vm1799, %v1758
      %1828 = vst.msk [vmem:[#allocation4 + $0xe0] sm:$0xff] %vm1799, %v1760
      %1829 = vst.msk [vmem:[#allocation4 + $0xe8] sm:$0xff] %vm1799, %v1762
      %1830 = vst.msk [vmem:[#allocation4 + $0xf0] sm:$0xff] %vm1799, %v1764
      %1831 = vst.msk [vmem:[#allocation4 + $0xf8] sm:$0xff] %vm1799, %v1766
      %v1832 = vld [vmem:[%s1445 + $0x2] sm:$0xff]
      %v1833 = vld [vmem:[%s1445 + $0xa] sm:$0xff]
      %v1834 = vld [vmem:[%s1445 + $0x1a] sm:$0xff]
      %v1835 = vld [vmem:[%s1445 + $0x22] sm:$0xff]
      %v1836 = vld [vmem:[%s1445 + $0x32] sm:$0xff]
      %v1837 = vld [vmem:[%s1445 + $0x3a] sm:$0xff]
      %v1838 = vld [vmem:[%s1445 + $0x4a] sm:$0xff]
      %v1839 = vld [vmem:[%s1445 + $0x52] sm:$0xff]
      %v1840 = vld [vmem:[%s1445 + $0x62] sm:$0xff]
      %v1841 = vld [vmem:[%s1445 + $0x6a] sm:$0xff]
      %v1842 = vld [vmem:[%s1445 + $0x7a] sm:$0xff]
      %v1843 = vld [vmem:[%s1445 + $0x82] sm:$0xff]
      %v1844 = vld [vmem:[%s1445 + $0x92] sm:$0xff]
      %v1845 = vld [vmem:[%s1445 + $0x9a] sm:$0xff]
      %v1846 = vld [vmem:[%s1445 + $0xaa] sm:$0xff]
      %v1847 = vld [vmem:[%s1445 + $0xb2] sm:$0xff]
      %v1848 = vld [vmem:[%s1445 + $0xc2] sm:$0xff]
      %v1849 = vld [vmem:[%s1445 + $0xca] sm:$0xff]
      %v1850 = vld [vmem:[%s1445 + $0xda] sm:$0xff]
      %v1851 = vld [vmem:[%s1445 + $0xe2] sm:$0xff]
      %v1852 = vld [vmem:[%s1445 + $0xf2] sm:$0xff]
      %v1853 = vld [vmem:[%s1445 + $0xfa] sm:$0xff]
      %v1854 = vld [vmem:[%s1445 + $0x10a] sm:$0xff]
      %v1855 = vld [vmem:[%s1445 + $0x112] sm:$0xff]
      %v1856 = vld [vmem:[%s1445 + $0x122] sm:$0xff]
      %v1857 = vld [vmem:[%s1445 + $0x12a] sm:$0xff]
      %v1858 = vld [vmem:[%s1445 + $0x13a] sm:$0xff]
      %v1859 = vld [vmem:[%s1445 + $0x142] sm:$0xff]
      %v1860 = vld [vmem:[%s1445 + $0x152] sm:$0xff]
      %v1861 = vld [vmem:[%s1445 + $0x15a] sm:$0xff]
      %v1862 = vld [vmem:[%s1445 + $0x16a] sm:$0xff]
      %v1863 = vld [vmem:[%s1445 + $0x172] sm:$0xff]
      %1896 = vrot.lane.b32.xlu0 %v1832, 32
      %v1897 = vpop.permute.xlu0 %1896
      %1898 = vrot.lane.b32.xlu0 %v1833, 32
      %v1899 = vpop.permute.xlu0 %1898
      %1900 = vrot.lane.b32.xlu0 %v1834, 32
      %v1901 = vpop.permute.xlu0 %1900
      %1902 = vrot.lane.b32.xlu0 %v1835, 32
      %v1903 = vpop.permute.xlu0 %1902
      %1904 = vrot.lane.b32.xlu0 %v1836, 32
      %v1905 = vpop.permute.xlu0 %1904
      %1906 = vrot.lane.b32.xlu0 %v1837, 32
      %v1907 = vpop.permute.xlu0 %1906
      %1908 = vrot.lane.b32.xlu0 %v1838, 32
      %v1909 = vpop.permute.xlu0 %1908
      %1910 = vrot.lane.b32.xlu0 %v1839, 32
      %v1911 = vpop.permute.xlu0 %1910
      %1912 = vrot.lane.b32.xlu0 %v1840, 32
      %v1913 = vpop.permute.xlu0 %1912
      %1914 = vrot.lane.b32.xlu0 %v1841, 32
      %v1915 = vpop.permute.xlu0 %1914
      %1916 = vrot.lane.b32.xlu0 %v1842, 32
      %v1917 = vpop.permute.xlu0 %1916
      %1918 = vrot.lane.b32.xlu0 %v1843, 32
      %v1919 = vpop.permute.xlu0 %1918
      %1920 = vrot.lane.b32.xlu0 %v1844, 32
      %v1921 = vpop.permute.xlu0 %1920
      %1922 = vrot.lane.b32.xlu0 %v1845, 32
      %v1923 = vpop.permute.xlu0 %1922
      %1924 = vrot.lane.b32.xlu0 %v1846, 32
      %v1925 = vpop.permute.xlu0 %1924
      %1926 = vrot.lane.b32.xlu0 %v1847, 32
      %v1927 = vpop.permute.xlu0 %1926
      %1928 = vrot.lane.b32.xlu0 %v1848, 32
      %v1929 = vpop.permute.xlu0 %1928
      %1930 = vrot.lane.b32.xlu0 %v1849, 32
      %v1931 = vpop.permute.xlu0 %1930
      %1932 = vrot.lane.b32.xlu0 %v1850, 32
      %v1933 = vpop.permute.xlu0 %1932
      %1934 = vrot.lane.b32.xlu0 %v1851, 32
      %v1935 = vpop.permute.xlu0 %1934
      %1936 = vrot.lane.b32.xlu0 %v1852, 32
      %v1937 = vpop.permute.xlu0 %1936
      %1938 = vrot.lane.b32.xlu0 %v1853, 32
      %v1939 = vpop.permute.xlu0 %1938
      %1940 = vrot.lane.b32.xlu0 %v1854, 32
      %v1941 = vpop.permute.xlu0 %1940
      %1942 = vrot.lane.b32.xlu0 %v1855, 32
      %v1943 = vpop.permute.xlu0 %1942
      %1944 = vrot.lane.b32.xlu0 %v1856, 32
      %v1945 = vpop.permute.xlu0 %1944
      %1946 = vrot.lane.b32.xlu0 %v1857, 32
      %v1947 = vpop.permute.xlu0 %1946
      %1948 = vrot.lane.b32.xlu0 %v1858, 32
      %v1949 = vpop.permute.xlu0 %1948
      %1950 = vrot.lane.b32.xlu0 %v1859, 32
      %v1951 = vpop.permute.xlu0 %1950
      %1952 = vrot.lane.b32.xlu0 %v1860, 32
      %v1953 = vpop.permute.xlu0 %1952
      %1954 = vrot.lane.b32.xlu0 %v1861, 32
      %v1955 = vpop.permute.xlu0 %1954
      %1956 = vrot.lane.b32.xlu0 %v1862, 32
      %v1957 = vpop.permute.xlu0 %1956
      %1958 = vrot.lane.b32.xlu0 %v1863, 32
      %v1959 = vpop.permute.xlu0 %1958
      %vm1992 = vcmask 294144
      %1993 = vst.msk [vmem:[#allocation4] sm:$0xff] %vm1992, %v1897
      %1994 = vst.msk [vmem:[#allocation4 + $0x8] sm:$0xff] %vm1992, %v1899
      %1995 = vst.msk [vmem:[#allocation4 + $0x10] sm:$0xff] %vm1992, %v1901
      %1996 = vst.msk [vmem:[#allocation4 + $0x18] sm:$0xff] %vm1992, %v1903
      %1997 = vst.msk [vmem:[#allocation4 + $0x20] sm:$0xff] %vm1992, %v1905
      %1998 = vst.msk [vmem:[#allocation4 + $0x28] sm:$0xff] %vm1992, %v1907
      %1999 = vst.msk [vmem:[#allocation4 + $0x30] sm:$0xff] %vm1992, %v1909
      %2000 = vst.msk [vmem:[#allocation4 + $0x38] sm:$0xff] %vm1992, %v1911
      %2001 = vst.msk [vmem:[#allocation4 + $0x40] sm:$0xff] %vm1992, %v1913
      %2002 = vst.msk [vmem:[#allocation4 + $0x48] sm:$0xff] %vm1992, %v1915
      %2003 = vst.msk [vmem:[#allocation4 + $0x50] sm:$0xff] %vm1992, %v1917
      %2004 = vst.msk [vmem:[#allocation4 + $0x58] sm:$0xff] %vm1992, %v1919
      %2005 = vst.msk [vmem:[#allocation4 + $0x60] sm:$0xff] %vm1992, %v1921
      %2006 = vst.msk [vmem:[#allocation4 + $0x68] sm:$0xff] %vm1992, %v1923
      %2007 = vst.msk [vmem:[#allocation4 + $0x70] sm:$0xff] %vm1992, %v1925
      %2008 = vst.msk [vmem:[#allocation4 + $0x78] sm:$0xff] %vm1992, %v1927
      %2009 = vst.msk [vmem:[#allocation4 + $0x80] sm:$0xff] %vm1992, %v1929
      %2010 = vst.msk [vmem:[#allocation4 + $0x88] sm:$0xff] %vm1992, %v1931
      %2011 = vst.msk [vmem:[#allocation4 + $0x90] sm:$0xff] %vm1992, %v1933
      %2012 = vst.msk [vmem:[#allocation4 + $0x98] sm:$0xff] %vm1992, %v1935
      %2013 = vst.msk [vmem:[#allocation4 + $0xa0] sm:$0xff] %vm1992, %v1937
      %2014 = vst.msk [vmem:[#allocation4 + $0xa8] sm:$0xff] %vm1992, %v1939
      %2015 = vst.msk [vmem:[#allocation4 + $0xb0] sm:$0xff] %vm1992, %v1941
      %2016 = vst.msk [vmem:[#allocation4 + $0xb8] sm:$0xff] %vm1992, %v1943
      %2017 = vst.msk [vmem:[#allocation4 + $0xc0] sm:$0xff] %vm1992, %v1945
      %2018 = vst.msk [vmem:[#allocation4 + $0xc8] sm:$0xff] %vm1992, %v1947
      %2019 = vst.msk [vmem:[#allocation4 + $0xd0] sm:$0xff] %vm1992, %v1949
      %2020 = vst.msk [vmem:[#allocation4 + $0xd8] sm:$0xff] %vm1992, %v1951
      %2021 = vst.msk [vmem:[#allocation4 + $0xe0] sm:$0xff] %vm1992, %v1953
      %2022 = vst.msk [vmem:[#allocation4 + $0xe8] sm:$0xff] %vm1992, %v1955
      %2023 = vst.msk [vmem:[#allocation4 + $0xf0] sm:$0xff] %vm1992, %v1957
      %2024 = vst.msk [vmem:[#allocation4 + $0xf8] sm:$0xff] %vm1992, %v1959
      %v2025 = vld [vmem:[#allocation4] sm:$0xff]
      %v2026 = vld [vmem:[#allocation4 + $0x8] sm:$0xff]
      %v2027 = vld [vmem:[#allocation4 + $0x10] sm:$0xff]
      %v2028 = vld [vmem:[#allocation4 + $0x18] sm:$0xff]
      %v2029 = vld [vmem:[#allocation4 + $0x20] sm:$0xff]
      %v2030 = vld [vmem:[#allocation4 + $0x28] sm:$0xff]
      %v2031 = vld [vmem:[#allocation4 + $0x30] sm:$0xff]
      %v2032 = vld [vmem:[#allocation4 + $0x38] sm:$0xff]
      %v2033 = vld [vmem:[#allocation4 + $0x40] sm:$0xff]
      %v2034 = vld [vmem:[#allocation4 + $0x48] sm:$0xff]
      %v2035 = vld [vmem:[#allocation4 + $0x50] sm:$0xff]
      %v2036 = vld [vmem:[#allocation4 + $0x58] sm:$0xff]
      %v2037 = vld [vmem:[#allocation4 + $0x60] sm:$0xff]
      %v2038 = vld [vmem:[#allocation4 + $0x68] sm:$0xff]
      %v2039 = vld [vmem:[#allocation4 + $0x70] sm:$0xff]
      %v2040 = vld [vmem:[#allocation4 + $0x78] sm:$0xff]
      %v2041 = vld [vmem:[#allocation4 + $0x80] sm:$0xff]
      %v2042 = vld [vmem:[#allocation4 + $0x88] sm:$0xff]
      %v2043 = vld [vmem:[#allocation4 + $0x90] sm:$0xff]
      %v2044 = vld [vmem:[#allocation4 + $0x98] sm:$0xff]
      %v2045 = vld [vmem:[#allocation4 + $0xa0] sm:$0xff]
      %v2046 = vld [vmem:[#allocation4 + $0xa8] sm:$0xff]
      %v2047 = vld [vmem:[#allocation4 + $0xb0] sm:$0xff]
      %v2048 = vld [vmem:[#allocation4 + $0xb8] sm:$0xff]
      %v2049 = vld [vmem:[#allocation4 + $0xc0] sm:$0xff]
      %v2050 = vld [vmem:[#allocation4 + $0xc8] sm:$0xff]
      %v2051 = vld [vmem:[#allocation4 + $0xd0] sm:$0xff]
      %v2052 = vld [vmem:[#allocation4 + $0xd8] sm:$0xff]
      %v2053 = vld [vmem:[#allocation4 + $0xe0] sm:$0xff]
      %v2054 = vld [vmem:[#allocation4 + $0xe8] sm:$0xff]
      %v2055 = vld [vmem:[#allocation4 + $0xf0] sm:$0xff]
      %v2056 = vld [vmem:[#allocation4 + $0xf8] sm:$0xff]
      %v2057 = vld [vmem:[%s1] sm:$0xff]
      %v2058 = vld [vmem:[%s1 + $0x8] sm:$0xff]
      %v2059 = vld [vmem:[%s1 + $0x10] sm:$0xff]
      %v2060 = vld [vmem:[%s1 + $0x18] sm:$0xff]
      %v2061 = vld [vmem:[%s1 + $0x20] sm:$0x1f]
      %vm2062 = vcmask 302080
      %v2064 = vsel %vm2062, %v2025, 0
      %v2067 = vsel %vm2062, %v2026, 0
      %v2070 = vsel %vm2062, %v2027, 0
      %v2073 = vsel %vm2062, %v2028, 0
      %v2076 = vsel %vm2062, %v2029, 0
      %v2079 = vsel %vm2062, %v2030, 0
      %v2082 = vsel %vm2062, %v2031, 0
      %v2085 = vsel %vm2062, %v2032, 0
      %v2088 = vsel %vm2062, %v2033, 0
      %v2091 = vsel %vm2062, %v2034, 0
      %v2094 = vsel %vm2062, %v2035, 0
      %v2097 = vsel %vm2062, %v2036, 0
      %v2100 = vsel %vm2062, %v2037, 0
      %v2103 = vsel %vm2062, %v2038, 0
      %v2106 = vsel %vm2062, %v2039, 0
      %v2109 = vsel %vm2062, %v2040, 0
      %v2112 = vsel %vm2062, %v2041, 0
      %v2115 = vsel %vm2062, %v2042, 0
      %v2118 = vsel %vm2062, %v2043, 0
      %v2121 = vsel %vm2062, %v2044, 0
      %v2124 = vsel %vm2062, %v2045, 0
      %v2127 = vsel %vm2062, %v2046, 0
      %v2130 = vsel %vm2062, %v2047, 0
      %v2133 = vsel %vm2062, %v2048, 0
      %v2136 = vsel %vm2062, %v2049, 0
      %v2139 = vsel %vm2062, %v2050, 0
      %v2142 = vsel %vm2062, %v2051, 0
      %v2145 = vsel %vm2062, %v2052, 0
      %v2148 = vsel %vm2062, %v2053, 0
      %v2151 = vsel %vm2062, %v2054, 0
      %v2154 = vsel %vm2062, %v2055, 0
      %v2157 = vsel %vm2062, %v2056, 0
      %vm2159 = vcmask 1044480
      %v2161 = vsel %vm2159, %v2061, 0
      %2163 = vmatprep.subr.mxu0 0.0
      %2164 = vmatpush1.msra.mxu0 0.0
      %2165 = vmatprep.subr.mxu0 0.0
      %2166 = vmatpush1.msra.mxu0 0.0
      %2167 = vmatprep.subr.mxu0 0.0
      %2168 = vmatpush1.msra.mxu0 0.0
      %2169 = vmatprep.subr.mxu0 0.0
      %2170 = vmatpush1.msra.mxu0 0.0
      %2171 = vmatprep.subr.mxu0 0.0
      %2172 = vmatpush1.msra.mxu0 0.0
      %2173 = vmatprep.subr.mxu0 0.0
      %2174 = vmatpush1.msra.mxu0 0.0
      %2175 = vmatprep.subr.mxu0 0.0
      %2176 = vmatpush1.msra.mxu0 0.0
      %2177 = vmatprep.subr.mxu0 0.0
      %2178 = vmatpush1.msra.mxu0 0.0
      %2179 = vmatprep.subr.mxu0 0.0
      %2180 = vmatpush1.msra.mxu0 0.0
      %2181 = vmatprep.subr.mxu0 0.0
      %2182 = vmatpush1.msra.mxu0 0.0
      %2183 = vmatprep.subr.mxu0 0.0
      %2184 = vmatpush1.msra.mxu0 0.0
      %2185 = vmatprep.subr.mxu0 0.0
      %2186 = vmatpush1.msra.mxu0 %v2161
      %2187 = vmatprep.subr.mxu0 0.0
      %2188 = vmatpush1.msra.mxu0 %v2060
      %2189 = vmatprep.subr.mxu0 0.0
      %2190 = vmatpush1.msra.mxu0 %v2059
      %2191 = vmatprep.subr.mxu0 0.0
      %2192 = vmatpush1.msra.mxu0 %v2058
      %2193 = vmatprep.subr.mxu0 0.0
      %2194 = vmatpush1.msra.mxu0 %v2057
      %2195 = vmatprep.subr.mxu0 0.0
      %2196 = vmatpush2.msra.mxu0 0.0
      %2197 = vmatprep.subr.mxu0 0.0
      %2198 = vmatpush2.msra.mxu0 0.0
      %2199 = vmatprep.subr.mxu0 0.0
      %2200 = vmatpush2.msra.mxu0 0.0
      %2201 = vmatprep.subr.mxu0 0.0
      %2202 = vmatpush2.msra.mxu0 0.0
      %2203 = vmatprep.subr.mxu0 0.0
      %2204 = vmatpush2.msra.mxu0 0.0
      %2205 = vmatprep.subr.mxu0 0.0
      %2206 = vmatpush2.msra.mxu0 0.0
      %2207 = vmatprep.subr.mxu0 0.0
      %2208 = vmatpush2.msra.mxu0 0.0
      %2209 = vmatprep.subr.mxu0 0.0
      %2210 = vmatpush2.msra.mxu0 0.0
      %2211 = vmatprep.subr.mxu0 0.0
      %2212 = vmatpush2.msra.mxu0 0.0
      %2213 = vmatprep.subr.mxu0 0.0
      %2214 = vmatpush2.msra.mxu0 0.0
      %2215 = vmatprep.subr.mxu0 0.0
      %2216 = vmatpush2.msra.mxu0 0.0
      %2217 = vmatprep.subr.mxu0 0.0
      %2218 = vmatpush2.msra.mxu0 0.0
      %2219 = vmatprep.subr.mxu0 0.0
      %2220 = vmatpush2.msra.mxu0 0.0
      %2221 = vmatprep.subr.mxu0 0.0
      %2222 = vmatpush2.msra.mxu0 0.0
      %2223 = vmatprep.subr.mxu0 0.0
      %2224 = vmatpush2.msra.mxu0 0.0
      %2225 = vmatprep.subr.mxu0 0.0
      %2226 = vmatpush2.msra.mxu0 0.0
      %2227 = vmatprep.mubr.f32.mxu0 0.0
      %2228 = vmatmul.mubr.f32.gmra.mxu0 %v2064
      %v2229 = vpop.f32.mrf.mxu0
      %v2230 = vadd.f32 0.0, %v2229
      %v2231 = vpop.f32.mrf.mxu0
      %2232 = vmatprep.mubr.f32.mxu0 0.0
      %2233 = vmatmul.mubr.f32.gmra.mxu0 %v2067
      %v2234 = vpop.f32.mrf.mxu0
      %v2235 = vadd.f32 0.0, %v2234
      %v2236 = vpop.f32.mrf.mxu0
      %2237 = vmatprep.mubr.f32.mxu0 0.0
      %2238 = vmatmul.mubr.f32.gmra.mxu0 %v2070
      %v2239 = vpop.f32.mrf.mxu0
      %v2240 = vadd.f32 0.0, %v2239
      %v2241 = vpop.f32.mrf.mxu0
      %2242 = vmatprep.mubr.f32.mxu0 0.0
      %2243 = vmatmul.mubr.f32.gmra.mxu0 %v2073
      %v2244 = vpop.f32.mrf.mxu0
      %v2245 = vadd.f32 0.0, %v2244
      %v2246 = vpop.f32.mrf.mxu0
      %2247 = vmatprep.mubr.f32.mxu0 0.0
      %2248 = vmatmul.mubr.f32.gmra.mxu0 %v2076
      %v2249 = vpop.f32.mrf.mxu0
      %v2250 = vadd.f32 0.0, %v2249
      %v2251 = vpop.f32.mrf.mxu0
      %2252 = vmatprep.mubr.f32.mxu0 0.0
      %2253 = vmatmul.mubr.f32.gmra.mxu0 %v2079
      %v2254 = vpop.f32.mrf.mxu0
      %v2255 = vadd.f32 0.0, %v2254
      %v2256 = vpop.f32.mrf.mxu0
      %2257 = vmatprep.mubr.f32.mxu0 0.0
      %2258 = vmatmul.mubr.f32.gmra.mxu0 %v2082
      %v2259 = vpop.f32.mrf.mxu0
      %v2260 = vadd.f32 0.0, %v2259
      %v2261 = vpop.f32.mrf.mxu0
      %2262 = vmatprep.mubr.f32.mxu0 0.0
      %2263 = vmatmul.mubr.f32.gmra.mxu0 %v2085
      %v2264 = vpop.f32.mrf.mxu0
      %v2265 = vadd.f32 0.0, %v2264
      %v2266 = vpop.f32.mrf.mxu0
      %2267 = vmatprep.mubr.f32.mxu0 0.0
      %2268 = vmatmul.mubr.f32.gmra.mxu0 %v2088
      %v2269 = vpop.f32.mrf.mxu0
      %v2270 = vadd.f32 0.0, %v2269
      %v2271 = vpop.f32.mrf.mxu0
      %2272 = vmatprep.mubr.f32.mxu0 0.0
      %2273 = vmatmul.mubr.f32.gmra.mxu0 %v2091
      %v2274 = vpop.f32.mrf.mxu0
      %v2275 = vadd.f32 0.0, %v2274
      %v2276 = vpop.f32.mrf.mxu0
      %2277 = vmatprep.mubr.f32.mxu0 0.0
      %2278 = vmatmul.mubr.f32.gmra.mxu0 %v2094
      %v2279 = vpop.f32.mrf.mxu0
      %v2280 = vadd.f32 0.0, %v2279
      %v2281 = vpop.f32.mrf.mxu0
      %2282 = vmatprep.mubr.f32.mxu0 0.0
      %2283 = vmatmul.mubr.f32.gmra.mxu0 %v2097
      %v2284 = vpop.f32.mrf.mxu0
      %v2285 = vadd.f32 0.0, %v2284
      %v2286 = vpop.f32.mrf.mxu0
      %2287 = vmatprep.mubr.f32.mxu0 0.0
      %2288 = vmatmul.mubr.f32.gmra.mxu0 %v2100
      %v2289 = vpop.f32.mrf.mxu0
      %v2290 = vadd.f32 0.0, %v2289
      %v2291 = vpop.f32.mrf.mxu0
      %2292 = vmatprep.mubr.f32.mxu0 0.0
      %2293 = vmatmul.mubr.f32.gmra.mxu0 %v2103
      %v2294 = vpop.f32.mrf.mxu0
      %v2295 = vadd.f32 0.0, %v2294
      %v2296 = vpop.f32.mrf.mxu0
      %2297 = vmatprep.mubr.f32.mxu0 0.0
      %2298 = vmatmul.mubr.f32.gmra.mxu0 %v2106
      %v2299 = vpop.f32.mrf.mxu0
      %v2300 = vadd.f32 0.0, %v2299
      %v2301 = vpop.f32.mrf.mxu0
      %2302 = vmatprep.mubr.f32.mxu0 0.0
      %2303 = vmatmul.mubr.f32.gmra.mxu0 %v2109
      %v2304 = vpop.f32.mrf.mxu0
      %v2305 = vadd.f32 0.0, %v2304
      %v2306 = vpop.f32.mrf.mxu0
      %2307 = vmatprep.mubr.f32.mxu0 0.0
      %2308 = vmatmul.mubr.f32.gmra.mxu0 %v2112
      %v2309 = vpop.f32.mrf.mxu0
      %v2310 = vadd.f32 0.0, %v2309
      %v2311 = vpop.f32.mrf.mxu0
      %2312 = vmatprep.mubr.f32.mxu0 0.0
      %2313 = vmatmul.mubr.f32.gmra.mxu0 %v2115
      %v2314 = vpop.f32.mrf.mxu0
      %v2315 = vadd.f32 0.0, %v2314
      %v2316 = vpop.f32.mrf.mxu0
      %2317 = vmatprep.mubr.f32.mxu0 0.0
      %2318 = vmatmul.mubr.f32.gmra.mxu0 %v2118
      %v2319 = vpop.f32.mrf.mxu0
      %v2320 = vadd.f32 0.0, %v2319
      %v2321 = vpop.f32.mrf.mxu0
      %2322 = vmatprep.mubr.f32.mxu0 0.0
      %2323 = vmatmul.mubr.f32.gmra.mxu0 %v2121
      %v2324 = vpop.f32.mrf.mxu0
      %v2325 = vadd.f32 0.0, %v2324
      %v2326 = vpop.f32.mrf.mxu0
      %2327 = vmatprep.mubr.f32.mxu0 0.0
      %2328 = vmatmul.mubr.f32.gmra.mxu0 %v2124
      %v2329 = vpop.f32.mrf.mxu0
      %v2330 = vadd.f32 0.0, %v2329
      %v2331 = vpop.f32.mrf.mxu0
      %2332 = vmatprep.mubr.f32.mxu0 0.0
      %2333 = vmatmul.mubr.f32.gmra.mxu0 %v2127
      %v2334 = vpop.f32.mrf.mxu0
      %v2335 = vadd.f32 0.0, %v2334
      %v2336 = vpop.f32.mrf.mxu0
      %2337 = vmatprep.mubr.f32.mxu0 0.0
      %2338 = vmatmul.mubr.f32.gmra.mxu0 %v2130
      %v2339 = vpop.f32.mrf.mxu0
      %v2340 = vadd.f32 0.0, %v2339
      %v2341 = vpop.f32.mrf.mxu0
      %2342 = vmatprep.mubr.f32.mxu0 0.0
      %2343 = vmatmul.mubr.f32.gmra.mxu0 %v2133
      %v2344 = vpop.f32.mrf.mxu0
      %v2345 = vadd.f32 0.0, %v2344
      %v2346 = vpop.f32.mrf.mxu0
      %2347 = vmatprep.mubr.f32.mxu0 0.0
      %2348 = vmatmul.mubr.f32.gmra.mxu0 %v2136
      %v2349 = vpop.f32.mrf.mxu0
      %v2350 = vadd.f32 0.0, %v2349
      %v2351 = vpop.f32.mrf.mxu0
      %2352 = vmatprep.mubr.f32.mxu0 0.0
      %2353 = vmatmul.mubr.f32.gmra.mxu0 %v2139
      %v2354 = vpop.f32.mrf.mxu0
      %v2355 = vadd.f32 0.0, %v2354
      %v2356 = vpop.f32.mrf.mxu0
      %2357 = vmatprep.mubr.f32.mxu0 0.0
      %2358 = vmatmul.mubr.f32.gmra.mxu0 %v2142
      %v2359 = vpop.f32.mrf.mxu0
      %v2360 = vadd.f32 0.0, %v2359
      %v2361 = vpop.f32.mrf.mxu0
      %2362 = vmatprep.mubr.f32.mxu0 0.0
      %2363 = vmatmul.mubr.f32.gmra.mxu0 %v2145
      %v2364 = vpop.f32.mrf.mxu0
      %v2365 = vadd.f32 0.0, %v2364
      %v2366 = vpop.f32.mrf.mxu0
      %2367 = vmatprep.mubr.f32.mxu0 0.0
      %2368 = vmatmul.mubr.f32.gmra.mxu0 %v2148
      %v2369 = vpop.f32.mrf.mxu0
      %v2370 = vadd.f32 0.0, %v2369
      %v2371 = vpop.f32.mrf.mxu0
      %2372 = vmatprep.mubr.f32.mxu0 0.0
      %2373 = vmatmul.mubr.f32.gmra.mxu0 %v2151
      %v2374 = vpop.f32.mrf.mxu0
      %v2375 = vadd.f32 0.0, %v2374
      %v2376 = vpop.f32.mrf.mxu0
      %2377 = vmatprep.mubr.f32.mxu0 0.0
      %2378 = vmatmul.mubr.f32.gmra.mxu0 %v2154
      %v2379 = vpop.f32.mrf.mxu0
      %v2380 = vadd.f32 0.0, %v2379
      %v2381 = vpop.f32.mrf.mxu0
      %2382 = vmatprep.mubr.f32.mxu0 0.0
      %2383 = vmatmul.mubr.f32.gmra.mxu0 %v2157
      %v2384 = vpop.f32.mrf.mxu0
      %v2385 = vadd.f32 0.0, %v2384
      %v2386 = vpop.f32.mrf.mxu0
      %2387 = vdwg.mxu0
      %s2388 = scalar_lea.vmem [#allocation3], 24
      %2389 = vst.msk [vmem:[%s2388 + $0x1] sm:$0xff] %vm383, %v2230
      %2390 = vst.msk [vmem:[%s2388 + $0x9] sm:$0xff] %vm383, %v2235
      %2391 = vst.msk [vmem:[%s2388 + $0x19] sm:$0xff] %vm383, %v2240
      %2392 = vst.msk [vmem:[%s2388 + $0x21] sm:$0xff] %vm383, %v2245
      %2393 = vst.msk [vmem:[%s2388 + $0x31] sm:$0xff] %vm383, %v2250
      %2394 = vst.msk [vmem:[%s2388 + $0x39] sm:$0xff] %vm383, %v2255
      %2395 = vst.msk [vmem:[%s2388 + $0x49] sm:$0xff] %vm383, %v2260
      %2396 = vst.msk [vmem:[%s2388 + $0x51] sm:$0xff] %vm383, %v2265
      %2397 = vst.msk [vmem:[%s2388 + $0x61] sm:$0xff] %vm383, %v2270
      %2398 = vst.msk [vmem:[%s2388 + $0x69] sm:$0xff] %vm383, %v2275
      %2399 = vst.msk [vmem:[%s2388 + $0x79] sm:$0xff] %vm383, %v2280
      %2400 = vst.msk [vmem:[%s2388 + $0x81] sm:$0xff] %vm383, %v2285
      %2401 = vst.msk [vmem:[%s2388 + $0x91] sm:$0xff] %vm383, %v2290
      %2402 = vst.msk [vmem:[%s2388 + $0x99] sm:$0xff] %vm383, %v2295
      %2403 = vst.msk [vmem:[%s2388 + $0xa9] sm:$0xff] %vm383, %v2300
      %2404 = vst.msk [vmem:[%s2388 + $0xb1] sm:$0xff] %vm383, %v2305
      %2405 = vst.msk [vmem:[%s2388 + $0xc1] sm:$0xff] %vm383, %v2310
      %2406 = vst.msk [vmem:[%s2388 + $0xc9] sm:$0xff] %vm383, %v2315
      %2407 = vst.msk [vmem:[%s2388 + $0xd9] sm:$0xff] %vm383, %v2320
      %2408 = vst.msk [vmem:[%s2388 + $0xe1] sm:$0xff] %vm383, %v2325
      %2409 = vst.msk [vmem:[%s2388 + $0xf1] sm:$0xff] %vm383, %v2330
      %2410 = vst.msk [vmem:[%s2388 + $0xf9] sm:$0xff] %vm383, %v2335
      %2411 = vst.msk [vmem:[%s2388 + $0x109] sm:$0xff] %vm383, %v2340
      %2412 = vst.msk [vmem:[%s2388 + $0x111] sm:$0xff] %vm383, %v2345
      %2413 = vst.msk [vmem:[%s2388 + $0x121] sm:$0xff] %vm383, %v2350
      %2414 = vst.msk [vmem:[%s2388 + $0x129] sm:$0xff] %vm383, %v2355
      %2415 = vst.msk [vmem:[%s2388 + $0x139] sm:$0xff] %vm383, %v2360
      %2416 = vst.msk [vmem:[%s2388 + $0x141] sm:$0xff] %vm383, %v2365
      %2417 = vst.msk [vmem:[%s2388 + $0x151] sm:$0xff] %vm383, %v2370
      %2418 = vst.msk [vmem:[%s2388 + $0x159] sm:$0xff] %vm383, %v2375
      %2419 = vst.msk [vmem:[%s2388 + $0x169] sm:$0xff] %vm383, %v2380
      %2420 = vst.msk [vmem:[%s2388 + $0x171] sm:$0xff] %vm383, %v2385
      %v2421 = vld [vmem:[#allocation3] sm:$0xff]
      %v2422 = vld [vmem:[#allocation3 + $0x8] sm:$0xff]
      %v2423 = vld [vmem:[#allocation3 + $0x18] sm:$0xff]
      %v2424 = vld [vmem:[#allocation3 + $0x20] sm:$0xff]
      %v2425 = vld [vmem:[#allocation3 + $0x30] sm:$0xff]
      %v2426 = vld [vmem:[#allocation3 + $0x38] sm:$0xff]
      %v2427 = vld [vmem:[#allocation3 + $0x48] sm:$0xff]
      %v2428 = vld [vmem:[#allocation3 + $0x50] sm:$0xff]
      %v2429 = vld [vmem:[#allocation3 + $0x60] sm:$0xff]
      %v2430 = vld [vmem:[#allocation3 + $0x68] sm:$0xff]
      %v2431 = vld [vmem:[#allocation3 + $0x78] sm:$0xff]
      %v2432 = vld [vmem:[#allocation3 + $0x80] sm:$0xff]
      %v2433 = vld [vmem:[#allocation3 + $0x90] sm:$0xff]
      %v2434 = vld [vmem:[#allocation3 + $0x98] sm:$0xff]
      %v2435 = vld [vmem:[#allocation3 + $0xa8] sm:$0xff]
      %v2436 = vld [vmem:[#allocation3 + $0xb0] sm:$0xff]
      %v2437 = vld [vmem:[#allocation3 + $0xc0] sm:$0xff]
      %v2438 = vld [vmem:[#allocation3 + $0xc8] sm:$0xff]
      %v2439 = vld [vmem:[#allocation3 + $0xd8] sm:$0xff]
      %v2440 = vld [vmem:[#allocation3 + $0xe0] sm:$0xff]
      %v2441 = vld [vmem:[#allocation3 + $0xf0] sm:$0xff]
      %v2442 = vld [vmem:[#allocation3 + $0xf8] sm:$0xff]
      %v2443 = vld [vmem:[#allocation3 + $0x108] sm:$0xff]
      %v2444 = vld [vmem:[#allocation3 + $0x110] sm:$0xff]
      %v2445 = vld [vmem:[#allocation3 + $0x120] sm:$0xff]
      %v2446 = vld [vmem:[#allocation3 + $0x128] sm:$0xff]
      %v2447 = vld [vmem:[#allocation3 + $0x138] sm:$0xff]
      %v2448 = vld [vmem:[#allocation3 + $0x140] sm:$0xff]
      %v2449 = vld [vmem:[#allocation3 + $0x150] sm:$0xff]
      %v2450 = vld [vmem:[#allocation3 + $0x158] sm:$0xff]
      %v2451 = vld [vmem:[#allocation3 + $0x168] sm:$0xff]
      %v2452 = vld [vmem:[#allocation3 + $0x170] sm:$0xff]
      %2453 = vst.msk [vmem:[#allocation5] sm:$0xff] %vm383, %v2421
      %2454 = vst.msk [vmem:[#allocation5 + $0x8] sm:$0xff] %vm383, %v2422
      %2455 = vst.msk [vmem:[#allocation5 + $0x10] sm:$0xff] %vm383, %v2423
      %2456 = vst.msk [vmem:[#allocation5 + $0x18] sm:$0xff] %vm383, %v2424
      %2457 = vst.msk [vmem:[#allocation5 + $0x20] sm:$0xff] %vm383, %v2425
      %2458 = vst.msk [vmem:[#allocation5 + $0x28] sm:$0xff] %vm383, %v2426
      %2459 = vst.msk [vmem:[#allocation5 + $0x30] sm:$0xff] %vm383, %v2427
      %2460 = vst.msk [vmem:[#allocation5 + $0x38] sm:$0xff] %vm383, %v2428
      %2461 = vst.msk [vmem:[#allocation5 + $0x40] sm:$0xff] %vm383, %v2429
      %2462 = vst.msk [vmem:[#allocation5 + $0x48] sm:$0xff] %vm383, %v2430
      %2463 = vst.msk [vmem:[#allocation5 + $0x50] sm:$0xff] %vm383, %v2431
      %2464 = vst.msk [vmem:[#allocation5 + $0x58] sm:$0xff] %vm383, %v2432
      %2465 = vst.msk [vmem:[#allocation5 + $0x60] sm:$0xff] %vm383, %v2433
      %2466 = vst.msk [vmem:[#allocation5 + $0x68] sm:$0xff] %vm383, %v2434
      %2467 = vst.msk [vmem:[#allocation5 + $0x70] sm:$0xff] %vm383, %v2435
      %2468 = vst.msk [vmem:[#allocation5 + $0x78] sm:$0xff] %vm383, %v2436
      %2469 = vst.msk [vmem:[#allocation5 + $0x80] sm:$0xff] %vm383, %v2437
      %2470 = vst.msk [vmem:[#allocation5 + $0x88] sm:$0xff] %vm383, %v2438
      %2471 = vst.msk [vmem:[#allocation5 + $0x90] sm:$0xff] %vm383, %v2439
      %2472 = vst.msk [vmem:[#allocation5 + $0x98] sm:$0xff] %vm383, %v2440
      %2473 = vst.msk [vmem:[#allocation5 + $0xa0] sm:$0xff] %vm383, %v2441
      %2474 = vst.msk [vmem:[#allocation5 + $0xa8] sm:$0xff] %vm383, %v2442
      %2475 = vst.msk [vmem:[#allocation5 + $0xb0] sm:$0xff] %vm383, %v2443
      %2476 = vst.msk [vmem:[#allocation5 + $0xb8] sm:$0xff] %vm383, %v2444
      %2477 = vst.msk [vmem:[#allocation5 + $0xc0] sm:$0xff] %vm383, %v2445
      %2478 = vst.msk [vmem:[#allocation5 + $0xc8] sm:$0xff] %vm383, %v2446
      %2479 = vst.msk [vmem:[#allocation5 + $0xd0] sm:$0xff] %vm383, %v2447
      %2480 = vst.msk [vmem:[#allocation5 + $0xd8] sm:$0xff] %vm383, %v2448
      %2481 = vst.msk [vmem:[#allocation5 + $0xe0] sm:$0xff] %vm383, %v2449
      %2482 = vst.msk [vmem:[#allocation5 + $0xe8] sm:$0xff] %vm383, %v2450
      %2483 = vst.msk [vmem:[#allocation5 + $0xf0] sm:$0xff] %vm383, %v2451
      %2484 = vst.msk [vmem:[#allocation5 + $0xf8] sm:$0xff] %vm383, %v2452
      %v2485 = vld [vmem:[#allocation3 + $0x1] sm:$0xff]
      %v2486 = vld [vmem:[#allocation3 + $0x9] sm:$0xff]
      %v2487 = vld [vmem:[#allocation3 + $0x19] sm:$0xff]
      %v2488 = vld [vmem:[#allocation3 + $0x21] sm:$0xff]
      %v2489 = vld [vmem:[#allocation3 + $0x31] sm:$0xff]
      %v2490 = vld [vmem:[#allocation3 + $0x39] sm:$0xff]
      %v2491 = vld [vmem:[#allocation3 + $0x49] sm:$0xff]
      %v2492 = vld [vmem:[#allocation3 + $0x51] sm:$0xff]
      %v2493 = vld [vmem:[#allocation3 + $0x61] sm:$0xff]
      %v2494 = vld [vmem:[#allocation3 + $0x69] sm:$0xff]
      %v2495 = vld [vmem:[#allocation3 + $0x79] sm:$0xff]
      %v2496 = vld [vmem:[#allocation3 + $0x81] sm:$0xff]
      %v2497 = vld [vmem:[#allocation3 + $0x91] sm:$0xff]
      %v2498 = vld [vmem:[#allocation3 + $0x99] sm:$0xff]
      %v2499 = vld [vmem:[#allocation3 + $0xa9] sm:$0xff]
      %v2500 = vld [vmem:[#allocation3 + $0xb1] sm:$0xff]
      %v2501 = vld [vmem:[#allocation3 + $0xc1] sm:$0xff]
      %v2502 = vld [vmem:[#allocation3 + $0xc9] sm:$0xff]
      %v2503 = vld [vmem:[#allocation3 + $0xd9] sm:$0xff]
      %v2504 = vld [vmem:[#allocation3 + $0xe1] sm:$0xff]
      %v2505 = vld [vmem:[#allocation3 + $0xf1] sm:$0xff]
      %v2506 = vld [vmem:[#allocation3 + $0xf9] sm:$0xff]
      %v2507 = vld [vmem:[#allocation3 + $0x109] sm:$0xff]
      %v2508 = vld [vmem:[#allocation3 + $0x111] sm:$0xff]
      %v2509 = vld [vmem:[#allocation3 + $0x121] sm:$0xff]
      %v2510 = vld [vmem:[#allocation3 + $0x129] sm:$0xff]
      %v2511 = vld [vmem:[#allocation3 + $0x139] sm:$0xff]
      %v2512 = vld [vmem:[#allocation3 + $0x141] sm:$0xff]
      %v2513 = vld [vmem:[#allocation3 + $0x151] sm:$0xff]
      %v2514 = vld [vmem:[#allocation3 + $0x159] sm:$0xff]
      %v2515 = vld [vmem:[#allocation3 + $0x169] sm:$0xff]
      %v2516 = vld [vmem:[#allocation3 + $0x171] sm:$0xff]
      %2549 = vrot.lane.b32.xlu0 %v2485, 4
      %v2550 = vpop.permute.xlu0 %2549
      %2551 = vrot.lane.b32.xlu0 %v2486, 4
      %v2552 = vpop.permute.xlu0 %2551
      %2553 = vrot.lane.b32.xlu0 %v2487, 4
      %v2554 = vpop.permute.xlu0 %2553
      %2555 = vrot.lane.b32.xlu0 %v2488, 4
      %v2556 = vpop.permute.xlu0 %2555
      %2557 = vrot.lane.b32.xlu0 %v2489, 4
      %v2558 = vpop.permute.xlu0 %2557
      %2559 = vrot.lane.b32.xlu0 %v2490, 4
      %v2560 = vpop.permute.xlu0 %2559
      %2561 = vrot.lane.b32.xlu0 %v2491, 4
      %v2562 = vpop.permute.xlu0 %2561
      %2563 = vrot.lane.b32.xlu0 %v2492, 4
      %v2564 = vpop.permute.xlu0 %2563
      %2565 = vrot.lane.b32.xlu0 %v2493, 4
      %v2566 = vpop.permute.xlu0 %2565
      %2567 = vrot.lane.b32.xlu0 %v2494, 4
      %v2568 = vpop.permute.xlu0 %2567
      %2569 = vrot.lane.b32.xlu0 %v2495, 4
      %v2570 = vpop.permute.xlu0 %2569
      %2571 = vrot.lane.b32.xlu0 %v2496, 4
      %v2572 = vpop.permute.xlu0 %2571
      %2573 = vrot.lane.b32.xlu0 %v2497, 4
      %v2574 = vpop.permute.xlu0 %2573
      %2575 = vrot.lane.b32.xlu0 %v2498, 4
      %v2576 = vpop.permute.xlu0 %2575
      %2577 = vrot.lane.b32.xlu0 %v2499, 4
      %v2578 = vpop.permute.xlu0 %2577
      %2579 = vrot.lane.b32.xlu0 %v2500, 4
      %v2580 = vpop.permute.xlu0 %2579
      %2581 = vrot.lane.b32.xlu0 %v2501, 4
      %v2582 = vpop.permute.xlu0 %2581
      %2583 = vrot.lane.b32.xlu0 %v2502, 4
      %v2584 = vpop.permute.xlu0 %2583
      %2585 = vrot.lane.b32.xlu0 %v2503, 4
      %v2586 = vpop.permute.xlu0 %2585
      %2587 = vrot.lane.b32.xlu0 %v2504, 4
      %v2588 = vpop.permute.xlu0 %2587
      %2589 = vrot.lane.b32.xlu0 %v2505, 4
      %v2590 = vpop.permute.xlu0 %2589
      %2591 = vrot.lane.b32.xlu0 %v2506, 4
      %v2592 = vpop.permute.xlu0 %2591
      %2593 = vrot.lane.b32.xlu0 %v2507, 4
      %v2594 = vpop.permute.xlu0 %2593
      %2595 = vrot.lane.b32.xlu0 %v2508, 4
      %v2596 = vpop.permute.xlu0 %2595
      %2597 = vrot.lane.b32.xlu0 %v2509, 4
      %v2598 = vpop.permute.xlu0 %2597
      %2599 = vrot.lane.b32.xlu0 %v2510, 4
      %v2600 = vpop.permute.xlu0 %2599
      %2601 = vrot.lane.b32.xlu0 %v2511, 4
      %v2602 = vpop.permute.xlu0 %2601
      %2603 = vrot.lane.b32.xlu0 %v2512, 4
      %v2604 = vpop.permute.xlu0 %2603
      %2605 = vrot.lane.b32.xlu0 %v2513, 4
      %v2606 = vpop.permute.xlu0 %2605
      %2607 = vrot.lane.b32.xlu0 %v2514, 4
      %v2608 = vpop.permute.xlu0 %2607
      %2609 = vrot.lane.b32.xlu0 %v2515, 4
      %v2610 = vpop.permute.xlu0 %2609
      %2611 = vrot.lane.b32.xlu0 %v2516, 4
      %v2612 = vpop.permute.xlu0 %2611
      %2645 = vst.msk [vmem:[#allocation5] sm:$0xff] %vm640, %v2550
      %2646 = vst.msk [vmem:[#allocation5 + $0x8] sm:$0xff] %vm640, %v2552
      %2647 = vst.msk [vmem:[#allocation5 + $0x10] sm:$0xff] %vm640, %v2554
      %2648 = vst.msk [vmem:[#allocation5 + $0x18] sm:$0xff] %vm640, %v2556
      %2649 = vst.msk [vmem:[#allocation5 + $0x20] sm:$0xff] %vm640, %v2558
      %2650 = vst.msk [vmem:[#allocation5 + $0x28] sm:$0xff] %vm640, %v2560
      %2651 = vst.msk [vmem:[#allocation5 + $0x30] sm:$0xff] %vm640, %v2562
      %2652 = vst.msk [vmem:[#allocation5 + $0x38] sm:$0xff] %vm640, %v2564
      %2653 = vst.msk [vmem:[#allocation5 + $0x40] sm:$0xff] %vm640, %v2566
      %2654 = vst.msk [vmem:[#allocation5 + $0x48] sm:$0xff] %vm640, %v2568
      %2655 = vst.msk [vmem:[#allocation5 + $0x50] sm:$0xff] %vm640, %v2570
      %2656 = vst.msk [vmem:[#allocation5 + $0x58] sm:$0xff] %vm640, %v2572
      %2657 = vst.msk [vmem:[#allocation5 + $0x60] sm:$0xff] %vm640, %v2574
      %2658 = vst.msk [vmem:[#allocation5 + $0x68] sm:$0xff] %vm640, %v2576
      %2659 = vst.msk [vmem:[#allocation5 + $0x70] sm:$0xff] %vm640, %v2578
      %2660 = vst.msk [vmem:[#allocation5 + $0x78] sm:$0xff] %vm640, %v2580
      %2661 = vst.msk [vmem:[#allocation5 + $0x80] sm:$0xff] %vm640, %v2582
      %2662 = vst.msk [vmem:[#allocation5 + $0x88] sm:$0xff] %vm640, %v2584
      %2663 = vst.msk [vmem:[#allocation5 + $0x90] sm:$0xff] %vm640, %v2586
      %2664 = vst.msk [vmem:[#allocation5 + $0x98] sm:$0xff] %vm640, %v2588
      %2665 = vst.msk [vmem:[#allocation5 + $0xa0] sm:$0xff] %vm640, %v2590
      %2666 = vst.msk [vmem:[#allocation5 + $0xa8] sm:$0xff] %vm640, %v2592
      %2667 = vst.msk [vmem:[#allocation5 + $0xb0] sm:$0xff] %vm640, %v2594
      %2668 = vst.msk [vmem:[#allocation5 + $0xb8] sm:$0xff] %vm640, %v2596
      %2669 = vst.msk [vmem:[#allocation5 + $0xc0] sm:$0xff] %vm640, %v2598
      %2670 = vst.msk [vmem:[#allocation5 + $0xc8] sm:$0xff] %vm640, %v2600
      %2671 = vst.msk [vmem:[#allocation5 + $0xd0] sm:$0xff] %vm640, %v2602
      %2672 = vst.msk [vmem:[#allocation5 + $0xd8] sm:$0xff] %vm640, %v2604
      %2673 = vst.msk [vmem:[#allocation5 + $0xe0] sm:$0xff] %vm640, %v2606
      %2674 = vst.msk [vmem:[#allocation5 + $0xe8] sm:$0xff] %vm640, %v2608
      %2675 = vst.msk [vmem:[#allocation5 + $0xf0] sm:$0xff] %vm640, %v2610
      %2676 = vst.msk [vmem:[#allocation5 + $0xf8] sm:$0xff] %vm640, %v2612
      %v2677 = vld [vmem:[#allocation3 + $0x2] sm:$0xff]
      %v2678 = vld [vmem:[#allocation3 + $0xa] sm:$0xff]
      %v2679 = vld [vmem:[#allocation3 + $0x1a] sm:$0xff]
      %v2680 = vld [vmem:[#allocation3 + $0x22] sm:$0xff]
      %v2681 = vld [vmem:[#allocation3 + $0x32] sm:$0xff]
      %v2682 = vld [vmem:[#allocation3 + $0x3a] sm:$0xff]
      %v2683 = vld [vmem:[#allocation3 + $0x4a] sm:$0xff]
      %v2684 = vld [vmem:[#allocation3 + $0x52] sm:$0xff]
      %v2685 = vld [vmem:[#allocation3 + $0x62] sm:$0xff]
      %v2686 = vld [vmem:[#allocation3 + $0x6a] sm:$0xff]
      %v2687 = vld [vmem:[#allocation3 + $0x7a] sm:$0xff]
      %v2688 = vld [vmem:[#allocation3 + $0x82] sm:$0xff]
      %v2689 = vld [vmem:[#allocation3 + $0x92] sm:$0xff]
      %v2690 = vld [vmem:[#allocation3 + $0x9a] sm:$0xff]
      %v2691 = vld [vmem:[#allocation3 + $0xaa] sm:$0xff]
      %v2692 = vld [vmem:[#allocation3 + $0xb2] sm:$0xff]
      %v2693 = vld [vmem:[#allocation3 + $0xc2] sm:$0xff]
      %v2694 = vld [vmem:[#allocation3 + $0xca] sm:$0xff]
      %v2695 = vld [vmem:[#allocation3 + $0xda] sm:$0xff]
      %v2696 = vld [vmem:[#allocation3 + $0xe2] sm:$0xff]
      %v2697 = vld [vmem:[#allocation3 + $0xf2] sm:$0xff]
      %v2698 = vld [vmem:[#allocation3 + $0xfa] sm:$0xff]
      %v2699 = vld [vmem:[#allocation3 + $0x10a] sm:$0xff]
      %v2700 = vld [vmem:[#allocation3 + $0x112] sm:$0xff]
      %v2701 = vld [vmem:[#allocation3 + $0x122] sm:$0xff]
      %v2702 = vld [vmem:[#allocation3 + $0x12a] sm:$0xff]
      %v2703 = vld [vmem:[#allocation3 + $0x13a] sm:$0xff]
      %v2704 = vld [vmem:[#allocation3 + $0x142] sm:$0xff]
      %v2705 = vld [vmem:[#allocation3 + $0x152] sm:$0xff]
      %v2706 = vld [vmem:[#allocation3 + $0x15a] sm:$0xff]
      %v2707 = vld [vmem:[#allocation3 + $0x16a] sm:$0xff]
      %v2708 = vld [vmem:[#allocation3 + $0x172] sm:$0xff]
      %2741 = vrot.lane.b32.xlu0 %v2677, 8
      %v2742 = vpop.permute.xlu0 %2741
      %2743 = vrot.lane.b32.xlu0 %v2678, 8
      %v2744 = vpop.permute.xlu0 %2743
      %2745 = vrot.lane.b32.xlu0 %v2679, 8
      %v2746 = vpop.permute.xlu0 %2745
      %2747 = vrot.lane.b32.xlu0 %v2680, 8
      %v2748 = vpop.permute.xlu0 %2747
      %2749 = vrot.lane.b32.xlu0 %v2681, 8
      %v2750 = vpop.permute.xlu0 %2749
      %2751 = vrot.lane.b32.xlu0 %v2682, 8
      %v2752 = vpop.permute.xlu0 %2751
      %2753 = vrot.lane.b32.xlu0 %v2683, 8
      %v2754 = vpop.permute.xlu0 %2753
      %2755 = vrot.lane.b32.xlu0 %v2684, 8
      %v2756 = vpop.permute.xlu0 %2755
      %2757 = vrot.lane.b32.xlu0 %v2685, 8
      %v2758 = vpop.permute.xlu0 %2757
      %2759 = vrot.lane.b32.xlu0 %v2686, 8
      %v2760 = vpop.permute.xlu0 %2759
      %2761 = vrot.lane.b32.xlu0 %v2687, 8
      %v2762 = vpop.permute.xlu0 %2761
      %2763 = vrot.lane.b32.xlu0 %v2688, 8
      %v2764 = vpop.permute.xlu0 %2763
      %2765 = vrot.lane.b32.xlu0 %v2689, 8
      %v2766 = vpop.permute.xlu0 %2765
      %2767 = vrot.lane.b32.xlu0 %v2690, 8
      %v2768 = vpop.permute.xlu0 %2767
      %2769 = vrot.lane.b32.xlu0 %v2691, 8
      %v2770 = vpop.permute.xlu0 %2769
      %2771 = vrot.lane.b32.xlu0 %v2692, 8
      %v2772 = vpop.permute.xlu0 %2771
      %2773 = vrot.lane.b32.xlu0 %v2693, 8
      %v2774 = vpop.permute.xlu0 %2773
      %2775 = vrot.lane.b32.xlu0 %v2694, 8
      %v2776 = vpop.permute.xlu0 %2775
      %2777 = vrot.lane.b32.xlu0 %v2695, 8
      %v2778 = vpop.permute.xlu0 %2777
      %2779 = vrot.lane.b32.xlu0 %v2696, 8
      %v2780 = vpop.permute.xlu0 %2779
      %2781 = vrot.lane.b32.xlu0 %v2697, 8
      %v2782 = vpop.permute.xlu0 %2781
      %2783 = vrot.lane.b32.xlu0 %v2698, 8
      %v2784 = vpop.permute.xlu0 %2783
      %2785 = vrot.lane.b32.xlu0 %v2699, 8
      %v2786 = vpop.permute.xlu0 %2785
      %2787 = vrot.lane.b32.xlu0 %v2700, 8
      %v2788 = vpop.permute.xlu0 %2787
      %2789 = vrot.lane.b32.xlu0 %v2701, 8
      %v2790 = vpop.permute.xlu0 %2789
      %2791 = vrot.lane.b32.xlu0 %v2702, 8
      %v2792 = vpop.permute.xlu0 %2791
      %2793 = vrot.lane.b32.xlu0 %v2703, 8
      %v2794 = vpop.permute.xlu0 %2793
      %2795 = vrot.lane.b32.xlu0 %v2704, 8
      %v2796 = vpop.permute.xlu0 %2795
      %2797 = vrot.lane.b32.xlu0 %v2705, 8
      %v2798 = vpop.permute.xlu0 %2797
      %2799 = vrot.lane.b32.xlu0 %v2706, 8
      %v2800 = vpop.permute.xlu0 %2799
      %2801 = vrot.lane.b32.xlu0 %v2707, 8
      %v2802 = vpop.permute.xlu0 %2801
      %2803 = vrot.lane.b32.xlu0 %v2708, 8
      %v2804 = vpop.permute.xlu0 %2803
      %2837 = vst.msk [vmem:[#allocation5] sm:$0xff] %vm833, %v2742
      %2838 = vst.msk [vmem:[#allocation5 + $0x8] sm:$0xff] %vm833, %v2744
      %2839 = vst.msk [vmem:[#allocation5 + $0x10] sm:$0xff] %vm833, %v2746
      %2840 = vst.msk [vmem:[#allocation5 + $0x18] sm:$0xff] %vm833, %v2748
      %2841 = vst.msk [vmem:[#allocation5 + $0x20] sm:$0xff] %vm833, %v2750
      %2842 = vst.msk [vmem:[#allocation5 + $0x28] sm:$0xff] %vm833, %v2752
      %2843 = vst.msk [vmem:[#allocation5 + $0x30] sm:$0xff] %vm833, %v2754
      %2844 = vst.msk [vmem:[#allocation5 + $0x38] sm:$0xff] %vm833, %v2756
      %2845 = vst.msk [vmem:[#allocation5 + $0x40] sm:$0xff] %vm833, %v2758
      %2846 = vst.msk [vmem:[#allocation5 + $0x48] sm:$0xff] %vm833, %v2760
      %2847 = vst.msk [vmem:[#allocation5 + $0x50] sm:$0xff] %vm833, %v2762
      %2848 = vst.msk [vmem:[#allocation5 + $0x58] sm:$0xff] %vm833, %v2764
      %2849 = vst.msk [vmem:[#allocation5 + $0x60] sm:$0xff] %vm833, %v2766
      %2850 = vst.msk [vmem:[#allocation5 + $0x68] sm:$0xff] %vm833, %v2768
      %2851 = vst.msk [vmem:[#allocation5 + $0x70] sm:$0xff] %vm833, %v2770
      %2852 = vst.msk [vmem:[#allocation5 + $0x78] sm:$0xff] %vm833, %v2772
      %2853 = vst.msk [vmem:[#allocation5 + $0x80] sm:$0xff] %vm833, %v2774
      %2854 = vst.msk [vmem:[#allocation5 + $0x88] sm:$0xff] %vm833, %v2776
      %2855 = vst.msk [vmem:[#allocation5 + $0x90] sm:$0xff] %vm833, %v2778
      %2856 = vst.msk [vmem:[#allocation5 + $0x98] sm:$0xff] %vm833, %v2780
      %2857 = vst.msk [vmem:[#allocation5 + $0xa0] sm:$0xff] %vm833, %v2782
      %2858 = vst.msk [vmem:[#allocation5 + $0xa8] sm:$0xff] %vm833, %v2784
      %2859 = vst.msk [vmem:[#allocation5 + $0xb0] sm:$0xff] %vm833, %v2786
      %2860 = vst.msk [vmem:[#allocation5 + $0xb8] sm:$0xff] %vm833, %v2788
      %2861 = vst.msk [vmem:[#allocation5 + $0xc0] sm:$0xff] %vm833, %v2790
      %2862 = vst.msk [vmem:[#allocation5 + $0xc8] sm:$0xff] %vm833, %v2792
      %2863 = vst.msk [vmem:[#allocation5 + $0xd0] sm:$0xff] %vm833, %v2794
      %2864 = vst.msk [vmem:[#allocation5 + $0xd8] sm:$0xff] %vm833, %v2796
      %2865 = vst.msk [vmem:[#allocation5 + $0xe0] sm:$0xff] %vm833, %v2798
      %2866 = vst.msk [vmem:[#allocation5 + $0xe8] sm:$0xff] %vm833, %v2800
      %2867 = vst.msk [vmem:[#allocation5 + $0xf0] sm:$0xff] %vm833, %v2802
      %2868 = vst.msk [vmem:[#allocation5 + $0xf8] sm:$0xff] %vm833, %v2804
      %v2869 = vld [vmem:[%s2388] sm:$0xff]
      %v2870 = vld [vmem:[%s2388 + $0x8] sm:$0xff]
      %v2871 = vld [vmem:[%s2388 + $0x18] sm:$0xff]
      %v2872 = vld [vmem:[%s2388 + $0x20] sm:$0xff]
      %v2873 = vld [vmem:[%s2388 + $0x30] sm:$0xff]
      %v2874 = vld [vmem:[%s2388 + $0x38] sm:$0xff]
      %v2875 = vld [vmem:[%s2388 + $0x48] sm:$0xff]
      %v2876 = vld [vmem:[%s2388 + $0x50] sm:$0xff]
      %v2877 = vld [vmem:[%s2388 + $0x60] sm:$0xff]
      %v2878 = vld [vmem:[%s2388 + $0x68] sm:$0xff]
      %v2879 = vld [vmem:[%s2388 + $0x78] sm:$0xff]
      %v2880 = vld [vmem:[%s2388 + $0x80] sm:$0xff]
      %v2881 = vld [vmem:[%s2388 + $0x90] sm:$0xff]
      %v2882 = vld [vmem:[%s2388 + $0x98] sm:$0xff]
      %v2883 = vld [vmem:[%s2388 + $0xa8] sm:$0xff]
      %v2884 = vld [vmem:[%s2388 + $0xb0] sm:$0xff]
      %v2885 = vld [vmem:[%s2388 + $0xc0] sm:$0xff]
      %v2886 = vld [vmem:[%s2388 + $0xc8] sm:$0xff]
      %v2887 = vld [vmem:[%s2388 + $0xd8] sm:$0xff]
      %v2888 = vld [vmem:[%s2388 + $0xe0] sm:$0xff]
      %v2889 = vld [vmem:[%s2388 + $0xf0] sm:$0xff]
      %v2890 = vld [vmem:[%s2388 + $0xf8] sm:$0xff]
      %v2891 = vld [vmem:[%s2388 + $0x108] sm:$0xff]
      %v2892 = vld [vmem:[%s2388 + $0x110] sm:$0xff]
      %v2893 = vld [vmem:[%s2388 + $0x120] sm:$0xff]
      %v2894 = vld [vmem:[%s2388 + $0x128] sm:$0xff]
      %v2895 = vld [vmem:[%s2388 + $0x138] sm:$0xff]
      %v2896 = vld [vmem:[%s2388 + $0x140] sm:$0xff]
      %v2897 = vld [vmem:[%s2388 + $0x150] sm:$0xff]
      %v2898 = vld [vmem:[%s2388 + $0x158] sm:$0xff]
      %v2899 = vld [vmem:[%s2388 + $0x168] sm:$0xff]
      %v2900 = vld [vmem:[%s2388 + $0x170] sm:$0xff]
      %2933 = vrot.lane.b32.xlu0 %v2869, 12
      %v2934 = vpop.permute.xlu0 %2933
      %2935 = vrot.lane.b32.xlu0 %v2870, 12
      %v2936 = vpop.permute.xlu0 %2935
      %2937 = vrot.lane.b32.xlu0 %v2871, 12
      %v2938 = vpop.permute.xlu0 %2937
      %2939 = vrot.lane.b32.xlu0 %v2872, 12
      %v2940 = vpop.permute.xlu0 %2939
      %2941 = vrot.lane.b32.xlu0 %v2873, 12
      %v2942 = vpop.permute.xlu0 %2941
      %2943 = vrot.lane.b32.xlu0 %v2874, 12
      %v2944 = vpop.permute.xlu0 %2943
      %2945 = vrot.lane.b32.xlu0 %v2875, 12
      %v2946 = vpop.permute.xlu0 %2945
      %2947 = vrot.lane.b32.xlu0 %v2876, 12
      %v2948 = vpop.permute.xlu0 %2947
      %2949 = vrot.lane.b32.xlu0 %v2877, 12
      %v2950 = vpop.permute.xlu0 %2949
      %2951 = vrot.lane.b32.xlu0 %v2878, 12
      %v2952 = vpop.permute.xlu0 %2951
      %2953 = vrot.lane.b32.xlu0 %v2879, 12
      %v2954 = vpop.permute.xlu0 %2953
      %2955 = vrot.lane.b32.xlu0 %v2880, 12
      %v2956 = vpop.permute.xlu0 %2955
      %2957 = vrot.lane.b32.xlu0 %v2881, 12
      %v2958 = vpop.permute.xlu0 %2957
      %2959 = vrot.lane.b32.xlu0 %v2882, 12
      %v2960 = vpop.permute.xlu0 %2959
      %2961 = vrot.lane.b32.xlu0 %v2883, 12
      %v2962 = vpop.permute.xlu0 %2961
      %2963 = vrot.lane.b32.xlu0 %v2884, 12
      %v2964 = vpop.permute.xlu0 %2963
      %2965 = vrot.lane.b32.xlu0 %v2885, 12
      %v2966 = vpop.permute.xlu0 %2965
      %2967 = vrot.lane.b32.xlu0 %v2886, 12
      %v2968 = vpop.permute.xlu0 %2967
      %2969 = vrot.lane.b32.xlu0 %v2887, 12
      %v2970 = vpop.permute.xlu0 %2969
      %2971 = vrot.lane.b32.xlu0 %v2888, 12
      %v2972 = vpop.permute.xlu0 %2971
      %2973 = vrot.lane.b32.xlu0 %v2889, 12
      %v2974 = vpop.permute.xlu0 %2973
      %2975 = vrot.lane.b32.xlu0 %v2890, 12
      %v2976 = vpop.permute.xlu0 %2975
      %2977 = vrot.lane.b32.xlu0 %v2891, 12
      %v2978 = vpop.permute.xlu0 %2977
      %2979 = vrot.lane.b32.xlu0 %v2892, 12
      %v2980 = vpop.permute.xlu0 %2979
      %2981 = vrot.lane.b32.xlu0 %v2893, 12
      %v2982 = vpop.permute.xlu0 %2981
      %2983 = vrot.lane.b32.xlu0 %v2894, 12
      %v2984 = vpop.permute.xlu0 %2983
      %2985 = vrot.lane.b32.xlu0 %v2895, 12
      %v2986 = vpop.permute.xlu0 %2985
      %2987 = vrot.lane.b32.xlu0 %v2896, 12
      %v2988 = vpop.permute.xlu0 %2987
      %2989 = vrot.lane.b32.xlu0 %v2897, 12
      %v2990 = vpop.permute.xlu0 %2989
      %2991 = vrot.lane.b32.xlu0 %v2898, 12
      %v2992 = vpop.permute.xlu0 %2991
      %2993 = vrot.lane.b32.xlu0 %v2899, 12
      %v2994 = vpop.permute.xlu0 %2993
      %2995 = vrot.lane.b32.xlu0 %v2900, 12
      %v2996 = vpop.permute.xlu0 %2995
      %3029 = vst.msk [vmem:[#allocation5] sm:$0xff] %vm1026, %v2934
      %3030 = vst.msk [vmem:[#allocation5 + $0x8] sm:$0xff] %vm1026, %v2936
      %3031 = vst.msk [vmem:[#allocation5 + $0x10] sm:$0xff] %vm1026, %v2938
      %3032 = vst.msk [vmem:[#allocation5 + $0x18] sm:$0xff] %vm1026, %v2940
      %3033 = vst.msk [vmem:[#allocation5 + $0x20] sm:$0xff] %vm1026, %v2942
      %3034 = vst.msk [vmem:[#allocation5 + $0x28] sm:$0xff] %vm1026, %v2944
      %3035 = vst.msk [vmem:[#allocation5 + $0x30] sm:$0xff] %vm1026, %v2946
      %3036 = vst.msk [vmem:[#allocation5 + $0x38] sm:$0xff] %vm1026, %v2948
      %3037 = vst.msk [vmem:[#allocation5 + $0x40] sm:$0xff] %vm1026, %v2950
      %3038 = vst.msk [vmem:[#allocation5 + $0x48] sm:$0xff] %vm1026, %v2952
      %3039 = vst.msk [vmem:[#allocation5 + $0x50] sm:$0xff] %vm1026, %v2954
      %3040 = vst.msk [vmem:[#allocation5 + $0x58] sm:$0xff] %vm1026, %v2956
      %3041 = vst.msk [vmem:[#allocation5 + $0x60] sm:$0xff] %vm1026, %v2958
      %3042 = vst.msk [vmem:[#allocation5 + $0x68] sm:$0xff] %vm1026, %v2960
      %3043 = vst.msk [vmem:[#allocation5 + $0x70] sm:$0xff] %vm1026, %v2962
      %3044 = vst.msk [vmem:[#allocation5 + $0x78] sm:$0xff] %vm1026, %v2964
      %3045 = vst.msk [vmem:[#allocation5 + $0x80] sm:$0xff] %vm1026, %v2966
      %3046 = vst.msk [vmem:[#allocation5 + $0x88] sm:$0xff] %vm1026, %v2968
      %3047 = vst.msk [vmem:[#allocation5 + $0x90] sm:$0xff] %vm1026, %v2970
      %3048 = vst.msk [vmem:[#allocation5 + $0x98] sm:$0xff] %vm1026, %v2972
      %3049 = vst.msk [vmem:[#allocation5 + $0xa0] sm:$0xff] %vm1026, %v2974
      %3050 = vst.msk [vmem:[#allocation5 + $0xa8] sm:$0xff] %vm1026, %v2976
      %3051 = vst.msk [vmem:[#allocation5 + $0xb0] sm:$0xff] %vm1026, %v2978
      %3052 = vst.msk [vmem:[#allocation5 + $0xb8] sm:$0xff] %vm1026, %v2980
      %3053 = vst.msk [vmem:[#allocation5 + $0xc0] sm:$0xff] %vm1026, %v2982
      %3054 = vst.msk [vmem:[#allocation5 + $0xc8] sm:$0xff] %vm1026, %v2984
      %3055 = vst.msk [vmem:[#allocation5 + $0xd0] sm:$0xff] %vm1026, %v2986
      %3056 = vst.msk [vmem:[#allocation5 + $0xd8] sm:$0xff] %vm1026, %v2988
      %3057 = vst.msk [vmem:[#allocation5 + $0xe0] sm:$0xff] %vm1026, %v2990
      %3058 = vst.msk [vmem:[#allocation5 + $0xe8] sm:$0xff] %vm1026, %v2992
      %3059 = vst.msk [vmem:[#allocation5 + $0xf0] sm:$0xff] %vm1026, %v2994
      %3060 = vst.msk [vmem:[#allocation5 + $0xf8] sm:$0xff] %vm1026, %v2996
      %v3061 = vld [vmem:[%s2388 + $0x1] sm:$0xff]
      %v3062 = vld [vmem:[%s2388 + $0x9] sm:$0xff]
      %v3063 = vld [vmem:[%s2388 + $0x19] sm:$0xff]
      %v3064 = vld [vmem:[%s2388 + $0x21] sm:$0xff]
      %v3065 = vld [vmem:[%s2388 + $0x31] sm:$0xff]
      %v3066 = vld [vmem:[%s2388 + $0x39] sm:$0xff]
      %v3067 = vld [vmem:[%s2388 + $0x49] sm:$0xff]
      %v3068 = vld [vmem:[%s2388 + $0x51] sm:$0xff]
      %v3069 = vld [vmem:[%s2388 + $0x61] sm:$0xff]
      %v3070 = vld [vmem:[%s2388 + $0x69] sm:$0xff]
      %v3071 = vld [vmem:[%s2388 + $0x79] sm:$0xff]
      %v3072 = vld [vmem:[%s2388 + $0x81] sm:$0xff]
      %v3073 = vld [vmem:[%s2388 + $0x91] sm:$0xff]
      %v3074 = vld [vmem:[%s2388 + $0x99] sm:$0xff]
      %v3075 = vld [vmem:[%s2388 + $0xa9] sm:$0xff]
      %v3076 = vld [vmem:[%s2388 + $0xb1] sm:$0xff]
      %v3077 = vld [vmem:[%s2388 + $0xc1] sm:$0xff]
      %v3078 = vld [vmem:[%s2388 + $0xc9] sm:$0xff]
      %v3079 = vld [vmem:[%s2388 + $0xd9] sm:$0xff]
      %v3080 = vld [vmem:[%s2388 + $0xe1] sm:$0xff]
      %v3081 = vld [vmem:[%s2388 + $0xf1] sm:$0xff]
      %v3082 = vld [vmem:[%s2388 + $0xf9] sm:$0xff]
      %v3083 = vld [vmem:[%s2388 + $0x109] sm:$0xff]
      %v3084 = vld [vmem:[%s2388 + $0x111] sm:$0xff]
      %v3085 = vld [vmem:[%s2388 + $0x121] sm:$0xff]
      %v3086 = vld [vmem:[%s2388 + $0x129] sm:$0xff]
      %v3087 = vld [vmem:[%s2388 + $0x139] sm:$0xff]
      %v3088 = vld [vmem:[%s2388 + $0x141] sm:$0xff]
      %v3089 = vld [vmem:[%s2388 + $0x151] sm:$0xff]
      %v3090 = vld [vmem:[%s2388 + $0x159] sm:$0xff]
      %v3091 = vld [vmem:[%s2388 + $0x169] sm:$0xff]
      %v3092 = vld [vmem:[%s2388 + $0x171] sm:$0xff]
      %3125 = vrot.lane.b32.xlu0 %v3061, 16
      %v3126 = vpop.permute.xlu0 %3125
      %3127 = vrot.lane.b32.xlu0 %v3062, 16
      %v3128 = vpop.permute.xlu0 %3127
      %3129 = vrot.lane.b32.xlu0 %v3063, 16
      %v3130 = vpop.permute.xlu0 %3129
      %3131 = vrot.lane.b32.xlu0 %v3064, 16
      %v3132 = vpop.permute.xlu0 %3131
      %3133 = vrot.lane.b32.xlu0 %v3065, 16
      %v3134 = vpop.permute.xlu0 %3133
      %3135 = vrot.lane.b32.xlu0 %v3066, 16
      %v3136 = vpop.permute.xlu0 %3135
      %3137 = vrot.lane.b32.xlu0 %v3067, 16
      %v3138 = vpop.permute.xlu0 %3137
      %3139 = vrot.lane.b32.xlu0 %v3068, 16
      %v3140 = vpop.permute.xlu0 %3139
      %3141 = vrot.lane.b32.xlu0 %v3069, 16
      %v3142 = vpop.permute.xlu0 %3141
      %3143 = vrot.lane.b32.xlu0 %v3070, 16
      %v3144 = vpop.permute.xlu0 %3143
      %3145 = vrot.lane.b32.xlu0 %v3071, 16
      %v3146 = vpop.permute.xlu0 %3145
      %3147 = vrot.lane.b32.xlu0 %v3072, 16
      %v3148 = vpop.permute.xlu0 %3147
      %3149 = vrot.lane.b32.xlu0 %v3073, 16
      %v3150 = vpop.permute.xlu0 %3149
      %3151 = vrot.lane.b32.xlu0 %v3074, 16
      %v3152 = vpop.permute.xlu0 %3151
      %3153 = vrot.lane.b32.xlu0 %v3075, 16
      %v3154 = vpop.permute.xlu0 %3153
      %3155 = vrot.lane.b32.xlu0 %v3076, 16
      %v3156 = vpop.permute.xlu0 %3155
      %3157 = vrot.lane.b32.xlu0 %v3077, 16
      %v3158 = vpop.permute.xlu0 %3157
      %3159 = vrot.lane.b32.xlu0 %v3078, 16
      %v3160 = vpop.permute.xlu0 %3159
      %3161 = vrot.lane.b32.xlu0 %v3079, 16
      %v3162 = vpop.permute.xlu0 %3161
      %3163 = vrot.lane.b32.xlu0 %v3080, 16
      %v3164 = vpop.permute.xlu0 %3163
      %3165 = vrot.lane.b32.xlu0 %v3081, 16
      %v3166 = vpop.permute.xlu0 %3165
      %3167 = vrot.lane.b32.xlu0 %v3082, 16
      %v3168 = vpop.permute.xlu0 %3167
      %3169 = vrot.lane.b32.xlu0 %v3083, 16
      %v3170 = vpop.permute.xlu0 %3169
      %3171 = vrot.lane.b32.xlu0 %v3084, 16
      %v3172 = vpop.permute.xlu0 %3171
      %3173 = vrot.lane.b32.xlu0 %v3085, 16
      %v3174 = vpop.permute.xlu0 %3173
      %3175 = vrot.lane.b32.xlu0 %v3086, 16
      %v3176 = vpop.permute.xlu0 %3175
      %3177 = vrot.lane.b32.xlu0 %v3087, 16
      %v3178 = vpop.permute.xlu0 %3177
      %3179 = vrot.lane.b32.xlu0 %v3088, 16
      %v3180 = vpop.permute.xlu0 %3179
      %3181 = vrot.lane.b32.xlu0 %v3089, 16
      %v3182 = vpop.permute.xlu0 %3181
      %3183 = vrot.lane.b32.xlu0 %v3090, 16
      %v3184 = vpop.permute.xlu0 %3183
      %3185 = vrot.lane.b32.xlu0 %v3091, 16
      %v3186 = vpop.permute.xlu0 %3185
      %3187 = vrot.lane.b32.xlu0 %v3092, 16
      %v3188 = vpop.permute.xlu0 %3187
      %3221 = vst.msk [vmem:[#allocation5] sm:$0xff] %vm1219, %v3126
      %3222 = vst.msk [vmem:[#allocation5 + $0x8] sm:$0xff] %vm1219, %v3128
      %3223 = vst.msk [vmem:[#allocation5 + $0x10] sm:$0xff] %vm1219, %v3130
      %3224 = vst.msk [vmem:[#allocation5 + $0x18] sm:$0xff] %vm1219, %v3132
      %3225 = vst.msk [vmem:[#allocation5 + $0x20] sm:$0xff] %vm1219, %v3134
      %3226 = vst.msk [vmem:[#allocation5 + $0x28] sm:$0xff] %vm1219, %v3136
      %3227 = vst.msk [vmem:[#allocation5 + $0x30] sm:$0xff] %vm1219, %v3138
      %3228 = vst.msk [vmem:[#allocation5 + $0x38] sm:$0xff] %vm1219, %v3140
      %3229 = vst.msk [vmem:[#allocation5 + $0x40] sm:$0xff] %vm1219, %v3142
      %3230 = vst.msk [vmem:[#allocation5 + $0x48] sm:$0xff] %vm1219, %v3144
      %3231 = vst.msk [vmem:[#allocation5 + $0x50] sm:$0xff] %vm1219, %v3146
      %3232 = vst.msk [vmem:[#allocation5 + $0x58] sm:$0xff] %vm1219, %v3148
      %3233 = vst.msk [vmem:[#allocation5 + $0x60] sm:$0xff] %vm1219, %v3150
      %3234 = vst.msk [vmem:[#allocation5 + $0x68] sm:$0xff] %vm1219, %v3152
      %3235 = vst.msk [vmem:[#allocation5 + $0x70] sm:$0xff] %vm1219, %v3154
      %3236 = vst.msk [vmem:[#allocation5 + $0x78] sm:$0xff] %vm1219, %v3156
      %3237 = vst.msk [vmem:[#allocation5 + $0x80] sm:$0xff] %vm1219, %v3158
      %3238 = vst.msk [vmem:[#allocation5 + $0x88] sm:$0xff] %vm1219, %v3160
      %3239 = vst.msk [vmem:[#allocation5 + $0x90] sm:$0xff] %vm1219, %v3162
      %3240 = vst.msk [vmem:[#allocation5 + $0x98] sm:$0xff] %vm1219, %v3164
      %3241 = vst.msk [vmem:[#allocation5 + $0xa0] sm:$0xff] %vm1219, %v3166
      %3242 = vst.msk [vmem:[#allocation5 + $0xa8] sm:$0xff] %vm1219, %v3168
      %3243 = vst.msk [vmem:[#allocation5 + $0xb0] sm:$0xff] %vm1219, %v3170
      %3244 = vst.msk [vmem:[#allocation5 + $0xb8] sm:$0xff] %vm1219, %v3172
      %3245 = vst.msk [vmem:[#allocation5 + $0xc0] sm:$0xff] %vm1219, %v3174
      %3246 = vst.msk [vmem:[#allocation5 + $0xc8] sm:$0xff] %vm1219, %v3176
      %3247 = vst.msk [vmem:[#allocation5 + $0xd0] sm:$0xff] %vm1219, %v3178
      %3248 = vst.msk [vmem:[#allocation5 + $0xd8] sm:$0xff] %vm1219, %v3180
      %3249 = vst.msk [vmem:[#allocation5 + $0xe0] sm:$0xff] %vm1219, %v3182
      %3250 = vst.msk [vmem:[#allocation5 + $0xe8] sm:$0xff] %vm1219, %v3184
      %3251 = vst.msk [vmem:[#allocation5 + $0xf0] sm:$0xff] %vm1219, %v3186
      %3252 = vst.msk [vmem:[#allocation5 + $0xf8] sm:$0xff] %vm1219, %v3188
      %v3253 = vld [vmem:[%s2388 + $0x2] sm:$0xff]
      %v3254 = vld [vmem:[%s2388 + $0xa] sm:$0xff]
      %v3255 = vld [vmem:[%s2388 + $0x1a] sm:$0xff]
      %v3256 = vld [vmem:[%s2388 + $0x22] sm:$0xff]
      %v3257 = vld [vmem:[%s2388 + $0x32] sm:$0xff]
      %v3258 = vld [vmem:[%s2388 + $0x3a] sm:$0xff]
      %v3259 = vld [vmem:[%s2388 + $0x4a] sm:$0xff]
      %v3260 = vld [vmem:[%s2388 + $0x52] sm:$0xff]
      %v3261 = vld [vmem:[%s2388 + $0x62] sm:$0xff]
      %v3262 = vld [vmem:[%s2388 + $0x6a] sm:$0xff]
      %v3263 = vld [vmem:[%s2388 + $0x7a] sm:$0xff]
      %v3264 = vld [vmem:[%s2388 + $0x82] sm:$0xff]
      %v3265 = vld [vmem:[%s2388 + $0x92] sm:$0xff]
      %v3266 = vld [vmem:[%s2388 + $0x9a] sm:$0xff]
      %v3267 = vld [vmem:[%s2388 + $0xaa] sm:$0xff]
      %v3268 = vld [vmem:[%s2388 + $0xb2] sm:$0xff]
      %v3269 = vld [vmem:[%s2388 + $0xc2] sm:$0xff]
      %v3270 = vld [vmem:[%s2388 + $0xca] sm:$0xff]
      %v3271 = vld [vmem:[%s2388 + $0xda] sm:$0xff]
      %v3272 = vld [vmem:[%s2388 + $0xe2] sm:$0xff]
      %v3273 = vld [vmem:[%s2388 + $0xf2] sm:$0xff]
      %v3274 = vld [vmem:[%s2388 + $0xfa] sm:$0xff]
      %v3275 = vld [vmem:[%s2388 + $0x10a] sm:$0xff]
      %v3276 = vld [vmem:[%s2388 + $0x112] sm:$0xff]
      %v3277 = vld [vmem:[%s2388 + $0x122] sm:$0xff]
      %v3278 = vld [vmem:[%s2388 + $0x12a] sm:$0xff]
      %v3279 = vld [vmem:[%s2388 + $0x13a] sm:$0xff]
      %v3280 = vld [vmem:[%s2388 + $0x142] sm:$0xff]
      %v3281 = vld [vmem:[%s2388 + $0x152] sm:$0xff]
      %v3282 = vld [vmem:[%s2388 + $0x15a] sm:$0xff]
      %v3283 = vld [vmem:[%s2388 + $0x16a] sm:$0xff]
      %v3284 = vld [vmem:[%s2388 + $0x172] sm:$0xff]
      %3317 = vrot.lane.b32.xlu0 %v3253, 20
      %v3318 = vpop.permute.xlu0 %3317
      %3319 = vrot.lane.b32.xlu0 %v3254, 20
      %v3320 = vpop.permute.xlu0 %3319
      %3321 = vrot.lane.b32.xlu0 %v3255, 20
      %v3322 = vpop.permute.xlu0 %3321
      %3323 = vrot.lane.b32.xlu0 %v3256, 20
      %v3324 = vpop.permute.xlu0 %3323
      %3325 = vrot.lane.b32.xlu0 %v3257, 20
      %v3326 = vpop.permute.xlu0 %3325
      %3327 = vrot.lane.b32.xlu0 %v3258, 20
      %v3328 = vpop.permute.xlu0 %3327
      %3329 = vrot.lane.b32.xlu0 %v3259, 20
      %v3330 = vpop.permute.xlu0 %3329
      %3331 = vrot.lane.b32.xlu0 %v3260, 20
      %v3332 = vpop.permute.xlu0 %3331
      %3333 = vrot.lane.b32.xlu0 %v3261, 20
      %v3334 = vpop.permute.xlu0 %3333
      %3335 = vrot.lane.b32.xlu0 %v3262, 20
      %v3336 = vpop.permute.xlu0 %3335
      %3337 = vrot.lane.b32.xlu0 %v3263, 20
      %v3338 = vpop.permute.xlu0 %3337
      %3339 = vrot.lane.b32.xlu0 %v3264, 20
      %v3340 = vpop.permute.xlu0 %3339
      %3341 = vrot.lane.b32.xlu0 %v3265, 20
      %v3342 = vpop.permute.xlu0 %3341
      %3343 = vrot.lane.b32.xlu0 %v3266, 20
      %v3344 = vpop.permute.xlu0 %3343
      %3345 = vrot.lane.b32.xlu0 %v3267, 20
      %v3346 = vpop.permute.xlu0 %3345
      %3347 = vrot.lane.b32.xlu0 %v3268, 20
      %v3348 = vpop.permute.xlu0 %3347
      %3349 = vrot.lane.b32.xlu0 %v3269, 20
      %v3350 = vpop.permute.xlu0 %3349
      %3351 = vrot.lane.b32.xlu0 %v3270, 20
      %v3352 = vpop.permute.xlu0 %3351
      %3353 = vrot.lane.b32.xlu0 %v3271, 20
      %v3354 = vpop.permute.xlu0 %3353
      %3355 = vrot.lane.b32.xlu0 %v3272, 20
      %v3356 = vpop.permute.xlu0 %3355
      %3357 = vrot.lane.b32.xlu0 %v3273, 20
      %v3358 = vpop.permute.xlu0 %3357
      %3359 = vrot.lane.b32.xlu0 %v3274, 20
      %v3360 = vpop.permute.xlu0 %3359
      %3361 = vrot.lane.b32.xlu0 %v3275, 20
      %v3362 = vpop.permute.xlu0 %3361
      %3363 = vrot.lane.b32.xlu0 %v3276, 20
      %v3364 = vpop.permute.xlu0 %3363
      %3365 = vrot.lane.b32.xlu0 %v3277, 20
      %v3366 = vpop.permute.xlu0 %3365
      %3367 = vrot.lane.b32.xlu0 %v3278, 20
      %v3368 = vpop.permute.xlu0 %3367
      %3369 = vrot.lane.b32.xlu0 %v3279, 20
      %v3370 = vpop.permute.xlu0 %3369
      %3371 = vrot.lane.b32.xlu0 %v3280, 20
      %v3372 = vpop.permute.xlu0 %3371
      %3373 = vrot.lane.b32.xlu0 %v3281, 20
      %v3374 = vpop.permute.xlu0 %3373
      %3375 = vrot.lane.b32.xlu0 %v3282, 20
      %v3376 = vpop.permute.xlu0 %3375
      %3377 = vrot.lane.b32.xlu0 %v3283, 20
      %v3378 = vpop.permute.xlu0 %3377
      %3379 = vrot.lane.b32.xlu0 %v3284, 20
      %v3380 = vpop.permute.xlu0 %3379
      %3413 = vst.msk [vmem:[#allocation5] sm:$0xff] %vm1412, %v3318
      %3414 = vst.msk [vmem:[#allocation5 + $0x8] sm:$0xff] %vm1412, %v3320
      %3415 = vst.msk [vmem:[#allocation5 + $0x10] sm:$0xff] %vm1412, %v3322
      %3416 = vst.msk [vmem:[#allocation5 + $0x18] sm:$0xff] %vm1412, %v3324
      %3417 = vst.msk [vmem:[#allocation5 + $0x20] sm:$0xff] %vm1412, %v3326
      %3418 = vst.msk [vmem:[#allocation5 + $0x28] sm:$0xff] %vm1412, %v3328
      %3419 = vst.msk [vmem:[#allocation5 + $0x30] sm:$0xff] %vm1412, %v3330
      %3420 = vst.msk [vmem:[#allocation5 + $0x38] sm:$0xff] %vm1412, %v3332
      %3421 = vst.msk [vmem:[#allocation5 + $0x40] sm:$0xff] %vm1412, %v3334
      %3422 = vst.msk [vmem:[#allocation5 + $0x48] sm:$0xff] %vm1412, %v3336
      %3423 = vst.msk [vmem:[#allocation5 + $0x50] sm:$0xff] %vm1412, %v3338
      %3424 = vst.msk [vmem:[#allocation5 + $0x58] sm:$0xff] %vm1412, %v3340
      %3425 = vst.msk [vmem:[#allocation5 + $0x60] sm:$0xff] %vm1412, %v3342
      %3426 = vst.msk [vmem:[#allocation5 + $0x68] sm:$0xff] %vm1412, %v3344
      %3427 = vst.msk [vmem:[#allocation5 + $0x70] sm:$0xff] %vm1412, %v3346
      %3428 = vst.msk [vmem:[#allocation5 + $0x78] sm:$0xff] %vm1412, %v3348
      %3429 = vst.msk [vmem:[#allocation5 + $0x80] sm:$0xff] %vm1412, %v3350
      %3430 = vst.msk [vmem:[#allocation5 + $0x88] sm:$0xff] %vm1412, %v3352
      %3431 = vst.msk [vmem:[#allocation5 + $0x90] sm:$0xff] %vm1412, %v3354
      %3432 = vst.msk [vmem:[#allocation5 + $0x98] sm:$0xff] %vm1412, %v3356
      %3433 = vst.msk [vmem:[#allocation5 + $0xa0] sm:$0xff] %vm1412, %v3358
      %3434 = vst.msk [vmem:[#allocation5 + $0xa8] sm:$0xff] %vm1412, %v3360
      %3435 = vst.msk [vmem:[#allocation5 + $0xb0] sm:$0xff] %vm1412, %v3362
      %3436 = vst.msk [vmem:[#allocation5 + $0xb8] sm:$0xff] %vm1412, %v3364
      %3437 = vst.msk [vmem:[#allocation5 + $0xc0] sm:$0xff] %vm1412, %v3366
      %3438 = vst.msk [vmem:[#allocation5 + $0xc8] sm:$0xff] %vm1412, %v3368
      %3439 = vst.msk [vmem:[#allocation5 + $0xd0] sm:$0xff] %vm1412, %v3370
      %3440 = vst.msk [vmem:[#allocation5 + $0xd8] sm:$0xff] %vm1412, %v3372
      %3441 = vst.msk [vmem:[#allocation5 + $0xe0] sm:$0xff] %vm1412, %v3374
      %3442 = vst.msk [vmem:[#allocation5 + $0xe8] sm:$0xff] %vm1412, %v3376
      %3443 = vst.msk [vmem:[#allocation5 + $0xf0] sm:$0xff] %vm1412, %v3378
      %3444 = vst.msk [vmem:[#allocation5 + $0xf8] sm:$0xff] %vm1412, %v3380
      %s3445 = scalar_lea.vmem [#allocation3], 48
      %v3446 = vld [vmem:[%s3445] sm:$0xff]
      %v3447 = vld [vmem:[%s3445 + $0x8] sm:$0xff]
      %v3448 = vld [vmem:[%s3445 + $0x18] sm:$0xff]
      %v3449 = vld [vmem:[%s3445 + $0x20] sm:$0xff]
      %v3450 = vld [vmem:[%s3445 + $0x30] sm:$0xff]
      %v3451 = vld [vmem:[%s3445 + $0x38] sm:$0xff]
      %v3452 = vld [vmem:[%s3445 + $0x48] sm:$0xff]
      %v3453 = vld [vmem:[%s3445 + $0x50] sm:$0xff]
      %v3454 = vld [vmem:[%s3445 + $0x60] sm:$0xff]
      %v3455 = vld [vmem:[%s3445 + $0x68] sm:$0xff]
      %v3456 = vld [vmem:[%s3445 + $0x78] sm:$0xff]
      %v3457 = vld [vmem:[%s3445 + $0x80] sm:$0xff]
      %v3458 = vld [vmem:[%s3445 + $0x90] sm:$0xff]
      %v3459 = vld [vmem:[%s3445 + $0x98] sm:$0xff]
      %v3460 = vld [vmem:[%s3445 + $0xa8] sm:$0xff]
      %v3461 = vld [vmem:[%s3445 + $0xb0] sm:$0xff]
      %v3462 = vld [vmem:[%s3445 + $0xc0] sm:$0xff]
      %v3463 = vld [vmem:[%s3445 + $0xc8] sm:$0xff]
      %v3464 = vld [vmem:[%s3445 + $0xd8] sm:$0xff]
      %v3465 = vld [vmem:[%s3445 + $0xe0] sm:$0xff]
      %v3466 = vld [vmem:[%s3445 + $0xf0] sm:$0xff]
      %v3467 = vld [vmem:[%s3445 + $0xf8] sm:$0xff]
      %v3468 = vld [vmem:[%s3445 + $0x108] sm:$0xff]
      %v3469 = vld [vmem:[%s3445 + $0x110] sm:$0xff]
      %v3470 = vld [vmem:[%s3445 + $0x120] sm:$0xff]
      %v3471 = vld [vmem:[%s3445 + $0x128] sm:$0xff]
      %v3472 = vld [vmem:[%s3445 + $0x138] sm:$0xff]
      %v3473 = vld [vmem:[%s3445 + $0x140] sm:$0xff]
      %v3474 = vld [vmem:[%s3445 + $0x150] sm:$0xff]
      %v3475 = vld [vmem:[%s3445 + $0x158] sm:$0xff]
      %v3476 = vld [vmem:[%s3445 + $0x168] sm:$0xff]
      %v3477 = vld [vmem:[%s3445 + $0x170] sm:$0xff]
      %3510 = vrot.lane.b32.xlu0 %v3446, 24
      %v3511 = vpop.permute.xlu0 %3510
      %3512 = vrot.lane.b32.xlu0 %v3447, 24
      %v3513 = vpop.permute.xlu0 %3512
      %3514 = vrot.lane.b32.xlu0 %v3448, 24
      %v3515 = vpop.permute.xlu0 %3514
      %3516 = vrot.lane.b32.xlu0 %v3449, 24
      %v3517 = vpop.permute.xlu0 %3516
      %3518 = vrot.lane.b32.xlu0 %v3450, 24
      %v3519 = vpop.permute.xlu0 %3518
      %3520 = vrot.lane.b32.xlu0 %v3451, 24
      %v3521 = vpop.permute.xlu0 %3520
      %3522 = vrot.lane.b32.xlu0 %v3452, 24
      %v3523 = vpop.permute.xlu0 %3522
      %3524 = vrot.lane.b32.xlu0 %v3453, 24
      %v3525 = vpop.permute.xlu0 %3524
      %3526 = vrot.lane.b32.xlu0 %v3454, 24
      %v3527 = vpop.permute.xlu0 %3526
      %3528 = vrot.lane.b32.xlu0 %v3455, 24
      %v3529 = vpop.permute.xlu0 %3528
      %3530 = vrot.lane.b32.xlu0 %v3456, 24
      %v3531 = vpop.permute.xlu0 %3530
      %3532 = vrot.lane.b32.xlu0 %v3457, 24
      %v3533 = vpop.permute.xlu0 %3532
      %3534 = vrot.lane.b32.xlu0 %v3458, 24
      %v3535 = vpop.permute.xlu0 %3534
      %3536 = vrot.lane.b32.xlu0 %v3459, 24
      %v3537 = vpop.permute.xlu0 %3536
      %3538 = vrot.lane.b32.xlu0 %v3460, 24
      %v3539 = vpop.permute.xlu0 %3538
      %3540 = vrot.lane.b32.xlu0 %v3461, 24
      %v3541 = vpop.permute.xlu0 %3540
      %3542 = vrot.lane.b32.xlu0 %v3462, 24
      %v3543 = vpop.permute.xlu0 %3542
      %3544 = vrot.lane.b32.xlu0 %v3463, 24
      %v3545 = vpop.permute.xlu0 %3544
      %3546 = vrot.lane.b32.xlu0 %v3464, 24
      %v3547 = vpop.permute.xlu0 %3546
      %3548 = vrot.lane.b32.xlu0 %v3465, 24
      %v3549 = vpop.permute.xlu0 %3548
      %3550 = vrot.lane.b32.xlu0 %v3466, 24
      %v3551 = vpop.permute.xlu0 %3550
      %3552 = vrot.lane.b32.xlu0 %v3467, 24
      %v3553 = vpop.permute.xlu0 %3552
      %3554 = vrot.lane.b32.xlu0 %v3468, 24
      %v3555 = vpop.permute.xlu0 %3554
      %3556 = vrot.lane.b32.xlu0 %v3469, 24
      %v3557 = vpop.permute.xlu0 %3556
      %3558 = vrot.lane.b32.xlu0 %v3470, 24
      %v3559 = vpop.permute.xlu0 %3558
      %3560 = vrot.lane.b32.xlu0 %v3471, 24
      %v3561 = vpop.permute.xlu0 %3560
      %3562 = vrot.lane.b32.xlu0 %v3472, 24
      %v3563 = vpop.permute.xlu0 %3562
      %3564 = vrot.lane.b32.xlu0 %v3473, 24
      %v3565 = vpop.permute.xlu0 %3564
      %3566 = vrot.lane.b32.xlu0 %v3474, 24
      %v3567 = vpop.permute.xlu0 %3566
      %3568 = vrot.lane.b32.xlu0 %v3475, 24
      %v3569 = vpop.permute.xlu0 %3568
      %3570 = vrot.lane.b32.xlu0 %v3476, 24
      %v3571 = vpop.permute.xlu0 %3570
      %3572 = vrot.lane.b32.xlu0 %v3477, 24
      %v3573 = vpop.permute.xlu0 %3572
      %3606 = vst.msk [vmem:[#allocation5] sm:$0xff] %vm1606, %v3511
      %3607 = vst.msk [vmem:[#allocation5 + $0x8] sm:$0xff] %vm1606, %v3513
      %3608 = vst.msk [vmem:[#allocation5 + $0x10] sm:$0xff] %vm1606, %v3515
      %3609 = vst.msk [vmem:[#allocation5 + $0x18] sm:$0xff] %vm1606, %v3517
      %3610 = vst.msk [vmem:[#allocation5 + $0x20] sm:$0xff] %vm1606, %v3519
      %3611 = vst.msk [vmem:[#allocation5 + $0x28] sm:$0xff] %vm1606, %v3521
      %3612 = vst.msk [vmem:[#allocation5 + $0x30] sm:$0xff] %vm1606, %v3523
      %3613 = vst.msk [vmem:[#allocation5 + $0x38] sm:$0xff] %vm1606, %v3525
      %3614 = vst.msk [vmem:[#allocation5 + $0x40] sm:$0xff] %vm1606, %v3527
      %3615 = vst.msk [vmem:[#allocation5 + $0x48] sm:$0xff] %vm1606, %v3529
      %3616 = vst.msk [vmem:[#allocation5 + $0x50] sm:$0xff] %vm1606, %v3531
      %3617 = vst.msk [vmem:[#allocation5 + $0x58] sm:$0xff] %vm1606, %v3533
      %3618 = vst.msk [vmem:[#allocation5 + $0x60] sm:$0xff] %vm1606, %v3535
      %3619 = vst.msk [vmem:[#allocation5 + $0x68] sm:$0xff] %vm1606, %v3537
      %3620 = vst.msk [vmem:[#allocation5 + $0x70] sm:$0xff] %vm1606, %v3539
      %3621 = vst.msk [vmem:[#allocation5 + $0x78] sm:$0xff] %vm1606, %v3541
      %3622 = vst.msk [vmem:[#allocation5 + $0x80] sm:$0xff] %vm1606, %v3543
      %3623 = vst.msk [vmem:[#allocation5 + $0x88] sm:$0xff] %vm1606, %v3545
      %3624 = vst.msk [vmem:[#allocation5 + $0x90] sm:$0xff] %vm1606, %v3547
      %3625 = vst.msk [vmem:[#allocation5 + $0x98] sm:$0xff] %vm1606, %v3549
      %3626 = vst.msk [vmem:[#allocation5 + $0xa0] sm:$0xff] %vm1606, %v3551
      %3627 = vst.msk [vmem:[#allocation5 + $0xa8] sm:$0xff] %vm1606, %v3553
      %3628 = vst.msk [vmem:[#allocation5 + $0xb0] sm:$0xff] %vm1606, %v3555
      %3629 = vst.msk [vmem:[#allocation5 + $0xb8] sm:$0xff] %vm1606, %v3557
      %3630 = vst.msk [vmem:[#allocation5 + $0xc0] sm:$0xff] %vm1606, %v3559
      %3631 = vst.msk [vmem:[#allocation5 + $0xc8] sm:$0xff] %vm1606, %v3561
      %3632 = vst.msk [vmem:[#allocation5 + $0xd0] sm:$0xff] %vm1606, %v3563
      %3633 = vst.msk [vmem:[#allocation5 + $0xd8] sm:$0xff] %vm1606, %v3565
      %3634 = vst.msk [vmem:[#allocation5 + $0xe0] sm:$0xff] %vm1606, %v3567
      %3635 = vst.msk [vmem:[#allocation5 + $0xe8] sm:$0xff] %vm1606, %v3569
      %3636 = vst.msk [vmem:[#allocation5 + $0xf0] sm:$0xff] %vm1606, %v3571
      %3637 = vst.msk [vmem:[#allocation5 + $0xf8] sm:$0xff] %vm1606, %v3573
      %v3638 = vld [vmem:[%s3445 + $0x1] sm:$0xff]
      %v3639 = vld [vmem:[%s3445 + $0x9] sm:$0xff]
      %v3640 = vld [vmem:[%s3445 + $0x19] sm:$0xff]
      %v3641 = vld [vmem:[%s3445 + $0x21] sm:$0xff]
      %v3642 = vld [vmem:[%s3445 + $0x31] sm:$0xff]
      %v3643 = vld [vmem:[%s3445 + $0x39] sm:$0xff]
      %v3644 = vld [vmem:[%s3445 + $0x49] sm:$0xff]
      %v3645 = vld [vmem:[%s3445 + $0x51] sm:$0xff]
      %v3646 = vld [vmem:[%s3445 + $0x61] sm:$0xff]
      %v3647 = vld [vmem:[%s3445 + $0x69] sm:$0xff]
      %v3648 = vld [vmem:[%s3445 + $0x79] sm:$0xff]
      %v3649 = vld [vmem:[%s3445 + $0x81] sm:$0xff]
      %v3650 = vld [vmem:[%s3445 + $0x91] sm:$0xff]
      %v3651 = vld [vmem:[%s3445 + $0x99] sm:$0xff]
      %v3652 = vld [vmem:[%s3445 + $0xa9] sm:$0xff]
      %v3653 = vld [vmem:[%s3445 + $0xb1] sm:$0xff]
      %v3654 = vld [vmem:[%s3445 + $0xc1] sm:$0xff]
      %v3655 = vld [vmem:[%s3445 + $0xc9] sm:$0xff]
      %v3656 = vld [vmem:[%s3445 + $0xd9] sm:$0xff]
      %v3657 = vld [vmem:[%s3445 + $0xe1] sm:$0xff]
      %v3658 = vld [vmem:[%s3445 + $0xf1] sm:$0xff]
      %v3659 = vld [vmem:[%s3445 + $0xf9] sm:$0xff]
      %v3660 = vld [vmem:[%s3445 + $0x109] sm:$0xff]
      %v3661 = vld [vmem:[%s3445 + $0x111] sm:$0xff]
      %v3662 = vld [vmem:[%s3445 + $0x121] sm:$0xff]
      %v3663 = vld [vmem:[%s3445 + $0x129] sm:$0xff]
      %v3664 = vld [vmem:[%s3445 + $0x139] sm:$0xff]
      %v3665 = vld [vmem:[%s3445 + $0x141] sm:$0xff]
      %v3666 = vld [vmem:[%s3445 + $0x151] sm:$0xff]
      %v3667 = vld [vmem:[%s3445 + $0x159] sm:$0xff]
      %v3668 = vld [vmem:[%s3445 + $0x169] sm:$0xff]
      %v3669 = vld [vmem:[%s3445 + $0x171] sm:$0xff]
      %3702 = vrot.lane.b32.xlu0 %v3638, 28
      %v3703 = vpop.permute.xlu0 %3702
      %3704 = vrot.lane.b32.xlu0 %v3639, 28
      %v3705 = vpop.permute.xlu0 %3704
      %3706 = vrot.lane.b32.xlu0 %v3640, 28
      %v3707 = vpop.permute.xlu0 %3706
      %3708 = vrot.lane.b32.xlu0 %v3641, 28
      %v3709 = vpop.permute.xlu0 %3708
      %3710 = vrot.lane.b32.xlu0 %v3642, 28
      %v3711 = vpop.permute.xlu0 %3710
      %3712 = vrot.lane.b32.xlu0 %v3643, 28
      %v3713 = vpop.permute.xlu0 %3712
      %3714 = vrot.lane.b32.xlu0 %v3644, 28
      %v3715 = vpop.permute.xlu0 %3714
      %3716 = vrot.lane.b32.xlu0 %v3645, 28
      %v3717 = vpop.permute.xlu0 %3716
      %3718 = vrot.lane.b32.xlu0 %v3646, 28
      %v3719 = vpop.permute.xlu0 %3718
      %3720 = vrot.lane.b32.xlu0 %v3647, 28
      %v3721 = vpop.permute.xlu0 %3720
      %3722 = vrot.lane.b32.xlu0 %v3648, 28
      %v3723 = vpop.permute.xlu0 %3722
      %3724 = vrot.lane.b32.xlu0 %v3649, 28
      %v3725 = vpop.permute.xlu0 %3724
      %3726 = vrot.lane.b32.xlu0 %v3650, 28
      %v3727 = vpop.permute.xlu0 %3726
      %3728 = vrot.lane.b32.xlu0 %v3651, 28
      %v3729 = vpop.permute.xlu0 %3728
      %3730 = vrot.lane.b32.xlu0 %v3652, 28
      %v3731 = vpop.permute.xlu0 %3730
      %3732 = vrot.lane.b32.xlu0 %v3653, 28
      %v3733 = vpop.permute.xlu0 %3732
      %3734 = vrot.lane.b32.xlu0 %v3654, 28
      %v3735 = vpop.permute.xlu0 %3734
      %3736 = vrot.lane.b32.xlu0 %v3655, 28
      %v3737 = vpop.permute.xlu0 %3736
      %3738 = vrot.lane.b32.xlu0 %v3656, 28
      %v3739 = vpop.permute.xlu0 %3738
      %3740 = vrot.lane.b32.xlu0 %v3657, 28
      %v3741 = vpop.permute.xlu0 %3740
      %3742 = vrot.lane.b32.xlu0 %v3658, 28
      %v3743 = vpop.permute.xlu0 %3742
      %3744 = vrot.lane.b32.xlu0 %v3659, 28
      %v3745 = vpop.permute.xlu0 %3744
      %3746 = vrot.lane.b32.xlu0 %v3660, 28
      %v3747 = vpop.permute.xlu0 %3746
      %3748 = vrot.lane.b32.xlu0 %v3661, 28
      %v3749 = vpop.permute.xlu0 %3748
      %3750 = vrot.lane.b32.xlu0 %v3662, 28
      %v3751 = vpop.permute.xlu0 %3750
      %3752 = vrot.lane.b32.xlu0 %v3663, 28
      %v3753 = vpop.permute.xlu0 %3752
      %3754 = vrot.lane.b32.xlu0 %v3664, 28
      %v3755 = vpop.permute.xlu0 %3754
      %3756 = vrot.lane.b32.xlu0 %v3665, 28
      %v3757 = vpop.permute.xlu0 %3756
      %3758 = vrot.lane.b32.xlu0 %v3666, 28
      %v3759 = vpop.permute.xlu0 %3758
      %3760 = vrot.lane.b32.xlu0 %v3667, 28
      %v3761 = vpop.permute.xlu0 %3760
      %3762 = vrot.lane.b32.xlu0 %v3668, 28
      %v3763 = vpop.permute.xlu0 %3762
      %3764 = vrot.lane.b32.xlu0 %v3669, 28
      %v3765 = vpop.permute.xlu0 %3764
      %3798 = vst.msk [vmem:[#allocation5] sm:$0xff] %vm1799, %v3703
      %3799 = vst.msk [vmem:[#allocation5 + $0x8] sm:$0xff] %vm1799, %v3705
      %3800 = vst.msk [vmem:[#allocation5 + $0x10] sm:$0xff] %vm1799, %v3707
      %3801 = vst.msk [vmem:[#allocation5 + $0x18] sm:$0xff] %vm1799, %v3709
      %3802 = vst.msk [vmem:[#allocation5 + $0x20] sm:$0xff] %vm1799, %v3711
      %3803 = vst.msk [vmem:[#allocation5 + $0x28] sm:$0xff] %vm1799, %v3713
      %3804 = vst.msk [vmem:[#allocation5 + $0x30] sm:$0xff] %vm1799, %v3715
      %3805 = vst.msk [vmem:[#allocation5 + $0x38] sm:$0xff] %vm1799, %v3717
      %3806 = vst.msk [vmem:[#allocation5 + $0x40] sm:$0xff] %vm1799, %v3719
      %3807 = vst.msk [vmem:[#allocation5 + $0x48] sm:$0xff] %vm1799, %v3721
      %3808 = vst.msk [vmem:[#allocation5 + $0x50] sm:$0xff] %vm1799, %v3723
      %3809 = vst.msk [vmem:[#allocation5 + $0x58] sm:$0xff] %vm1799, %v3725
      %3810 = vst.msk [vmem:[#allocation5 + $0x60] sm:$0xff] %vm1799, %v3727
      %3811 = vst.msk [vmem:[#allocation5 + $0x68] sm:$0xff] %vm1799, %v3729
      %3812 = vst.msk [vmem:[#allocation5 + $0x70] sm:$0xff] %vm1799, %v3731
      %3813 = vst.msk [vmem:[#allocation5 + $0x78] sm:$0xff] %vm1799, %v3733
      %3814 = vst.msk [vmem:[#allocation5 + $0x80] sm:$0xff] %vm1799, %v3735
      %3815 = vst.msk [vmem:[#allocation5 + $0x88] sm:$0xff] %vm1799, %v3737
      %3816 = vst.msk [vmem:[#allocation5 + $0x90] sm:$0xff] %vm1799, %v3739
      %3817 = vst.msk [vmem:[#allocation5 + $0x98] sm:$0xff] %vm1799, %v3741
      %3818 = vst.msk [vmem:[#allocation5 + $0xa0] sm:$0xff] %vm1799, %v3743
      %3819 = vst.msk [vmem:[#allocation5 + $0xa8] sm:$0xff] %vm1799, %v3745
      %3820 = vst.msk [vmem:[#allocation5 + $0xb0] sm:$0xff] %vm1799, %v3747
      %3821 = vst.msk [vmem:[#allocation5 + $0xb8] sm:$0xff] %vm1799, %v3749
      %3822 = vst.msk [vmem:[#allocation5 + $0xc0] sm:$0xff] %vm1799, %v3751
      %3823 = vst.msk [vmem:[#allocation5 + $0xc8] sm:$0xff] %vm1799, %v3753
      %3824 = vst.msk [vmem:[#allocation5 + $0xd0] sm:$0xff] %vm1799, %v3755
      %3825 = vst.msk [vmem:[#allocation5 + $0xd8] sm:$0xff] %vm1799, %v3757
      %3826 = vst.msk [vmem:[#allocation5 + $0xe0] sm:$0xff] %vm1799, %v3759
      %3827 = vst.msk [vmem:[#allocation5 + $0xe8] sm:$0xff] %vm1799, %v3761
      %3828 = vst.msk [vmem:[#allocation5 + $0xf0] sm:$0xff] %vm1799, %v3763
      %3829 = vst.msk [vmem:[#allocation5 + $0xf8] sm:$0xff] %vm1799, %v3765
      %v3830 = vld [vmem:[%s3445 + $0x2] sm:$0xff]
      %v3831 = vld [vmem:[%s3445 + $0xa] sm:$0xff]
      %v3832 = vld [vmem:[%s3445 + $0x1a] sm:$0xff]
      %v3833 = vld [vmem:[%s3445 + $0x22] sm:$0xff]
      %v3834 = vld [vmem:[%s3445 + $0x32] sm:$0xff]
      %v3835 = vld [vmem:[%s3445 + $0x3a] sm:$0xff]
      %v3836 = vld [vmem:[%s3445 + $0x4a] sm:$0xff]
      %v3837 = vld [vmem:[%s3445 + $0x52] sm:$0xff]
      %v3838 = vld [vmem:[%s3445 + $0x62] sm:$0xff]
      %v3839 = vld [vmem:[%s3445 + $0x6a] sm:$0xff]
      %v3840 = vld [vmem:[%s3445 + $0x7a] sm:$0xff]
      %v3841 = vld [vmem:[%s3445 + $0x82] sm:$0xff]
      %v3842 = vld [vmem:[%s3445 + $0x92] sm:$0xff]
      %v3843 = vld [vmem:[%s3445 + $0x9a] sm:$0xff]
      %v3844 = vld [vmem:[%s3445 + $0xaa] sm:$0xff]
      %v3845 = vld [vmem:[%s3445 + $0xb2] sm:$0xff]
      %v3846 = vld [vmem:[%s3445 + $0xc2] sm:$0xff]
      %v3847 = vld [vmem:[%s3445 + $0xca] sm:$0xff]
      %v3848 = vld [vmem:[%s3445 + $0xda] sm:$0xff]
      %v3849 = vld [vmem:[%s3445 + $0xe2] sm:$0xff]
      %v3850 = vld [vmem:[%s3445 + $0xf2] sm:$0xff]
      %v3851 = vld [vmem:[%s3445 + $0xfa] sm:$0xff]
      %v3852 = vld [vmem:[%s3445 + $0x10a] sm:$0xff]
      %v3853 = vld [vmem:[%s3445 + $0x112] sm:$0xff]
      %v3854 = vld [vmem:[%s3445 + $0x122] sm:$0xff]
      %v3855 = vld [vmem:[%s3445 + $0x12a] sm:$0xff]
      %v3856 = vld [vmem:[%s3445 + $0x13a] sm:$0xff]
      %v3857 = vld [vmem:[%s3445 + $0x142] sm:$0xff]
      %v3858 = vld [vmem:[%s3445 + $0x152] sm:$0xff]
      %v3859 = vld [vmem:[%s3445 + $0x15a] sm:$0xff]
      %v3860 = vld [vmem:[%s3445 + $0x16a] sm:$0xff]
      %v3861 = vld [vmem:[%s3445 + $0x172] sm:$0xff]
      %3894 = vrot.lane.b32.xlu0 %v3830, 32
      %v3895 = vpop.permute.xlu0 %3894
      %3896 = vrot.lane.b32.xlu0 %v3831, 32
      %v3897 = vpop.permute.xlu0 %3896
      %3898 = vrot.lane.b32.xlu0 %v3832, 32
      %v3899 = vpop.permute.xlu0 %3898
      %3900 = vrot.lane.b32.xlu0 %v3833, 32
      %v3901 = vpop.permute.xlu0 %3900
      %3902 = vrot.lane.b32.xlu0 %v3834, 32
      %v3903 = vpop.permute.xlu0 %3902
      %3904 = vrot.lane.b32.xlu0 %v3835, 32
      %v3905 = vpop.permute.xlu0 %3904
      %3906 = vrot.lane.b32.xlu0 %v3836, 32
      %v3907 = vpop.permute.xlu0 %3906
      %3908 = vrot.lane.b32.xlu0 %v3837, 32
      %v3909 = vpop.permute.xlu0 %3908
      %3910 = vrot.lane.b32.xlu0 %v3838, 32
      %v3911 = vpop.permute.xlu0 %3910
      %3912 = vrot.lane.b32.xlu0 %v3839, 32
      %v3913 = vpop.permute.xlu0 %3912
      %3914 = vrot.lane.b32.xlu0 %v3840, 32
      %v3915 = vpop.permute.xlu0 %3914
      %3916 = vrot.lane.b32.xlu0 %v3841, 32
      %v3917 = vpop.permute.xlu0 %3916
      %3918 = vrot.lane.b32.xlu0 %v3842, 32
      %v3919 = vpop.permute.xlu0 %3918
      %3920 = vrot.lane.b32.xlu0 %v3843, 32
      %v3921 = vpop.permute.xlu0 %3920
      %3922 = vrot.lane.b32.xlu0 %v3844, 32
      %v3923 = vpop.permute.xlu0 %3922
      %3924 = vrot.lane.b32.xlu0 %v3845, 32
      %v3925 = vpop.permute.xlu0 %3924
      %3926 = vrot.lane.b32.xlu0 %v3846, 32
      %v3927 = vpop.permute.xlu0 %3926
      %3928 = vrot.lane.b32.xlu0 %v3847, 32
      %v3929 = vpop.permute.xlu0 %3928
      %3930 = vrot.lane.b32.xlu0 %v3848, 32
      %v3931 = vpop.permute.xlu0 %3930
      %3932 = vrot.lane.b32.xlu0 %v3849, 32
      %v3933 = vpop.permute.xlu0 %3932
      %3934 = vrot.lane.b32.xlu0 %v3850, 32
      %v3935 = vpop.permute.xlu0 %3934
      %3936 = vrot.lane.b32.xlu0 %v3851, 32
      %v3937 = vpop.permute.xlu0 %3936
      %3938 = vrot.lane.b32.xlu0 %v3852, 32
      %v3939 = vpop.permute.xlu0 %3938
      %3940 = vrot.lane.b32.xlu0 %v3853, 32
      %v3941 = vpop.permute.xlu0 %3940
      %3942 = vrot.lane.b32.xlu0 %v3854, 32
      %v3943 = vpop.permute.xlu0 %3942
      %3944 = vrot.lane.b32.xlu0 %v3855, 32
      %v3945 = vpop.permute.xlu0 %3944
      %3946 = vrot.lane.b32.xlu0 %v3856, 32
      %v3947 = vpop.permute.xlu0 %3946
      %3948 = vrot.lane.b32.xlu0 %v3857, 32
      %v3949 = vpop.permute.xlu0 %3948
      %3950 = vrot.lane.b32.xlu0 %v3858, 32
      %v3951 = vpop.permute.xlu0 %3950
      %3952 = vrot.lane.b32.xlu0 %v3859, 32
      %v3953 = vpop.permute.xlu0 %3952
      %3954 = vrot.lane.b32.xlu0 %v3860, 32
      %v3955 = vpop.permute.xlu0 %3954
      %3956 = vrot.lane.b32.xlu0 %v3861, 32
      %v3957 = vpop.permute.xlu0 %3956
      %3990 = vst.msk [vmem:[#allocation5] sm:$0xff] %vm1992, %v3895
      %3991 = vst.msk [vmem:[#allocation5 + $0x8] sm:$0xff] %vm1992, %v3897
      %3992 = vst.msk [vmem:[#allocation5 + $0x10] sm:$0xff] %vm1992, %v3899
      %3993 = vst.msk [vmem:[#allocation5 + $0x18] sm:$0xff] %vm1992, %v3901
      %3994 = vst.msk [vmem:[#allocation5 + $0x20] sm:$0xff] %vm1992, %v3903
      %3995 = vst.msk [vmem:[#allocation5 + $0x28] sm:$0xff] %vm1992, %v3905
      %3996 = vst.msk [vmem:[#allocation5 + $0x30] sm:$0xff] %vm1992, %v3907
      %3997 = vst.msk [vmem:[#allocation5 + $0x38] sm:$0xff] %vm1992, %v3909
      %3998 = vst.msk [vmem:[#allocation5 + $0x40] sm:$0xff] %vm1992, %v3911
      %3999 = vst.msk [vmem:[#allocation5 + $0x48] sm:$0xff] %vm1992, %v3913
      %4000 = vst.msk [vmem:[#allocation5 + $0x50] sm:$0xff] %vm1992, %v3915
      %4001 = vst.msk [vmem:[#allocation5 + $0x58] sm:$0xff] %vm1992, %v3917
      %4002 = vst.msk [vmem:[#allocation5 + $0x60] sm:$0xff] %vm1992, %v3919
      %4003 = vst.msk [vmem:[#allocation5 + $0x68] sm:$0xff] %vm1992, %v3921
      %4004 = vst.msk [vmem:[#allocation5 + $0x70] sm:$0xff] %vm1992, %v3923
      %4005 = vst.msk [vmem:[#allocation5 + $0x78] sm:$0xff] %vm1992, %v3925
      %4006 = vst.msk [vmem:[#allocation5 + $0x80] sm:$0xff] %vm1992, %v3927
      %4007 = vst.msk [vmem:[#allocation5 + $0x88] sm:$0xff] %vm1992, %v3929
      %4008 = vst.msk [vmem:[#allocation5 + $0x90] sm:$0xff] %vm1992, %v3931
      %4009 = vst.msk [vmem:[#allocation5 + $0x98] sm:$0xff] %vm1992, %v3933
      %4010 = vst.msk [vmem:[#allocation5 + $0xa0] sm:$0xff] %vm1992, %v3935
      %4011 = vst.msk [vmem:[#allocation5 + $0xa8] sm:$0xff] %vm1992, %v3937
      %4012 = vst.msk [vmem:[#allocation5 + $0xb0] sm:$0xff] %vm1992, %v3939
      %4013 = vst.msk [vmem:[#allocation5 + $0xb8] sm:$0xff] %vm1992, %v3941
      %4014 = vst.msk [vmem:[#allocation5 + $0xc0] sm:$0xff] %vm1992, %v3943
      %4015 = vst.msk [vmem:[#allocation5 + $0xc8] sm:$0xff] %vm1992, %v3945
      %4016 = vst.msk [vmem:[#allocation5 + $0xd0] sm:$0xff] %vm1992, %v3947
      %4017 = vst.msk [vmem:[#allocation5 + $0xd8] sm:$0xff] %vm1992, %v3949
      %4018 = vst.msk [vmem:[#allocation5 + $0xe0] sm:$0xff] %vm1992, %v3951
      %4019 = vst.msk [vmem:[#allocation5 + $0xe8] sm:$0xff] %vm1992, %v3953
      %4020 = vst.msk [vmem:[#allocation5 + $0xf0] sm:$0xff] %vm1992, %v3955
      %4021 = vst.msk [vmem:[#allocation5 + $0xf8] sm:$0xff] %vm1992, %v3957
      %4054 = vrot.lane.b32.xlu0 %v350, 37
      %v4055 = vpop.permute.xlu0 %4054
      %4056 = vrot.lane.b32.xlu0 %v351, 37
      %v4057 = vpop.permute.xlu0 %4056
      %4058 = vrot.lane.b32.xlu0 %v352, 37
      %v4059 = vpop.permute.xlu0 %4058
      %4060 = vrot.lane.b32.xlu0 %v353, 37
      %v4061 = vpop.permute.xlu0 %4060
      %4062 = vrot.lane.b32.xlu0 %v354, 37
      %v4063 = vpop.permute.xlu0 %4062
      %4064 = vrot.lane.b32.xlu0 %v355, 37
      %v4065 = vpop.permute.xlu0 %4064
      %4066 = vrot.lane.b32.xlu0 %v356, 37
      %v4067 = vpop.permute.xlu0 %4066
      %4068 = vrot.lane.b32.xlu0 %v357, 37
      %v4069 = vpop.permute.xlu0 %4068
      %4070 = vrot.lane.b32.xlu0 %v358, 37
      %v4071 = vpop.permute.xlu0 %4070
      %4072 = vrot.lane.b32.xlu0 %v359, 37
      %v4073 = vpop.permute.xlu0 %4072
      %4074 = vrot.lane.b32.xlu0 %v360, 37
      %v4075 = vpop.permute.xlu0 %4074
      %4076 = vrot.lane.b32.xlu0 %v361, 37
      %v4077 = vpop.permute.xlu0 %4076
      %4078 = vrot.lane.b32.xlu0 %v362, 37
      %v4079 = vpop.permute.xlu0 %4078
      %4080 = vrot.lane.b32.xlu0 %v363, 37
      %v4081 = vpop.permute.xlu0 %4080
      %4082 = vrot.lane.b32.xlu0 %v364, 37
      %v4083 = vpop.permute.xlu0 %4082
      %4084 = vrot.lane.b32.xlu0 %v365, 37
      %v4085 = vpop.permute.xlu0 %4084
      %4086 = vrot.lane.b32.xlu0 %v366, 37
      %v4087 = vpop.permute.xlu0 %4086
      %4088 = vrot.lane.b32.xlu0 %v367, 37
      %v4089 = vpop.permute.xlu0 %4088
      %4090 = vrot.lane.b32.xlu0 %v368, 37
      %v4091 = vpop.permute.xlu0 %4090
      %4092 = vrot.lane.b32.xlu0 %v369, 37
      %v4093 = vpop.permute.xlu0 %4092
      %4094 = vrot.lane.b32.xlu0 %v370, 37
      %v4095 = vpop.permute.xlu0 %4094
      %4096 = vrot.lane.b32.xlu0 %v371, 37
      %v4097 = vpop.permute.xlu0 %4096
      %4098 = vrot.lane.b32.xlu0 %v372, 37
      %v4099 = vpop.permute.xlu0 %4098
      %4100 = vrot.lane.b32.xlu0 %v373, 37
      %v4101 = vpop.permute.xlu0 %4100
      %4102 = vrot.lane.b32.xlu0 %v374, 37
      %v4103 = vpop.permute.xlu0 %4102
      %4104 = vrot.lane.b32.xlu0 %v375, 37
      %v4105 = vpop.permute.xlu0 %4104
      %4106 = vrot.lane.b32.xlu0 %v376, 37
      %v4107 = vpop.permute.xlu0 %4106
      %4108 = vrot.lane.b32.xlu0 %v377, 37
      %v4109 = vpop.permute.xlu0 %4108
      %4110 = vrot.lane.b32.xlu0 %v378, 37
      %v4111 = vpop.permute.xlu0 %4110
      %4112 = vrot.lane.b32.xlu0 %v379, 37
      %v4113 = vpop.permute.xlu0 %4112
      %4114 = vrot.lane.b32.xlu0 %v380, 37
      %v4115 = vpop.permute.xlu0 %4114
      %4116 = vrot.lane.b32.xlu0 %v381, 37
      %v4117 = vpop.permute.xlu0 %4116
      %vm4150 = vcmask 335144
      %4151 = vst.msk [vmem:[#allocation5] sm:$0xff] %vm4150, %v4055
      %4152 = vst.msk [vmem:[#allocation5 + $0x8] sm:$0xff] %vm4150, %v4057
      %4153 = vst.msk [vmem:[#allocation5 + $0x10] sm:$0xff] %vm4150, %v4059
      %4154 = vst.msk [vmem:[#allocation5 + $0x18] sm:$0xff] %vm4150, %v4061
      %4155 = vst.msk [vmem:[#allocation5 + $0x20] sm:$0xff] %vm4150, %v4063
      %4156 = vst.msk [vmem:[#allocation5 + $0x28] sm:$0xff] %vm4150, %v4065
      %4157 = vst.msk [vmem:[#allocation5 + $0x30] sm:$0xff] %vm4150, %v4067
      %4158 = vst.msk [vmem:[#allocation5 + $0x38] sm:$0xff] %vm4150, %v4069
      %4159 = vst.msk [vmem:[#allocation5 + $0x40] sm:$0xff] %vm4150, %v4071
      %4160 = vst.msk [vmem:[#allocation5 + $0x48] sm:$0xff] %vm4150, %v4073
      %4161 = vst.msk [vmem:[#allocation5 + $0x50] sm:$0xff] %vm4150, %v4075
      %4162 = vst.msk [vmem:[#allocation5 + $0x58] sm:$0xff] %vm4150, %v4077
      %4163 = vst.msk [vmem:[#allocation5 + $0x60] sm:$0xff] %vm4150, %v4079
      %4164 = vst.msk [vmem:[#allocation5 + $0x68] sm:$0xff] %vm4150, %v4081
      %4165 = vst.msk [vmem:[#allocation5 + $0x70] sm:$0xff] %vm4150, %v4083
      %4166 = vst.msk [vmem:[#allocation5 + $0x78] sm:$0xff] %vm4150, %v4085
      %4167 = vst.msk [vmem:[#allocation5 + $0x80] sm:$0xff] %vm4150, %v4087
      %4168 = vst.msk [vmem:[#allocation5 + $0x88] sm:$0xff] %vm4150, %v4089
      %4169 = vst.msk [vmem:[#allocation5 + $0x90] sm:$0xff] %vm4150, %v4091
      %4170 = vst.msk [vmem:[#allocation5 + $0x98] sm:$0xff] %vm4150, %v4093
      %4171 = vst.msk [vmem:[#allocation5 + $0xa0] sm:$0xff] %vm4150, %v4095
      %4172 = vst.msk [vmem:[#allocation5 + $0xa8] sm:$0xff] %vm4150, %v4097
      %4173 = vst.msk [vmem:[#allocation5 + $0xb0] sm:$0xff] %vm4150, %v4099
      %4174 = vst.msk [vmem:[#allocation5 + $0xb8] sm:$0xff] %vm4150, %v4101
      %4175 = vst.msk [vmem:[#allocation5 + $0xc0] sm:$0xff] %vm4150, %v4103
      %4176 = vst.msk [vmem:[#allocation5 + $0xc8] sm:$0xff] %vm4150, %v4105
      %4177 = vst.msk [vmem:[#allocation5 + $0xd0] sm:$0xff] %vm4150, %v4107
      %4178 = vst.msk [vmem:[#allocation5 + $0xd8] sm:$0xff] %vm4150, %v4109
      %4179 = vst.msk [vmem:[#allocation5 + $0xe0] sm:$0xff] %vm4150, %v4111
      %4180 = vst.msk [vmem:[#allocation5 + $0xe8] sm:$0xff] %vm4150, %v4113
      %4181 = vst.msk [vmem:[#allocation5 + $0xf0] sm:$0xff] %vm4150, %v4115
      %4182 = vst.msk [vmem:[#allocation5 + $0xf8] sm:$0xff] %vm4150, %v4117
      %v4183 = vld [vmem:[#allocation5] sm:$0xff]
      %v4184 = vld [vmem:[#allocation5 + $0x8] sm:$0xff]
      %v4185 = vld [vmem:[#allocation5 + $0x10] sm:$0xff]
      %v4186 = vld [vmem:[#allocation5 + $0x18] sm:$0xff]
      %v4187 = vld [vmem:[#allocation5 + $0x20] sm:$0xff]
      %v4188 = vld [vmem:[#allocation5 + $0x28] sm:$0xff]
      %v4189 = vld [vmem:[#allocation5 + $0x30] sm:$0xff]
      %v4190 = vld [vmem:[#allocation5 + $0x38] sm:$0xff]
      %v4191 = vld [vmem:[#allocation5 + $0x40] sm:$0xff]
      %v4192 = vld [vmem:[#allocation5 + $0x48] sm:$0xff]
      %v4193 = vld [vmem:[#allocation5 + $0x50] sm:$0xff]
      %v4194 = vld [vmem:[#allocation5 + $0x58] sm:$0xff]
      %v4195 = vld [vmem:[#allocation5 + $0x60] sm:$0xff]
      %v4196 = vld [vmem:[#allocation5 + $0x68] sm:$0xff]
      %v4197 = vld [vmem:[#allocation5 + $0x70] sm:$0xff]
      %v4198 = vld [vmem:[#allocation5 + $0x78] sm:$0xff]
      %v4199 = vld [vmem:[#allocation5 + $0x80] sm:$0xff]
      %v4200 = vld [vmem:[#allocation5 + $0x88] sm:$0xff]
      %v4201 = vld [vmem:[#allocation5 + $0x90] sm:$0xff]
      %v4202 = vld [vmem:[#allocation5 + $0x98] sm:$0xff]
      %v4203 = vld [vmem:[#allocation5 + $0xa0] sm:$0xff]
      %v4204 = vld [vmem:[#allocation5 + $0xa8] sm:$0xff]
      %v4205 = vld [vmem:[#allocation5 + $0xb0] sm:$0xff]
      %v4206 = vld [vmem:[#allocation5 + $0xb8] sm:$0xff]
      %v4207 = vld [vmem:[#allocation5 + $0xc0] sm:$0xff]
      %v4208 = vld [vmem:[#allocation5 + $0xc8] sm:$0xff]
      %v4209 = vld [vmem:[#allocation5 + $0xd0] sm:$0xff]
      %v4210 = vld [vmem:[#allocation5 + $0xd8] sm:$0xff]
      %v4211 = vld [vmem:[#allocation5 + $0xe0] sm:$0xff]
      %v4212 = vld [vmem:[#allocation5 + $0xe8] sm:$0xff]
      %v4213 = vld [vmem:[#allocation5 + $0xf0] sm:$0xff]
      %v4214 = vld [vmem:[#allocation5 + $0xf8] sm:$0xff]
      %v4215 = vld [vmem:[%s2] sm:$0xff]
      %v4216 = vld [vmem:[%s2 + $0x8] sm:$0xff]
      %v4217 = vld [vmem:[%s2 + $0x10] sm:$0xff]
      %v4218 = vld [vmem:[%s2 + $0x18] sm:$0xff]
      %v4219 = vld [vmem:[%s2 + $0x20] sm:$0xff]
      %v4220 = vld [vmem:[%s2 + $0x28] sm:$0x1]
      %vm4221 = vcmask 334848
      %v4223 = vsel %vm4221, %v4183, 0
      %v4226 = vsel %vm4221, %v4184, 0
      %v4229 = vsel %vm4221, %v4185, 0
      %v4232 = vsel %vm4221, %v4186, 0
      %v4235 = vsel %vm4221, %v4187, 0
      %v4238 = vsel %vm4221, %v4188, 0
      %v4241 = vsel %vm4221, %v4189, 0
      %v4244 = vsel %vm4221, %v4190, 0
      %v4247 = vsel %vm4221, %v4191, 0
      %v4250 = vsel %vm4221, %v4192, 0
      %v4253 = vsel %vm4221, %v4193, 0
      %v4256 = vsel %vm4221, %v4194, 0
      %v4259 = vsel %vm4221, %v4195, 0
      %v4262 = vsel %vm4221, %v4196, 0
      %v4265 = vsel %vm4221, %v4197, 0
      %v4268 = vsel %vm4221, %v4198, 0
      %v4271 = vsel %vm4221, %v4199, 0
      %v4274 = vsel %vm4221, %v4200, 0
      %v4277 = vsel %vm4221, %v4201, 0
      %v4280 = vsel %vm4221, %v4202, 0
      %v4283 = vsel %vm4221, %v4203, 0
      %v4286 = vsel %vm4221, %v4204, 0
      %v4289 = vsel %vm4221, %v4205, 0
      %v4292 = vsel %vm4221, %v4206, 0
      %v4295 = vsel %vm4221, %v4207, 0
      %v4298 = vsel %vm4221, %v4208, 0
      %v4301 = vsel %vm4221, %v4209, 0
      %v4304 = vsel %vm4221, %v4210, 0
      %v4307 = vsel %vm4221, %v4211, 0
      %v4310 = vsel %vm4221, %v4212, 0
      %v4313 = vsel %vm4221, %v4213, 0
      %v4316 = vsel %vm4221, %v4214, 0
      %vm4318 = vcmask 1040384
      %v4320 = vsel %vm4318, %v4220, 0
      %4322 = vmatprep.subr.mxu0 0.0
      %4323 = vmatpush1.msra.mxu0 0.0
      %4324 = vmatprep.subr.mxu0 0.0
      %4325 = vmatpush1.msra.mxu0 0.0
      %4326 = vmatprep.subr.mxu0 0.0
      %4327 = vmatpush1.msra.mxu0 0.0
      %4328 = vmatprep.subr.mxu0 0.0
      %4329 = vmatpush1.msra.mxu0 0.0
      %4330 = vmatprep.subr.mxu0 0.0
      %4331 = vmatpush1.msra.mxu0 0.0
      %4332 = vmatprep.subr.mxu0 0.0
      %4333 = vmatpush1.msra.mxu0 0.0
      %4334 = vmatprep.subr.mxu0 0.0
      %4335 = vmatpush1.msra.mxu0 0.0
      %4336 = vmatprep.subr.mxu0 0.0
      %4337 = vmatpush1.msra.mxu0 0.0
      %4338 = vmatprep.subr.mxu0 0.0
      %4339 = vmatpush1.msra.mxu0 0.0
      %4340 = vmatprep.subr.mxu0 0.0
      %4341 = vmatpush1.msra.mxu0 0.0
      %4342 = vmatprep.subr.mxu0 0.0
      %4343 = vmatpush1.msra.mxu0 %v4320
      %4344 = vmatprep.subr.mxu0 0.0
      %4345 = vmatpush1.msra.mxu0 %v4219
      %4346 = vmatprep.subr.mxu0 0.0
      %4347 = vmatpush1.msra.mxu0 %v4218
      %4348 = vmatprep.subr.mxu0 0.0
      %4349 = vmatpush1.msra.mxu0 %v4217
      %4350 = vmatprep.subr.mxu0 0.0
      %4351 = vmatpush1.msra.mxu0 %v4216
      %4352 = vmatprep.subr.mxu0 0.0
      %4353 = vmatpush1.msra.mxu0 %v4215
      %4354 = vmatprep.subr.mxu0 0.0
      %4355 = vmatpush2.msra.mxu0 0.0
      %4356 = vmatprep.subr.mxu0 0.0
      %4357 = vmatpush2.msra.mxu0 0.0
      %4358 = vmatprep.subr.mxu0 0.0
      %4359 = vmatpush2.msra.mxu0 0.0
      %4360 = vmatprep.subr.mxu0 0.0
      %4361 = vmatpush2.msra.mxu0 0.0
      %4362 = vmatprep.subr.mxu0 0.0
      %4363 = vmatpush2.msra.mxu0 0.0
      %4364 = vmatprep.subr.mxu0 0.0
      %4365 = vmatpush2.msra.mxu0 0.0
      %4366 = vmatprep.subr.mxu0 0.0
      %4367 = vmatpush2.msra.mxu0 0.0
      %4368 = vmatprep.subr.mxu0 0.0
      %4369 = vmatpush2.msra.mxu0 0.0
      %4370 = vmatprep.subr.mxu0 0.0
      %4371 = vmatpush2.msra.mxu0 0.0
      %4372 = vmatprep.subr.mxu0 0.0
      %4373 = vmatpush2.msra.mxu0 0.0
      %4374 = vmatprep.subr.mxu0 0.0
      %4375 = vmatpush2.msra.mxu0 0.0
      %4376 = vmatprep.subr.mxu0 0.0
      %4377 = vmatpush2.msra.mxu0 0.0
      %4378 = vmatprep.subr.mxu0 0.0
      %4379 = vmatpush2.msra.mxu0 0.0
      %4380 = vmatprep.subr.mxu0 0.0
      %4381 = vmatpush2.msra.mxu0 0.0
      %4382 = vmatprep.subr.mxu0 0.0
      %4383 = vmatpush2.msra.mxu0 0.0
      %4384 = vmatprep.subr.mxu0 0.0
      %4385 = vmatpush2.msra.mxu0 0.0
      %4386 = vmatprep.mubr.f32.mxu0 0.0
      %4387 = vmatmul.mubr.f32.gmra.mxu0 %v4223
      %v4388 = vpop.f32.mrf.mxu0
      %v4389 = vadd.f32 0.0, %v4388
      %v4390 = vpop.f32.mrf.mxu0
      %4391 = vmatprep.mubr.f32.mxu0 0.0
      %4392 = vmatmul.mubr.f32.gmra.mxu0 %v4226
      %v4393 = vpop.f32.mrf.mxu0
      %v4394 = vadd.f32 0.0, %v4393
      %v4395 = vpop.f32.mrf.mxu0
      %4396 = vmatprep.mubr.f32.mxu0 0.0
      %4397 = vmatmul.mubr.f32.gmra.mxu0 %v4229
      %v4398 = vpop.f32.mrf.mxu0
      %v4399 = vadd.f32 0.0, %v4398
      %v4400 = vpop.f32.mrf.mxu0
      %4401 = vmatprep.mubr.f32.mxu0 0.0
      %4402 = vmatmul.mubr.f32.gmra.mxu0 %v4232
      %v4403 = vpop.f32.mrf.mxu0
      %v4404 = vadd.f32 0.0, %v4403
      %v4405 = vpop.f32.mrf.mxu0
      %4406 = vmatprep.mubr.f32.mxu0 0.0
      %4407 = vmatmul.mubr.f32.gmra.mxu0 %v4235
      %v4408 = vpop.f32.mrf.mxu0
      %v4409 = vadd.f32 0.0, %v4408
      %v4410 = vpop.f32.mrf.mxu0
      %4411 = vmatprep.mubr.f32.mxu0 0.0
      %4412 = vmatmul.mubr.f32.gmra.mxu0 %v4238
      %v4413 = vpop.f32.mrf.mxu0
      %v4414 = vadd.f32 0.0, %v4413
      %v4415 = vpop.f32.mrf.mxu0
      %4416 = vmatprep.mubr.f32.mxu0 0.0
      %4417 = vmatmul.mubr.f32.gmra.mxu0 %v4241
      %v4418 = vpop.f32.mrf.mxu0
      %v4419 = vadd.f32 0.0, %v4418
      %v4420 = vpop.f32.mrf.mxu0
      %4421 = vmatprep.mubr.f32.mxu0 0.0
      %4422 = vmatmul.mubr.f32.gmra.mxu0 %v4244
      %v4423 = vpop.f32.mrf.mxu0
      %v4424 = vadd.f32 0.0, %v4423
      %v4425 = vpop.f32.mrf.mxu0
      %4426 = vmatprep.mubr.f32.mxu0 0.0
      %4427 = vmatmul.mubr.f32.gmra.mxu0 %v4247
      %v4428 = vpop.f32.mrf.mxu0
      %v4429 = vadd.f32 0.0, %v4428
      %v4430 = vpop.f32.mrf.mxu0
      %4431 = vmatprep.mubr.f32.mxu0 0.0
      %4432 = vmatmul.mubr.f32.gmra.mxu0 %v4250
      %v4433 = vpop.f32.mrf.mxu0
      %v4434 = vadd.f32 0.0, %v4433
      %v4435 = vpop.f32.mrf.mxu0
      %4436 = vmatprep.mubr.f32.mxu0 0.0
      %4437 = vmatmul.mubr.f32.gmra.mxu0 %v4253
      %v4438 = vpop.f32.mrf.mxu0
      %v4439 = vadd.f32 0.0, %v4438
      %v4440 = vpop.f32.mrf.mxu0
      %4441 = vmatprep.mubr.f32.mxu0 0.0
      %4442 = vmatmul.mubr.f32.gmra.mxu0 %v4256
      %v4443 = vpop.f32.mrf.mxu0
      %v4444 = vadd.f32 0.0, %v4443
      %v4445 = vpop.f32.mrf.mxu0
      %4446 = vmatprep.mubr.f32.mxu0 0.0
      %4447 = vmatmul.mubr.f32.gmra.mxu0 %v4259
      %v4448 = vpop.f32.mrf.mxu0
      %v4449 = vadd.f32 0.0, %v4448
      %v4450 = vpop.f32.mrf.mxu0
      %4451 = vmatprep.mubr.f32.mxu0 0.0
      %4452 = vmatmul.mubr.f32.gmra.mxu0 %v4262
      %v4453 = vpop.f32.mrf.mxu0
      %v4454 = vadd.f32 0.0, %v4453
      %v4455 = vpop.f32.mrf.mxu0
      %4456 = vmatprep.mubr.f32.mxu0 0.0
      %4457 = vmatmul.mubr.f32.gmra.mxu0 %v4265
      %v4458 = vpop.f32.mrf.mxu0
      %v4459 = vadd.f32 0.0, %v4458
      %v4460 = vpop.f32.mrf.mxu0
      %4461 = vmatprep.mubr.f32.mxu0 0.0
      %4462 = vmatmul.mubr.f32.gmra.mxu0 %v4268
      %v4463 = vpop.f32.mrf.mxu0
      %v4464 = vadd.f32 0.0, %v4463
      %v4465 = vpop.f32.mrf.mxu0
      %4466 = vmatprep.mubr.f32.mxu0 0.0
      %4467 = vmatmul.mubr.f32.gmra.mxu0 %v4271
      %v4468 = vpop.f32.mrf.mxu0
      %v4469 = vadd.f32 0.0, %v4468
      %v4470 = vpop.f32.mrf.mxu0
      %4471 = vmatprep.mubr.f32.mxu0 0.0
      %4472 = vmatmul.mubr.f32.gmra.mxu0 %v4274
      %v4473 = vpop.f32.mrf.mxu0
      %v4474 = vadd.f32 0.0, %v4473
      %v4475 = vpop.f32.mrf.mxu0
      %4476 = vmatprep.mubr.f32.mxu0 0.0
      %4477 = vmatmul.mubr.f32.gmra.mxu0 %v4277
      %v4478 = vpop.f32.mrf.mxu0
      %v4479 = vadd.f32 0.0, %v4478
      %v4480 = vpop.f32.mrf.mxu0
      %4481 = vmatprep.mubr.f32.mxu0 0.0
      %4482 = vmatmul.mubr.f32.gmra.mxu0 %v4280
      %v4483 = vpop.f32.mrf.mxu0
      %v4484 = vadd.f32 0.0, %v4483
      %v4485 = vpop.f32.mrf.mxu0
      %4486 = vmatprep.mubr.f32.mxu0 0.0
      %4487 = vmatmul.mubr.f32.gmra.mxu0 %v4283
      %v4488 = vpop.f32.mrf.mxu0
      %v4489 = vadd.f32 0.0, %v4488
      %v4490 = vpop.f32.mrf.mxu0
      %4491 = vmatprep.mubr.f32.mxu0 0.0
      %4492 = vmatmul.mubr.f32.gmra.mxu0 %v4286
      %v4493 = vpop.f32.mrf.mxu0
      %v4494 = vadd.f32 0.0, %v4493
      %v4495 = vpop.f32.mrf.mxu0
      %4496 = vmatprep.mubr.f32.mxu0 0.0
      %4497 = vmatmul.mubr.f32.gmra.mxu0 %v4289
      %v4498 = vpop.f32.mrf.mxu0
      %v4499 = vadd.f32 0.0, %v4498
      %v4500 = vpop.f32.mrf.mxu0
      %4501 = vmatprep.mubr.f32.mxu0 0.0
      %4502 = vmatmul.mubr.f32.gmra.mxu0 %v4292
      %v4503 = vpop.f32.mrf.mxu0
      %v4504 = vadd.f32 0.0, %v4503
      %v4505 = vpop.f32.mrf.mxu0
      %4506 = vmatprep.mubr.f32.mxu0 0.0
      %4507 = vmatmul.mubr.f32.gmra.mxu0 %v4295
      %v4508 = vpop.f32.mrf.mxu0
      %v4509 = vadd.f32 0.0, %v4508
      %v4510 = vpop.f32.mrf.mxu0
      %4511 = vmatprep.mubr.f32.mxu0 0.0
      %4512 = vmatmul.mubr.f32.gmra.mxu0 %v4298
      %v4513 = vpop.f32.mrf.mxu0
      %v4514 = vadd.f32 0.0, %v4513
      %v4515 = vpop.f32.mrf.mxu0
      %4516 = vmatprep.mubr.f32.mxu0 0.0
      %4517 = vmatmul.mubr.f32.gmra.mxu0 %v4301
      %v4518 = vpop.f32.mrf.mxu0
      %v4519 = vadd.f32 0.0, %v4518
      %v4520 = vpop.f32.mrf.mxu0
      %4521 = vmatprep.mubr.f32.mxu0 0.0
      %4522 = vmatmul.mubr.f32.gmra.mxu0 %v4304
      %v4523 = vpop.f32.mrf.mxu0
      %v4524 = vadd.f32 0.0, %v4523
      %v4525 = vpop.f32.mrf.mxu0
      %4526 = vmatprep.mubr.f32.mxu0 0.0
      %4527 = vmatmul.mubr.f32.gmra.mxu0 %v4307
      %v4528 = vpop.f32.mrf.mxu0
      %v4529 = vadd.f32 0.0, %v4528
      %v4530 = vpop.f32.mrf.mxu0
      %4531 = vmatprep.mubr.f32.mxu0 0.0
      %4532 = vmatmul.mubr.f32.gmra.mxu0 %v4310
      %v4533 = vpop.f32.mrf.mxu0
      %v4534 = vadd.f32 0.0, %v4533
      %v4535 = vpop.f32.mrf.mxu0
      %4536 = vmatprep.mubr.f32.mxu0 0.0
      %4537 = vmatmul.mubr.f32.gmra.mxu0 %v4313
      %v4538 = vpop.f32.mrf.mxu0
      %v4539 = vadd.f32 0.0, %v4538
      %v4540 = vpop.f32.mrf.mxu0
      %4541 = vmatprep.mubr.f32.mxu0 0.0
      %4542 = vmatmul.mubr.f32.gmra.mxu0 %v4316
      %v4543 = vpop.f32.mrf.mxu0
      %v4544 = vadd.f32 0.0, %v4543
      %v4545 = vpop.f32.mrf.mxu0
      %4546 = vdwg.mxu0
      %4547 = vst [vmem:[%s170] sm:$0xff] %v4389
      %4548 = vst [vmem:[%s170 + $0x8] sm:$0xff] %v4394
      %4549 = vst [vmem:[%s170 + $0x10] sm:$0xff] %v4399
      %4550 = vst [vmem:[%s170 + $0x18] sm:$0xff] %v4404
      %4551 = vst [vmem:[%s170 + $0x20] sm:$0xff] %v4409
      %4552 = vst [vmem:[%s170 + $0x28] sm:$0xff] %v4414
      %4553 = vst [vmem:[%s170 + $0x30] sm:$0xff] %v4419
      %4554 = vst [vmem:[%s170 + $0x38] sm:$0xff] %v4424
      %4555 = vst [vmem:[%s170 + $0x40] sm:$0xff] %v4429
      %4556 = vst [vmem:[%s170 + $0x48] sm:$0xff] %v4434
      %4557 = vst [vmem:[%s170 + $0x50] sm:$0xff] %v4439
      %4558 = vst [vmem:[%s170 + $0x58] sm:$0xff] %v4444
      %4559 = vst [vmem:[%s170 + $0x60] sm:$0xff] %v4449
      %4560 = vst [vmem:[%s170 + $0x68] sm:$0xff] %v4454
      %4561 = vst [vmem:[%s170 + $0x70] sm:$0xff] %v4459
      %4562 = vst [vmem:[%s170 + $0x78] sm:$0xff] %v4464
      %4563 = vst [vmem:[%s170 + $0x80] sm:$0xff] %v4469
      %4564 = vst [vmem:[%s170 + $0x88] sm:$0xff] %v4474
      %4565 = vst [vmem:[%s170 + $0x90] sm:$0xff] %v4479
      %4566 = vst [vmem:[%s170 + $0x98] sm:$0xff] %v4484
      %4567 = vst [vmem:[%s170 + $0xa0] sm:$0xff] %v4489
      %4568 = vst [vmem:[%s170 + $0xa8] sm:$0xff] %v4494
      %4569 = vst [vmem:[%s170 + $0xb0] sm:$0xff] %v4499
      %4570 = vst [vmem:[%s170 + $0xb8] sm:$0xff] %v4504
      %4571 = vst [vmem:[%s170 + $0xc0] sm:$0xff] %v4509
      %4572 = vst [vmem:[%s170 + $0xc8] sm:$0xff] %v4514
      %4573 = vst [vmem:[%s170 + $0xd0] sm:$0xff] %v4519
      %4574 = vst [vmem:[%s170 + $0xd8] sm:$0xff] %v4524
      %4575 = vst [vmem:[%s170 + $0xe0] sm:$0xff] %v4529
      %4576 = vst [vmem:[%s170 + $0xe8] sm:$0xff] %v4534
      %4577 = vst [vmem:[%s170 + $0xf0] sm:$0xff] %v4539
      %4578 = vst [vmem:[%s170 + $0xf8] sm:$0xff] %v4544
      %p4579 = scmp.lt.s32.totalorder %s14, 1
      %s4580 = scalar_select %p4579, %s14, 1
      %s4581 = smul.addr %s4580, 32
      %s4582 = smul.addr %s4581, 8
      %s4583 = scalar_lea.vmem %s3, %s4582
      // Predicated region
      $region37: #{my_resnet_pair.1} parent=31 // pred_check
        %p4584 = pneg %p100
      $region38: #{my_resnet_pair.1} parent=31 // pred_check_branch
        %4586 = sbr.rel (%p4584) target = $region40
      $region39: #{my_resnet_pair.1} parent=31 // pred_region
        _
      $region40: #{my_resnet_pair.1} parent=31 // pred_fallthru
        _
    $region32: #{my_resnet_pair.1} parent=5 // pred_fallthru
      _
    %p4587 = scmp.le.s32.totalorder 2, %s9
    // Predicated region
    $region41: #{my_resnet_pair.1} parent=5 // pred_check
      %p4588 = pneg %p4587
    $region42: #{my_resnet_pair.1} parent=5 // pred_check_branch
      %4590 = sbr.rel (%p4588) target = $region44
    $region43: #{my_resnet_pair.1} parent=5 // pred_region
      %s4591 = ssub.s32 %s9, 2
      // Predicated region
      $region45: #{my_resnet_pair.1} parent=43 // pred_check
        %p4592 = pneg %p106
      $region46: #{my_resnet_pair.1} parent=43 // pred_check_branch
        %4594 = sbr.rel (%p4592) target = $region48
      $region47: #{my_resnet_pair.1} parent=43 // pred_region
        %p4595 = scmp.lt.s32.totalorder %s15, 1
        %s4596 = scalar_select %p4595, %s15, 1
        %s4597 = smul.addr %s4596, 32
        %s4598 = smul.addr %s4597, 8
        %s4599 = scalar_lea.vmem %s3, %s4598
      $region48: #{my_resnet_pair.1} parent=43 // pred_fallthru
        _
    $region44: #{my_resnet_pair.1} parent=5 // pred_fallthru
      _
  $region6: #{my_resnet_pair.1} parent=0 // loop_footer
    %s13 = sadd.s32 1, %s9
  $region7: #{my_resnet_pair.1} parent=0 // loop_footer_branch
    %8 = sbr.rel target = $region3
  $region8: #{my_resnet_pair.1} parent=0 // loop_exit
    _

</llo_original>
